<compile_context>
chip_gen: v5e
topology: v5e:2x2
jax: 0.10.0
libtpu: 0.0.40
codegen_flags: <defaults>
</compile_context>

<pallas_src>
import math

import jax
import jax.numpy as jnp
from jax.experimental import pallas as pl
from jax.experimental.pallas import tpu as pltpu

# ---- model hyper-parameters (small but consistent with the module) ----------
D = 64                 # n_embd
H = 4                  # attention heads
HD = D // H            # head dim
F = 4 * D              # GPT-2 n_inner = 4 * n_embd
L = 2                  # n_layer
V = 16                 # annotation_vocab_size
VP = 128               # lane-padded projection width (>= V)
N_ANN = 10             # unique_annotators (vocab extension)
TEXT_VOCAB = 50        # stub decoder vocab
MAX_POS = 32           # stub position-embedding table size
SEPARATOR_TOKENS = [1, 2]
LN_EPS = 1e-5
NEG_INF = -1e30


def _layernorm(x, w, b):
    mu = jnp.mean(x, axis=-1, keepdims=True)
    var = jnp.mean(jnp.square(x - mu), axis=-1, keepdims=True)
    return (x - mu) * jax.lax.rsqrt(var + LN_EPS) * w + b


# =============================================================================
# Fused Pallas kernel: L decoder blocks + final LN + projection.
# Each grid step processes a block of BB batch elements; the QKV / Wo / MLP /
# projection matmuls run on the flattened (BB*S, D) activation, only the
# attention score/softmax/PV part is per batch element (per-b additive mask).
# =============================================================================
def _decoder_kernel(x_ref, mask_ref, wqkv_ref, bqkv_ref, wo_ref, ln_ref,
                    w1_ref, b1_ref, w2t_ref, lnf_ref, pw_ref, pb_ref, out_ref):
    BB, S, _ = x_ref.shape
    Sa = out_ref.shape[1]
    M = BB * S

    # Residual stream in f32, batch folded into the matmul M dimension.
    x = x_ref[...].reshape(M, D).astype(jnp.float32)

    # Causal + key-padding additive masks, built once (hoisted out of layers).
    row = jax.lax.broadcasted_iota(jnp.int32, (S, S), 0)
    col = jax.lax.broadcasted_iota(jnp.int32, (S, S), 1)
    causal = jnp.where(row >= col, 0.0, NEG_INF).astype(jnp.float32)
    add_masks = [causal + mask_ref[b] for b in range(BB)]      # each (S, S)

    scale = 1.0 / math.sqrt(HD)

    def layer_fn(l, x):
        wqkv = wqkv_ref[l]             # (D, 3D) bf16  [Wq|Wk|Wv]
        bqkv = bqkv_ref[l]             # (1, 3D) f32
        wo = wo_ref[l]                 # (D, D)  bf16
        lnp = ln_ref[l]                # (8, D)  f32
        w1 = w1_ref[l]                 # (D, F)  bf16  (c_fc)
        b1 = b1_ref[l]                 # (1, F)  f32
        w2t = w2t_ref[l]               # (D, F)  bf16  (c_proj^T, lane-dense)

        ln1w, ln1b = lnp[0:1], lnp[1:2]
        ln2w, ln2b = lnp[2:3], lnp[3:4]
        b2, bo = lnp[4:5], lnp[5:6]

        # ---- pre-LN causal multi-head self attention ------------------------
        xn = _layernorm(x, ln1w, ln1b)
        qkv = (jnp.dot(xn.astype(jnp.bfloat16), wqkv,
                       preferred_element_type=jnp.float32)
               + bqkv).astype(jnp.bfloat16)                    # (M, 3D) bf16
        q = qkv[:, 0 * D:1 * D]
        k = qkv[:, 1 * D:2 * D]
        v = qkv[:, 2 * D:3 * D]

        ctx_rows = []
        for b in range(BB):                                    # static unroll
            rs = slice(b * S, (b + 1) * S)
            q_b, k_b, v_b, m_b = q[rs], k[rs], v[rs], add_masks[b]
            heads = []
            for h in range(H):                                 # static unroll
                hs = slice(h * HD, (h + 1) * HD)
                # bf16 MXU operands, f32 accumulation; the contraction handles
                # K^T (no materialized transpose).
                s = jax.lax.dot_general(
                    q_b[:, hs], k_b[:, hs],
                    dimension_numbers=(((1,), (1,)), ((), ())),
                    preferred_element_type=jnp.float32) * scale
                s = s + m_b
                s = s - jnp.max(s, axis=-1, keepdims=True)
                p = jnp.exp(s)
                p = p * pl.reciprocal(jnp.sum(p, axis=-1, keepdims=True),
                                      approx=True)
                heads.append(jnp.dot(p.astype(jnp.bfloat16), v_b[:, hs],
                                     preferred_element_type=jnp.float32))
            ctx_rows.append(jnp.concatenate(heads, axis=-1))   # (S, D)
        ctx = jnp.concatenate(ctx_rows, axis=0)                # (M, D)
        # single K=D output projection (replaces 4 tiny per-head matmuls)
        attn = jnp.dot(ctx.astype(jnp.bfloat16), wo,
                       preferred_element_type=jnp.float32) + bo
        x = x + attn

        # ---- pre-LN MLP (c_fc -> tanh-GELU -> c_proj) ------------------------
        xn2 = _layernorm(x, ln2w, ln2b)
        hidden = jax.nn.gelu(
            jnp.dot(xn2.astype(jnp.bfloat16), w1,
                    preferred_element_type=jnp.float32) + b1,
            approximate=True)                                  # GPT-2 gelu_new
        ff = jax.lax.dot_general(hidden.astype(jnp.bfloat16), w2t,
                                 dimension_numbers=(((1,), (1,)), ((), ())),
                                 preferred_element_type=jnp.float32) + b2
        return x + ff

    x = jax.lax.fori_loop(0, L, layer_fn, x, unroll=True)

    # ---- epilogue: final LayerNorm + projection of the LAST Sa rows only -----
    lnf = lnf_ref[...]
    pw = pw_ref[...]
    pb = pb_ref[...]
    for b in range(BB):                                        # static unroll
        tail = x[b * S + S - Sa: b * S + S]                    # (Sa, D)
        xf = _layernorm(tail, lnf[0:1], lnf[1:2])
        logits = jnp.dot(xf.astype(jnp.bfloat16), pw,
                         preferred_element_type=jnp.float32) + pb   # (Sa, VP)
        out_ref[b] = logits.astype(out_ref.dtype)


# =============================================================================
# Wrappers
# =============================================================================
def _batch_block_size(B):
    """One grid step per TensorCore: split batch only on dual-TC chips (v7x)."""
    try:
        kind = jax.devices()[0].device_kind.lower()
    except Exception:
        kind = ""
    if "v7" in kind and B % 2 == 0:
        return B // 2          # v7x: 2 TCs -> 2 "parallel" grid steps
    return B                   # v5e/v6e (single TC): fold whole batch, grid=(1,)


def _nbytes(a):
    return int(a.size) * a.dtype.itemsize


def decode_and_project(x, add_mask, p, sa):
    """x: (B, S, D) f32, add_mask: (B, 1, S) f32 additive key-padding mask."""
    B, S, _ = x.shape
    bb = _batch_block_size(B)
    grid = (B // bb,)

    bmap = lambda i: (i, 0, 0)
    cmap3 = lambda i: (0, 0, 0)
    cmap2 = lambda i: (0, 0)
    in_specs = [
        pl.BlockSpec((bb, S, D), bmap),         # x
        pl.BlockSpec((bb, 1, S), bmap),         # additive padding mask
        pl.BlockSpec((L, D, 3 * D), cmap3),     # fused QKV weight
        pl.BlockSpec((L, 1, 3 * D), cmap3),     # fused QKV bias
        pl.BlockSpec((L, D, D), cmap3),         # attention output proj Wo
        pl.BlockSpec((L, 8, D), cmap3),         # ln1 w/b, ln2 w/b, b2, bo (+pad)
        pl.BlockSpec((L, D, F), cmap3),         # c_fc weight
        pl.BlockSpec((L, 1, F), cmap3),         # c_fc bias
        pl.BlockSpec((L, D, F), cmap3),         # c_proj weight (transposed)
        pl.BlockSpec((2, D), cmap2),            # final LN w/b
        pl.BlockSpec((D, VP), cmap2),           # projection weight (lane-padded)
        pl.BlockSpec((1, VP), cmap2),           # projection bias (lane-padded)
    ]

    # Advisory cost estimate so XLA schedules the embedding-gather fusion
    # tightly against this call.
    M = B * S
    flops = int(L * (2 * M * D * (3 * D + D + 2 * F) + 4 * B * S * S * D)
                + 2 * B * sa * D * VP)
    transcendentals = int(L * (B * H * S * S + M * F))
    bytes_accessed = int(_nbytes(x) + _nbytes(add_mask) + B * sa * VP * 4
                         + sum(_nbytes(p[k]) for k in
                               ("wqkv", "bqkv", "wo", "ln", "w1", "b1", "w2t",
                                "lnf", "proj_w", "proj_b")))

    # NOTE: constant-index (L, ...) weight blocks are tiny here (<1 MiB total);
    # if D/F/L grow toward v7x's 64 MiB VMEM, switch them to a per-layer
    # "arbitrary" grid axis or pl.Buffered(1).
    return pl.pallas_call(
        _decoder_kernel,
        out_shape=jax.ShapeDtypeStruct((B, sa, VP), jnp.float32),
        grid_spec=pltpu.PrefetchScalarGridSpec(
            num_scalar_prefetch=0,
            grid=grid,
            in_specs=in_specs,
            out_specs=pl.BlockSpec((bb, sa, VP), bmap)),
        compiler_params=pltpu.CompilerParams(
            dimension_semantics=("parallel",),
            vmem_limit_bytes=32 * 1024 * 1024),
        cost_estimate=pl.CostEstimate(flops=flops,
                                      transcendentals=transcendentals,
                                      bytes_accessed=bytes_accessed),
    )(x, add_mask, p["wqkv"], p["bqkv"], p["wo"], p["ln"], p["w1"], p["b1"],
      p["w2t"], p["lnf"], p["proj_w"], p["proj_b"])


def init_params(key):
    ks = jax.random.split(key, 8)

    def nrm(k, shape, scale=0.02):
        return (scale * jax.random.normal(k, shape)).astype(jnp.float32)

    params = {}
    # TODO(synk): stub for GPT2Model.from_pretrained (no checkpoint available)
    params["wte"] = nrm(ks[0], (TEXT_VOCAB + N_ANN, D))       # resized embeddings
    params["wpe"] = nrm(ks[1], (MAX_POS, D))

    params["wqkv"] = nrm(ks[2], (L, D, 3 * D)).astype(jnp.bfloat16)
    params["bqkv"] = jnp.zeros((L, 1, 3 * D), jnp.float32)
    params["wo"] = nrm(ks[3], (L, D, D)).astype(jnp.bfloat16)
    ln = jnp.zeros((L, 8, D), jnp.float32)
    ln = ln.at[:, 0, :].set(1.0)                              # ln1 weight
    ln = ln.at[:, 2, :].set(1.0)                              # ln2 weight
    params["ln"] = ln                                         # rows 4/5: b2, bo
    params["w1"] = nrm(ks[4], (L, D, F)).astype(jnp.bfloat16)
    params["b1"] = jnp.zeros((L, 1, F), jnp.float32)
    params["w2t"] = nrm(ks[5], (L, D, F)).astype(jnp.bfloat16)   # c_proj^T
    params["lnf"] = jnp.concatenate(
        [jnp.ones((1, D), jnp.float32), jnp.zeros((1, D), jnp.float32)], axis=0)

    proj_w = jnp.zeros((D, VP), jnp.float32).at[:, :V].set(nrm(ks[6], (D, V)))
    params["proj_w"] = proj_w.astype(jnp.bfloat16)
    params["proj_b"] = jnp.zeros((1, VP), jnp.float32)
    return params


def forward(params, *, text_tokens, text_mask, annotator_tokens, annotator_mask):
    """DecoderOnlyModel.forward (eval mode: dropout == identity)."""
    B = text_tokens.shape[0]
    Sa = annotator_tokens.shape[1]

    separator = jnp.tile(jnp.asarray(SEPARATOR_TOKENS, jnp.int32)[None, :], (B, 1))
    separator_mask = jnp.zeros((B, separator.shape[1]), dtype=bool)

    ids = jnp.concatenate([text_tokens, separator, annotator_tokens], axis=1)
    full_mask = jnp.concatenate([text_mask, separator_mask, annotator_mask], axis=1)
    S = ids.shape[1]

    # embeddings (token + absolute position), plain XLA gathers
    x = jnp.take(params["wte"], ids, axis=0) + params["wpe"][jnp.arange(S)][None]
    # True in the mask == padded key (mirrors `attention_mask=~mask` in the ref)
    add_mask = jnp.where(full_mask, NEG_INF, 0.0).astype(jnp.float32)[:, None, :]

    logits_pad = decode_and_project(x.astype(jnp.float32), add_mask, params, Sa)
    # kernel already projected only the last Sa positions; un-pad lanes.
    return logits_pad[..., :V]


# =============================================================================
if __name__ == "__main__":
    key = jax.random.PRNGKey(0)
    p_key, t_key = jax.random.split(key)
    params = init_params(p_key)

    B, St, Sa = 2, 10, 4
    text_tokens = jax.random.randint(t_key, (B, St), 0, TEXT_VOCAB, dtype=jnp.int32)
    text_mask = jnp.array([[0, 0, 0, 0, 0, 0, 0, 0, 1, 1],
                           [0, 0, 0, 0, 0, 0, 0, 0, 0, 0]], dtype=bool)
    # annotator token ids live in the resized-vocab range [TEXT_VOCAB, TEXT_VOCAB+N_ANN)
    annotator_tokens = jnp.array([[50, 52, 54, 56],
                                  [51, 53, 55, 57]], dtype=jnp.int32)
    annotator_mask = jnp.array([[0, 0, 0, 1],
                                [0, 0, 0, 0]], dtype=bool)

    logits = forward(params,
                     text_tokens=text_tokens, text_mask=text_mask,
                     annotator_tokens=annotator_tokens, annotator_mask=annotator_mask)
    logits = jax.block_until_ready(logits)
    assert logits.shape == (B, Sa, V), logits.shape
    assert bool(jnp.all(jnp.isfinite(logits)))
    print("KERNEL_OK")
</pallas_src>

<mosaic_0001>
module attributes {stable_mosaic.version = 11 : i64} {
  func.func @_decoder_kernel(%arg0: i32, %arg1: memref<2x16x64xf32, #tpu.memory_space<vmem>>, %arg2: memref<2x1x16xf32, #tpu.memory_space<vmem>>, %arg3: memref<2x64x192xbf16, #tpu.memory_space<vmem>>, %arg4: memref<2x1x192xf32, #tpu.memory_space<vmem>>, %arg5: memref<2x64x64xbf16, #tpu.memory_space<vmem>>, %arg6: memref<2x8x64xf32, #tpu.memory_space<vmem>>, %arg7: memref<2x64x256xbf16, #tpu.memory_space<vmem>>, %arg8: memref<2x1x256xf32, #tpu.memory_space<vmem>>, %arg9: memref<2x64x256xbf16, #tpu.memory_space<vmem>>, %arg10: memref<2x64xf32, #tpu.memory_space<vmem>>, %arg11: memref<64x128xbf16, #tpu.memory_space<vmem>>, %arg12: memref<1x128xf32, #tpu.memory_space<vmem>>, %arg13: memref<2x4x128xf32, #tpu.memory_space<vmem>>) attributes {dimension_semantics = [#tpu.dimension_semantics<parallel>], iteration_bounds = array<i64: 1>, scalar_prefetch = 0 : i64, scratch_operands = 0 : i64, tpu.core_type = #tpu.core_type<tc>, window_params = [{transform_indices = @transform_0, window_bounds = array<i64: 2, 16, 64>}, {transform_indices = @transform_1, window_bounds = array<i64: 2, 1, 16>}, {pipeline_mode = #tpu.pipeline_mode<synchronous>, transform_indices = @transform_2, window_bounds = array<i64: 2, 64, 192>}, {pipeline_mode = #tpu.pipeline_mode<synchronous>, transform_indices = @transform_3, window_bounds = array<i64: 2, 1, 192>}, {pipeline_mode = #tpu.pipeline_mode<synchronous>, transform_indices = @transform_4, window_bounds = array<i64: 2, 64, 64>}, {pipeline_mode = #tpu.pipeline_mode<synchronous>, transform_indices = @transform_5, window_bounds = array<i64: 2, 8, 64>}, {pipeline_mode = #tpu.pipeline_mode<synchronous>, transform_indices = @transform_6, window_bounds = array<i64: 2, 64, 256>}, {pipeline_mode = #tpu.pipeline_mode<synchronous>, transform_indices = @transform_7, window_bounds = array<i64: 2, 1, 256>}, {pipeline_mode = #tpu.pipeline_mode<synchronous>, transform_indices = @transform_8, window_bounds = array<i64: 2, 64, 256>}, {pipeline_mode = #tpu.pipeline_mode<synchronous>, transform_indices = @transform_9, window_bounds = array<i64: 2, 64>}, {pipeline_mode = #tpu.pipeline_mode<synchronous>, transform_indices = @transform_10, window_bounds = array<i64: 64, 128>}, {pipeline_mode = #tpu.pipeline_mode<synchronous>, transform_indices = @transform_11, window_bounds = array<i64: 1, 128>}, {transform_indices = @transform_12, window_bounds = array<i64: 2, 4, 128>}]} {
    %c0 = arith.constant 0 : index
    %c0_0 = arith.constant 0 : index
    %c0_1 = arith.constant 0 : index
    %0 = vector.load %arg1[%c0, %c0_0, %c0_1] : memref<2x16x64xf32, #tpu.memory_space<vmem>>, vector<2x16x64xf32>
    %1 = vector.shape_cast %0 : vector<2x16x64xf32> to vector<32x64xf32>
    %2 = tpu.iota {dimensions = array<i32: 0>} : vector<16x16xi32>
    %3 = tpu.iota {dimensions = array<i32: 1>} : vector<16x16xi32>
    %4 = arith.cmpi sge, %2, %3 : vector<16x16xi32>
    %cst = arith.constant 0.000000e+00 : f32
    %cst_2 = arith.constant -1.000000e+30 : f32
    %5 = vector.broadcast %cst : f32 to vector<16x16xf32>
    %6 = vector.broadcast %cst_2 : f32 to vector<16x16xf32>
    %7 = arith.select %4, %5, %6 : vector<16x16xi1>, vector<16x16xf32>
    %c0_3 = arith.constant 0 : index
    %c0_4 = arith.constant 0 : index
    %c0_5 = arith.constant 0 : index
    %8 = vector.load %arg2[%c0_3, %c0_4, %c0_5] : memref<2x1x16xf32, #tpu.memory_space<vmem>>, vector<1x1x16xf32>
    %9 = vector.shape_cast %8 : vector<1x1x16xf32> to vector<1x16xf32>
    %10 = vector.broadcast %9 : vector<1x16xf32> to vector<16x16xf32>
    %11 = arith.addf %7, %10 : vector<16x16xf32>
    %c1 = arith.constant 1 : index
    %c0_6 = arith.constant 0 : index
    %c0_7 = arith.constant 0 : index
    %12 = vector.load %arg2[%c1, %c0_6, %c0_7] : memref<2x1x16xf32, #tpu.memory_space<vmem>>, vector<1x1x16xf32>
    %13 = vector.shape_cast %12 : vector<1x1x16xf32> to vector<1x16xf32>
    %14 = vector.broadcast %13 : vector<1x16xf32> to vector<16x16xf32>
    %15 = arith.addf %7, %14 : vector<16x16xf32>
    %c0_i32 = arith.constant 0 : i32
    %16 = arith.index_cast %c0_i32 : i32 to index
    %c0_8 = arith.constant 0 : index
    %c0_9 = arith.constant 0 : index
    %17 = vector.load %arg3[%16, %c0_8, %c0_9] : memref<2x64x192xbf16, #tpu.memory_space<vmem>>, vector<1x64x192xbf16>
    %18 = vector.shape_cast %17 : vector<1x64x192xbf16> to vector<64x192xbf16>
    %19 = arith.index_cast %c0_i32 : i32 to index
    %c0_10 = arith.constant 0 : index
    %c0_11 = arith.constant 0 : index
    %20 = vector.load %arg4[%19, %c0_10, %c0_11] : memref<2x1x192xf32, #tpu.memory_space<vmem>>, vector<1x1x192xf32>
    %21 = vector.shape_cast %20 : vector<1x1x192xf32> to vector<1x192xf32>
    %22 = arith.index_cast %c0_i32 : i32 to index
    %c0_12 = arith.constant 0 : index
    %c0_13 = arith.constant 0 : index
    %23 = vector.load %arg5[%22, %c0_12, %c0_13] : memref<2x64x64xbf16, #tpu.memory_space<vmem>>, vector<1x64x64xbf16>
    %24 = vector.shape_cast %23 : vector<1x64x64xbf16> to vector<64x64xbf16>
    %25 = arith.index_cast %c0_i32 : i32 to index
    %c0_14 = arith.constant 0 : index
    %c0_15 = arith.constant 0 : index
    %26 = vector.load %arg6[%25, %c0_14, %c0_15] : memref<2x8x64xf32, #tpu.memory_space<vmem>>, vector<1x8x64xf32>
    %27 = vector.shape_cast %26 : vector<1x8x64xf32> to vector<8x64xf32>
    %28 = arith.index_cast %c0_i32 : i32 to index
    %c0_16 = arith.constant 0 : index
    %c0_17 = arith.constant 0 : index
    %29 = vector.load %arg7[%28, %c0_16, %c0_17] : memref<2x64x256xbf16, #tpu.memory_space<vmem>>, vector<1x64x256xbf16>
    %30 = vector.shape_cast %29 : vector<1x64x256xbf16> to vector<64x256xbf16>
    %31 = arith.index_cast %c0_i32 : i32 to index
    %c0_18 = arith.constant 0 : index
    %c0_19 = arith.constant 0 : index
    %32 = vector.load %arg8[%31, %c0_18, %c0_19] : memref<2x1x256xf32, #tpu.memory_space<vmem>>, vector<1x1x256xf32>
    %33 = vector.shape_cast %32 : vector<1x1x256xf32> to vector<1x256xf32>
    %34 = arith.index_cast %c0_i32 : i32 to index
    %c0_20 = arith.constant 0 : index
    %c0_21 = arith.constant 0 : index
    %35 = vector.load %arg9[%34, %c0_20, %c0_21] : memref<2x64x256xbf16, #tpu.memory_space<vmem>>, vector<1x64x256xbf16>
    %36 = vector.shape_cast %35 : vector<1x64x256xbf16> to vector<64x256xbf16>
    %37 = vector.extract_strided_slice %27 {offsets = [0, 0], sizes = [1, 64], strides = [1, 1]} : vector<8x64xf32> to vector<1x64xf32>
    %38 = vector.extract_strided_slice %27 {offsets = [1, 0], sizes = [1, 64], strides = [1, 1]} : vector<8x64xf32> to vector<1x64xf32>
    %39 = vector.extract_strided_slice %27 {offsets = [2, 0], sizes = [1, 64], strides = [1, 1]} : vector<8x64xf32> to vector<1x64xf32>
    %40 = vector.extract_strided_slice %27 {offsets = [3, 0], sizes = [1, 64], strides = [1, 1]} : vector<8x64xf32> to vector<1x64xf32>
    %41 = vector.extract_strided_slice %27 {offsets = [4, 0], sizes = [1, 64], strides = [1, 1]} : vector<8x64xf32> to vector<1x64xf32>
    %42 = vector.extract_strided_slice %27 {offsets = [5, 0], sizes = [1, 64], strides = [1, 1]} : vector<8x64xf32> to vector<1x64xf32>
    %cst_22 = arith.constant dense<0.000000e+00> : vector<32xf32>
    %43 = vector.multi_reduction <add>, %1, %cst_22 [1] : vector<32x64xf32> to vector<32xf32>
    %44 = vector.shape_cast %43 : vector<32xf32> to vector<32x1xf32>
    %cst_23 = arith.constant 6.400000e+01 : f32
    %45 = vector.broadcast %cst_23 : f32 to vector<32x1xf32>
    %46 = arith.divf %44, %45 : vector<32x1xf32>
    %47 = vector.broadcast %46 : vector<32x1xf32> to vector<32x64xf32>
    %48 = arith.subf %1, %47 : vector<32x64xf32>
    %49 = arith.mulf %48, %48 : vector<32x64xf32>
    %cst_24 = arith.constant dense<0.000000e+00> : vector<32xf32>
    %50 = vector.multi_reduction <add>, %49, %cst_24 [1] : vector<32x64xf32> to vector<32xf32>
    %51 = vector.shape_cast %50 : vector<32xf32> to vector<32x1xf32>
    %cst_25 = arith.constant 6.400000e+01 : f32
    %52 = vector.broadcast %cst_25 : f32 to vector<32x1xf32>
    %53 = arith.divf %51, %52 : vector<32x1xf32>
    %54 = vector.broadcast %46 : vector<32x1xf32> to vector<32x64xf32>
    %55 = arith.subf %1, %54 : vector<32x64xf32>
    %cst_26 = arith.constant 9.99999974E-6 : f32
    %56 = vector.broadcast %cst_26 : f32 to vector<32x1xf32>
    %57 = arith.addf %53, %56 : vector<32x1xf32>
    %58 = math.rsqrt %57 : vector<32x1xf32>
    %59 = vector.broadcast %58 : vector<32x1xf32> to vector<32x64xf32>
    %60 = arith.mulf %55, %59 : vector<32x64xf32>
    %61 = vector.broadcast %37 : vector<1x64xf32> to vector<32x64xf32>
    %62 = arith.mulf %60, %61 : vector<32x64xf32>
    %63 = vector.broadcast %38 : vector<1x64xf32> to vector<32x64xf32>
    %64 = arith.addf %62, %63 : vector<32x64xf32>
    %65 = arith.truncf %64 : vector<32x64xf32> to vector<32x64xbf16>
    %cst_27 = arith.constant dense<0.000000e+00> : vector<32x192xf32>
    %66 = tpu.matmul %65, %18, %cst_27 {dimension_numbers = #tpu.dot_dimension_numbers<[1], [0], [0], [1], [0, 0, 1, 1], [], []>} : vector<32x64xbf16>, vector<64x192xbf16>, vector<32x192xf32> -> vector<32x192xf32>
    %67 = vector.broadcast %21 : vector<1x192xf32> to vector<32x192xf32>
    %68 = arith.addf %66, %67 : vector<32x192xf32>
    %69 = arith.truncf %68 : vector<32x192xf32> to vector<32x192xbf16>
    %70 = vector.extract_strided_slice %69 {offsets = [0, 0], sizes = [32, 64], strides = [1, 1]} : vector<32x192xbf16> to vector<32x64xbf16>
    %71 = vector.extract_strided_slice %69 {offsets = [0, 64], sizes = [32, 64], strides = [1, 1]} : vector<32x192xbf16> to vector<32x64xbf16>
    %72 = vector.extract_strided_slice %69 {offsets = [0, 128], sizes = [32, 64], strides = [1, 1]} : vector<32x192xbf16> to vector<32x64xbf16>
    %73 = vector.extract_strided_slice %70 {offsets = [0, 0], sizes = [16, 64], strides = [1, 1]} : vector<32x64xbf16> to vector<16x64xbf16>
    %74 = vector.extract_strided_slice %71 {offsets = [0, 0], sizes = [16, 64], strides = [1, 1]} : vector<32x64xbf16> to vector<16x64xbf16>
    %75 = vector.extract_strided_slice %72 {offsets = [0, 0], sizes = [16, 64], strides = [1, 1]} : vector<32x64xbf16> to vector<16x64xbf16>
    %76 = vector.extract_strided_slice %73 {offsets = [0, 0], sizes = [16, 16], strides = [1, 1]} : vector<16x64xbf16> to vector<16x16xbf16>
    %77 = vector.extract_strided_slice %74 {offsets = [0, 0], sizes = [16, 16], strides = [1, 1]} : vector<16x64xbf16> to vector<16x16xbf16>
    %cst_28 = arith.constant dense<0.000000e+00> : vector<16x16xf32>
    %78 = tpu.matmul %76, %77, %cst_28 {dimension_numbers = #tpu.dot_dimension_numbers<[1], [1], [0], [0], [0, 0, 1, 0], [], []>} : vector<16x16xbf16>, vector<16x16xbf16>, vector<16x16xf32> -> vector<16x16xf32>
    %cst_29 = arith.constant 2.500000e-01 : f32
    %79 = vector.broadcast %cst_29 : f32 to vector<16x16xf32>
    %80 = arith.mulf %78, %79 : vector<16x16xf32>
    %81 = arith.addf %80, %11 : vector<16x16xf32>
    %cst_30 = arith.constant dense<0xFF800000> : vector<16xf32>
    %82 = vector.multi_reduction <maximumf>, %81, %cst_30 [1] : vector<16x16xf32> to vector<16xf32>
    %83 = vector.shape_cast %82 : vector<16xf32> to vector<16x1xf32>
    %84 = vector.broadcast %83 : vector<16x1xf32> to vector<16x16xf32>
    %85 = arith.subf %81, %84 : vector<16x16xf32>
    %86 = math.exp %85 : vector<16x16xf32>
    %cst_31 = arith.constant dense<0.000000e+00> : vector<16xf32>
    %87 = vector.multi_reduction <add>, %86, %cst_31 [1] : vector<16x16xf32> to vector<16xf32>
    %88 = vector.shape_cast %87 : vector<16xf32> to vector<16x1xf32>
    %89 = tpu.reciprocal %88 {approx = true} : vector<16x1xf32> -> vector<16x1xf32>
    %90 = vector.broadcast %89 : vector<16x1xf32> to vector<16x16xf32>
    %91 = arith.mulf %86, %90 : vector<16x16xf32>
    %92 = arith.truncf %91 : vector<16x16xf32> to vector<16x16xbf16>
    %93 = vector.extract_strided_slice %75 {offsets = [0, 0], sizes = [16, 16], strides = [1, 1]} : vector<16x64xbf16> to vector<16x16xbf16>
    %cst_32 = arith.constant dense<0.000000e+00> : vector<16x16xf32>
    %94 = tpu.matmul %92, %93, %cst_32 {dimension_numbers = #tpu.dot_dimension_numbers<[1], [0], [0], [1], [0, 0, 1, 1], [], []>} : vector<16x16xbf16>, vector<16x16xbf16>, vector<16x16xf32> -> vector<16x16xf32>
    %95 = vector.extract_strided_slice %73 {offsets = [0, 16], sizes = [16, 16], strides = [1, 1]} : vector<16x64xbf16> to vector<16x16xbf16>
    %96 = vector.extract_strided_slice %74 {offsets = [0, 16], sizes = [16, 16], strides = [1, 1]} : vector<16x64xbf16> to vector<16x16xbf16>
    %cst_33 = arith.constant dense<0.000000e+00> : vector<16x16xf32>
    %97 = tpu.matmul %95, %96, %cst_33 {dimension_numbers = #tpu.dot_dimension_numbers<[1], [1], [0], [0], [0, 0, 1, 0], [], []>} : vector<16x16xbf16>, vector<16x16xbf16>, vector<16x16xf32> -> vector<16x16xf32>
    %cst_34 = arith.constant 2.500000e-01 : f32
    %98 = vector.broadcast %cst_34 : f32 to vector<16x16xf32>
    %99 = arith.mulf %97, %98 : vector<16x16xf32>
    %100 = arith.addf %99, %11 : vector<16x16xf32>
    %cst_35 = arith.constant dense<0xFF800000> : vector<16xf32>
    %101 = vector.multi_reduction <maximumf>, %100, %cst_35 [1] : vector<16x16xf32> to vector<16xf32>
    %102 = vector.shape_cast %101 : vector<16xf32> to vector<16x1xf32>
    %103 = vector.broadcast %102 : vector<16x1xf32> to vector<16x16xf32>
    %104 = arith.subf %100, %103 : vector<16x16xf32>
    %105 = math.exp %104 : vector<16x16xf32>
    %cst_36 = arith.constant dense<0.000000e+00> : vector<16xf32>
    %106 = vector.multi_reduction <add>, %105, %cst_36 [1] : vector<16x16xf32> to vector<16xf32>
    %107 = vector.shape_cast %106 : vector<16xf32> to vector<16x1xf32>
    %108 = tpu.reciprocal %107 {approx = true} : vector<16x1xf32> -> vector<16x1xf32>
    %109 = vector.broadcast %108 : vector<16x1xf32> to vector<16x16xf32>
    %110 = arith.mulf %105, %109 : vector<16x16xf32>
    %111 = arith.truncf %110 : vector<16x16xf32> to vector<16x16xbf16>
    %112 = vector.extract_strided_slice %75 {offsets = [0, 16], sizes = [16, 16], strides = [1, 1]} : vector<16x64xbf16> to vector<16x16xbf16>
    %cst_37 = arith.constant dense<0.000000e+00> : vector<16x16xf32>
    %113 = tpu.matmul %111, %112, %cst_37 {dimension_numbers = #tpu.dot_dimension_numbers<[1], [0], [0], [1], [0, 0, 1, 1], [], []>} : vector<16x16xbf16>, vector<16x16xbf16>, vector<16x16xf32> -> vector<16x16xf32>
    %114 = vector.extract_strided_slice %73 {offsets = [0, 32], sizes = [16, 16], strides = [1, 1]} : vector<16x64xbf16> to vector<16x16xbf16>
    %115 = vector.extract_strided_slice %74 {offsets = [0, 32], sizes = [16, 16], strides = [1, 1]} : vector<16x64xbf16> to vector<16x16xbf16>
    %cst_38 = arith.constant dense<0.000000e+00> : vector<16x16xf32>
    %116 = tpu.matmul %114, %115, %cst_38 {dimension_numbers = #tpu.dot_dimension_numbers<[1], [1], [0], [0], [0, 0, 1, 0], [], []>} : vector<16x16xbf16>, vector<16x16xbf16>, vector<16x16xf32> -> vector<16x16xf32>
    %cst_39 = arith.constant 2.500000e-01 : f32
    %117 = vector.broadcast %cst_39 : f32 to vector<16x16xf32>
    %118 = arith.mulf %116, %117 : vector<16x16xf32>
    %119 = arith.addf %118, %11 : vector<16x16xf32>
    %cst_40 = arith.constant dense<0xFF800000> : vector<16xf32>
    %120 = vector.multi_reduction <maximumf>, %119, %cst_40 [1] : vector<16x16xf32> to vector<16xf32>
    %121 = vector.shape_cast %120 : vector<16xf32> to vector<16x1xf32>
    %122 = vector.broadcast %121 : vector<16x1xf32> to vector<16x16xf32>
    %123 = arith.subf %119, %122 : vector<16x16xf32>
    %124 = math.exp %123 : vector<16x16xf32>
    %cst_41 = arith.constant dense<0.000000e+00> : vector<16xf32>
    %125 = vector.multi_reduction <add>, %124, %cst_41 [1] : vector<16x16xf32> to vector<16xf32>
    %126 = vector.shape_cast %125 : vector<16xf32> to vector<16x1xf32>
    %127 = tpu.reciprocal %126 {approx = true} : vector<16x1xf32> -> vector<16x1xf32>
    %128 = vector.broadcast %127 : vector<16x1xf32> to vector<16x16xf32>
    %129 = arith.mulf %124, %128 : vector<16x16xf32>
    %130 = arith.truncf %129 : vector<16x16xf32> to vector<16x16xbf16>
    %131 = vector.extract_strided_slice %75 {offsets = [0, 32], sizes = [16, 16], strides = [1, 1]} : vector<16x64xbf16> to vector<16x16xbf16>
    %cst_42 = arith.constant dense<0.000000e+00> : vector<16x16xf32>
    %132 = tpu.matmul %130, %131, %cst_42 {dimension_numbers = #tpu.dot_dimension_numbers<[1], [0], [0], [1], [0, 0, 1, 1], [], []>} : vector<16x16xbf16>, vector<16x16xbf16>, vector<16x16xf32> -> vector<16x16xf32>
    %133 = vector.extract_strided_slice %73 {offsets = [0, 48], sizes = [16, 16], strides = [1, 1]} : vector<16x64xbf16> to vector<16x16xbf16>
    %134 = vector.extract_strided_slice %74 {offsets = [0, 48], sizes = [16, 16], strides = [1, 1]} : vector<16x64xbf16> to vector<16x16xbf16>
    %cst_43 = arith.constant dense<0.000000e+00> : vector<16x16xf32>
    %135 = tpu.matmul %133, %134, %cst_43 {dimension_numbers = #tpu.dot_dimension_numbers<[1], [1], [0], [0], [0, 0, 1, 0], [], []>} : vector<16x16xbf16>, vector<16x16xbf16>, vector<16x16xf32> -> vector<16x16xf32>
    %cst_44 = arith.constant 2.500000e-01 : f32
    %136 = vector.broadcast %cst_44 : f32 to vector<16x16xf32>
    %137 = arith.mulf %135, %136 : vector<16x16xf32>
    %138 = arith.addf %137, %11 : vector<16x16xf32>
    %cst_45 = arith.constant dense<0xFF800000> : vector<16xf32>
    %139 = vector.multi_reduction <maximumf>, %138, %cst_45 [1] : vector<16x16xf32> to vector<16xf32>
    %140 = vector.shape_cast %139 : vector<16xf32> to vector<16x1xf32>
    %141 = vector.broadcast %140 : vector<16x1xf32> to vector<16x16xf32>
    %142 = arith.subf %138, %141 : vector<16x16xf32>
    %143 = math.exp %142 : vector<16x16xf32>
    %cst_46 = arith.constant dense<0.000000e+00> : vector<16xf32>
    %144 = vector.multi_reduction <add>, %143, %cst_46 [1] : vector<16x16xf32> to vector<16xf32>
    %145 = vector.shape_cast %144 : vector<16xf32> to vector<16x1xf32>
    %146 = tpu.reciprocal %145 {approx = true} : vector<16x1xf32> -> vector<16x1xf32>
    %147 = vector.broadcast %146 : vector<16x1xf32> to vector<16x16xf32>
    %148 = arith.mulf %143, %147 : vector<16x16xf32>
    %149 = arith.truncf %148 : vector<16x16xf32> to vector<16x16xbf16>
    %150 = vector.extract_strided_slice %75 {offsets = [0, 48], sizes = [16, 16], strides = [1, 1]} : vector<16x64xbf16> to vector<16x16xbf16>
    %cst_47 = arith.constant dense<0.000000e+00> : vector<16x16xf32>
    %151 = tpu.matmul %149, %150, %cst_47 {dimension_numbers = #tpu.dot_dimension_numbers<[1], [0], [0], [1], [0, 0, 1, 1], [], []>} : vector<16x16xbf16>, vector<16x16xbf16>, vector<16x16xf32> -> vector<16x16xf32>
    %152 = tpu.concatenate %94, %113, %132, %151 in 1 : vector<16x16xf32>, vector<16x16xf32>, vector<16x16xf32>, vector<16x16xf32> -> vector<16x64xf32>
    %153 = vector.extract_strided_slice %70 {offsets = [16, 0], sizes = [16, 64], strides = [1, 1]} : vector<32x64xbf16> to vector<16x64xbf16>
    %154 = vector.extract_strided_slice %71 {offsets = [16, 0], sizes = [16, 64], strides = [1, 1]} : vector<32x64xbf16> to vector<16x64xbf16>
    %155 = vector.extract_strided_slice %72 {offsets = [16, 0], sizes = [16, 64], strides = [1, 1]} : vector<32x64xbf16> to vector<16x64xbf16>
    %156 = vector.extract_strided_slice %153 {offsets = [0, 0], sizes = [16, 16], strides = [1, 1]} : vector<16x64xbf16> to vector<16x16xbf16>
    %157 = vector.extract_strided_slice %154 {offsets = [0, 0], sizes = [16, 16], strides = [1, 1]} : vector<16x64xbf16> to vector<16x16xbf16>
    %cst_48 = arith.constant dense<0.000000e+00> : vector<16x16xf32>
    %158 = tpu.matmul %156, %157, %cst_48 {dimension_numbers = #tpu.dot_dimension_numbers<[1], [1], [0], [0], [0, 0, 1, 0], [], []>} : vector<16x16xbf16>, vector<16x16xbf16>, vector<16x16xf32> -> vector<16x16xf32>
    %cst_49 = arith.constant 2.500000e-01 : f32
    %159 = vector.broadcast %cst_49 : f32 to vector<16x16xf32>
    %160 = arith.mulf %158, %159 : vector<16x16xf32>
    %161 = arith.addf %160, %15 : vector<16x16xf32>
    %cst_50 = arith.constant dense<0xFF800000> : vector<16xf32>
    %162 = vector.multi_reduction <maximumf>, %161, %cst_50 [1] : vector<16x16xf32> to vector<16xf32>
    %163 = vector.shape_cast %162 : vector<16xf32> to vector<16x1xf32>
    %164 = vector.broadcast %163 : vector<16x1xf32> to vector<16x16xf32>
    %165 = arith.subf %161, %164 : vector<16x16xf32>
    %166 = math.exp %165 : vector<16x16xf32>
    %cst_51 = arith.constant dense<0.000000e+00> : vector<16xf32>
    %167 = vector.multi_reduction <add>, %166, %cst_51 [1] : vector<16x16xf32> to vector<16xf32>
    %168 = vector.shape_cast %167 : vector<16xf32> to vector<16x1xf32>
    %169 = tpu.reciprocal %168 {approx = true} : vector<16x1xf32> -> vector<16x1xf32>
    %170 = vector.broadcast %169 : vector<16x1xf32> to vector<16x16xf32>
    %171 = arith.mulf %166, %170 : vector<16x16xf32>
    %172 = arith.truncf %171 : vector<16x16xf32> to vector<16x16xbf16>
    %173 = vector.extract_strided_slice %155 {offsets = [0, 0], sizes = [16, 16], strides = [1, 1]} : vector<16x64xbf16> to vector<16x16xbf16>
    %cst_52 = arith.constant dense<0.000000e+00> : vector<16x16xf32>
    %174 = tpu.matmul %172, %173, %cst_52 {dimension_numbers = #tpu.dot_dimension_numbers<[1], [0], [0], [1], [0, 0, 1, 1], [], []>} : vector<16x16xbf16>, vector<16x16xbf16>, vector<16x16xf32> -> vector<16x16xf32>
    %175 = vector.extract_strided_slice %153 {offsets = [0, 16], sizes = [16, 16], strides = [1, 1]} : vector<16x64xbf16> to vector<16x16xbf16>
    %176 = vector.extract_strided_slice %154 {offsets = [0, 16], sizes = [16, 16], strides = [1, 1]} : vector<16x64xbf16> to vector<16x16xbf16>
    %cst_53 = arith.constant dense<0.000000e+00> : vector<16x16xf32>
    %177 = tpu.matmul %175, %176, %cst_53 {dimension_numbers = #tpu.dot_dimension_numbers<[1], [1], [0], [0], [0, 0, 1, 0], [], []>} : vector<16x16xbf16>, vector<16x16xbf16>, vector<16x16xf32> -> vector<16x16xf32>
    %cst_54 = arith.constant 2.500000e-01 : f32
    %178 = vector.broadcast %cst_54 : f32 to vector<16x16xf32>
    %179 = arith.mulf %177, %178 : vector<16x16xf32>
    %180 = arith.addf %179, %15 : vector<16x16xf32>
    %cst_55 = arith.constant dense<0xFF800000> : vector<16xf32>
    %181 = vector.multi_reduction <maximumf>, %180, %cst_55 [1] : vector<16x16xf32> to vector<16xf32>
    %182 = vector.shape_cast %181 : vector<16xf32> to vector<16x1xf32>
    %183 = vector.broadcast %182 : vector<16x1xf32> to vector<16x16xf32>
    %184 = arith.subf %180, %183 : vector<16x16xf32>
    %185 = math.exp %184 : vector<16x16xf32>
    %cst_56 = arith.constant dense<0.000000e+00> : vector<16xf32>
    %186 = vector.multi_reduction <add>, %185, %cst_56 [1] : vector<16x16xf32> to vector<16xf32>
    %187 = vector.shape_cast %186 : vector<16xf32> to vector<16x1xf32>
    %188 = tpu.reciprocal %187 {approx = true} : vector<16x1xf32> -> vector<16x1xf32>
    %189 = vector.broadcast %188 : vector<16x1xf32> to vector<16x16xf32>
    %190 = arith.mulf %185, %189 : vector<16x16xf32>
    %191 = arith.truncf %190 : vector<16x16xf32> to vector<16x16xbf16>
    %192 = vector.extract_strided_slice %155 {offsets = [0, 16], sizes = [16, 16], strides = [1, 1]} : vector<16x64xbf16> to vector<16x16xbf16>
    %cst_57 = arith.constant dense<0.000000e+00> : vector<16x16xf32>
    %193 = tpu.matmul %191, %192, %cst_57 {dimension_numbers = #tpu.dot_dimension_numbers<[1], [0], [0], [1], [0, 0, 1, 1], [], []>} : vector<16x16xbf16>, vector<16x16xbf16>, vector<16x16xf32> -> vector<16x16xf32>
    %194 = vector.extract_strided_slice %153 {offsets = [0, 32], sizes = [16, 16], strides = [1, 1]} : vector<16x64xbf16> to vector<16x16xbf16>
    %195 = vector.extract_strided_slice %154 {offsets = [0, 32], sizes = [16, 16], strides = [1, 1]} : vector<16x64xbf16> to vector<16x16xbf16>
    %cst_58 = arith.constant dense<0.000000e+00> : vector<16x16xf32>
    %196 = tpu.matmul %194, %195, %cst_58 {dimension_numbers = #tpu.dot_dimension_numbers<[1], [1], [0], [0], [0, 0, 1, 0], [], []>} : vector<16x16xbf16>, vector<16x16xbf16>, vector<16x16xf32> -> vector<16x16xf32>
    %cst_59 = arith.constant 2.500000e-01 : f32
    %197 = vector.broadcast %cst_59 : f32 to vector<16x16xf32>
    %198 = arith.mulf %196, %197 : vector<16x16xf32>
    %199 = arith.addf %198, %15 : vector<16x16xf32>
    %cst_60 = arith.constant dense<0xFF800000> : vector<16xf32>
    %200 = vector.multi_reduction <maximumf>, %199, %cst_60 [1] : vector<16x16xf32> to vector<16xf32>
    %201 = vector.shape_cast %200 : vector<16xf32> to vector<16x1xf32>
    %202 = vector.broadcast %201 : vector<16x1xf32> to vector<16x16xf32>
    %203 = arith.subf %199, %202 : vector<16x16xf32>
    %204 = math.exp %203 : vector<16x16xf32>
    %cst_61 = arith.constant dense<0.000000e+00> : vector<16xf32>
    %205 = vector.multi_reduction <add>, %204, %cst_61 [1] : vector<16x16xf32> to vector<16xf32>
    %206 = vector.shape_cast %205 : vector<16xf32> to vector<16x1xf32>
    %207 = tpu.reciprocal %206 {approx = true} : vector<16x1xf32> -> vector<16x1xf32>
    %208 = vector.broadcast %207 : vector<16x1xf32> to vector<16x16xf32>
    %209 = arith.mulf %204, %208 : vector<16x16xf32>
    %210 = arith.truncf %209 : vector<16x16xf32> to vector<16x16xbf16>
    %211 = vector.extract_strided_slice %155 {offsets = [0, 32], sizes = [16, 16], strides = [1, 1]} : vector<16x64xbf16> to vector<16x16xbf16>
    %cst_62 = arith.constant dense<0.000000e+00> : vector<16x16xf32>
    %212 = tpu.matmul %210, %211, %cst_62 {dimension_numbers = #tpu.dot_dimension_numbers<[1], [0], [0], [1], [0, 0, 1, 1], [], []>} : vector<16x16xbf16>, vector<16x16xbf16>, vector<16x16xf32> -> vector<16x16xf32>
    %213 = vector.extract_strided_slice %153 {offsets = [0, 48], sizes = [16, 16], strides = [1, 1]} : vector<16x64xbf16> to vector<16x16xbf16>
    %214 = vector.extract_strided_slice %154 {offsets = [0, 48], sizes = [16, 16], strides = [1, 1]} : vector<16x64xbf16> to vector<16x16xbf16>
    %cst_63 = arith.constant dense<0.000000e+00> : vector<16x16xf32>
    %215 = tpu.matmul %213, %214, %cst_63 {dimension_numbers = #tpu.dot_dimension_numbers<[1], [1], [0], [0], [0, 0, 1, 0], [], []>} : vector<16x16xbf16>, vector<16x16xbf16>, vector<16x16xf32> -> vector<16x16xf32>
    %cst_64 = arith.constant 2.500000e-01 : f32
    %216 = vector.broadcast %cst_64 : f32 to vector<16x16xf32>
    %217 = arith.mulf %215, %216 : vector<16x16xf32>
    %218 = arith.addf %217, %15 : vector<16x16xf32>
    %cst_65 = arith.constant dense<0xFF800000> : vector<16xf32>
    %219 = vector.multi_reduction <maximumf>, %218, %cst_65 [1] : vector<16x16xf32> to vector<16xf32>
    %220 = vector.shape_cast %219 : vector<16xf32> to vector<16x1xf32>
    %221 = vector.broadcast %220 : vector<16x1xf32> to vector<16x16xf32>
    %222 = arith.subf %218, %221 : vector<16x16xf32>
    %223 = math.exp %222 : vector<16x16xf32>
    %cst_66 = arith.constant dense<0.000000e+00> : vector<16xf32>
    %224 = vector.multi_reduction <add>, %223, %cst_66 [1] : vector<16x16xf32> to vector<16xf32>
    %225 = vector.shape_cast %224 : vector<16xf32> to vector<16x1xf32>
    %226 = tpu.reciprocal %225 {approx = true} : vector<16x1xf32> -> vector<16x1xf32>
    %227 = vector.broadcast %226 : vector<16x1xf32> to vector<16x16xf32>
    %228 = arith.mulf %223, %227 : vector<16x16xf32>
    %229 = arith.truncf %228 : vector<16x16xf32> to vector<16x16xbf16>
    %230 = vector.extract_strided_slice %155 {offsets = [0, 48], sizes = [16, 16], strides = [1, 1]} : vector<16x64xbf16> to vector<16x16xbf16>
    %cst_67 = arith.constant dense<0.000000e+00> : vector<16x16xf32>
    %231 = tpu.matmul %229, %230, %cst_67 {dimension_numbers = #tpu.dot_dimension_numbers<[1], [0], [0], [1], [0, 0, 1, 1], [], []>} : vector<16x16xbf16>, vector<16x16xbf16>, vector<16x16xf32> -> vector<16x16xf32>
    %232 = tpu.concatenate %174, %193, %212, %231 in 1 : vector<16x16xf32>, vector<16x16xf32>, vector<16x16xf32>, vector<16x16xf32> -> vector<16x64xf32>
    %233 = tpu.concatenate %152, %232 in 0 : vector<16x64xf32>, vector<16x64xf32> -> vector<32x64xf32>
    %234 = arith.truncf %233 : vector<32x64xf32> to vector<32x64xbf16>
    %cst_68 = arith.constant dense<0.000000e+00> : vector<32x64xf32>
    %235 = tpu.matmul %234, %24, %cst_68 {dimension_numbers = #tpu.dot_dimension_numbers<[1], [0], [0], [1], [0, 0, 1, 1], [], []>} : vector<32x64xbf16>, vector<64x64xbf16>, vector<32x64xf32> -> vector<32x64xf32>
    %236 = vector.broadcast %42 : vector<1x64xf32> to vector<32x64xf32>
    %237 = arith.addf %235, %236 : vector<32x64xf32>
    %238 = arith.addf %1, %237 : vector<32x64xf32>
    %cst_69 = arith.constant dense<0.000000e+00> : vector<32xf32>
    %239 = vector.multi_reduction <add>, %238, %cst_69 [1] : vector<32x64xf32> to vector<32xf32>
    %240 = vector.shape_cast %239 : vector<32xf32> to vector<32x1xf32>
    %cst_70 = arith.constant 6.400000e+01 : f32
    %241 = vector.broadcast %cst_70 : f32 to vector<32x1xf32>
    %242 = arith.divf %240, %241 : vector<32x1xf32>
    %243 = vector.broadcast %242 : vector<32x1xf32> to vector<32x64xf32>
    %244 = arith.subf %238, %243 : vector<32x64xf32>
    %245 = arith.mulf %244, %244 : vector<32x64xf32>
    %cst_71 = arith.constant dense<0.000000e+00> : vector<32xf32>
    %246 = vector.multi_reduction <add>, %245, %cst_71 [1] : vector<32x64xf32> to vector<32xf32>
    %247 = vector.shape_cast %246 : vector<32xf32> to vector<32x1xf32>
    %cst_72 = arith.constant 6.400000e+01 : f32
    %248 = vector.broadcast %cst_72 : f32 to vector<32x1xf32>
    %249 = arith.divf %247, %248 : vector<32x1xf32>
    %250 = vector.broadcast %242 : vector<32x1xf32> to vector<32x64xf32>
    %251 = arith.subf %238, %250 : vector<32x64xf32>
    %cst_73 = arith.constant 9.99999974E-6 : f32
    %252 = vector.broadcast %cst_73 : f32 to vector<32x1xf32>
    %253 = arith.addf %249, %252 : vector<32x1xf32>
    %254 = math.rsqrt %253 : vector<32x1xf32>
    %255 = vector.broadcast %254 : vector<32x1xf32> to vector<32x64xf32>
    %256 = arith.mulf %251, %255 : vector<32x64xf32>
    %257 = vector.broadcast %39 : vector<1x64xf32> to vector<32x64xf32>
    %258 = arith.mulf %256, %257 : vector<32x64xf32>
    %259 = vector.broadcast %40 : vector<1x64xf32> to vector<32x64xf32>
    %260 = arith.addf %258, %259 : vector<32x64xf32>
    %261 = arith.truncf %260 : vector<32x64xf32> to vector<32x64xbf16>
    %cst_74 = arith.constant dense<0.000000e+00> : vector<32x256xf32>
    %262 = tpu.matmul %261, %30, %cst_74 {dimension_numbers = #tpu.dot_dimension_numbers<[1], [0], [0], [1], [0, 0, 1, 1], [], []>} : vector<32x64xbf16>, vector<64x256xbf16>, vector<32x256xf32> -> vector<32x256xf32>
    %263 = vector.broadcast %33 : vector<1x256xf32> to vector<32x256xf32>
    %264 = arith.addf %262, %263 : vector<32x256xf32>
    %265 = arith.mulf %264, %264 : vector<32x256xf32>
    %266 = arith.mulf %264, %265 : vector<32x256xf32>
    %cst_75 = arith.constant 4.471500e-02 : f32
    %267 = vector.broadcast %cst_75 : f32 to vector<32x256xf32>
    %268 = arith.mulf %267, %266 : vector<32x256xf32>
    %269 = arith.addf %264, %268 : vector<32x256xf32>
    %cst_76 = arith.constant 0.797884583 : f32
    %270 = vector.broadcast %cst_76 : f32 to vector<32x256xf32>
    %271 = arith.mulf %270, %269 : vector<32x256xf32>
    %272 = math.tanh %271 : vector<32x256xf32>
    %cst_77 = arith.constant 1.000000e+00 : f32
    %273 = vector.broadcast %cst_77 : f32 to vector<32x256xf32>
    %274 = arith.addf %273, %272 : vector<32x256xf32>
    %cst_78 = arith.constant 5.000000e-01 : f32
    %275 = vector.broadcast %cst_78 : f32 to vector<32x256xf32>
    %276 = arith.mulf %275, %274 : vector<32x256xf32>
    %277 = arith.mulf %264, %276 : vector<32x256xf32>
    %278 = arith.truncf %277 : vector<32x256xf32> to vector<32x256xbf16>
    %cst_79 = arith.constant dense<0.000000e+00> : vector<32x64xf32>
    %279 = tpu.matmul %278, %36, %cst_79 {dimension_numbers = #tpu.dot_dimension_numbers<[1], [1], [0], [0], [0, 0, 1, 0], [], []>} : vector<32x256xbf16>, vector<64x256xbf16>, vector<32x64xf32> -> vector<32x64xf32>
    %280 = vector.broadcast %41 : vector<1x64xf32> to vector<32x64xf32>
    %281 = arith.addf %279, %280 : vector<32x64xf32>
    %282 = arith.addf %238, %281 : vector<32x64xf32>
    %c1_i32 = arith.constant 1 : i32
    %283 = arith.index_cast %c1_i32 : i32 to index
    %c0_80 = arith.constant 0 : index
    %c0_81 = arith.constant 0 : index
    %284 = vector.load %arg3[%283, %c0_80, %c0_81] : memref<2x64x192xbf16, #tpu.memory_space<vmem>>, vector<1x64x192xbf16>
    %285 = vector.shape_cast %284 : vector<1x64x192xbf16> to vector<64x192xbf16>
    %286 = arith.index_cast %c1_i32 : i32 to index
    %c0_82 = arith.constant 0 : index
    %c0_83 = arith.constant 0 : index
    %287 = vector.load %arg4[%286, %c0_82, %c0_83] : memref<2x1x192xf32, #tpu.memory_space<vmem>>, vector<1x1x192xf32>
    %288 = vector.shape_cast %287 : vector<1x1x192xf32> to vector<1x192xf32>
    %289 = arith.index_cast %c1_i32 : i32 to index
    %c0_84 = arith.constant 0 : index
    %c0_85 = arith.constant 0 : index
    %290 = vector.load %arg5[%289, %c0_84, %c0_85] : memref<2x64x64xbf16, #tpu.memory_space<vmem>>, vector<1x64x64xbf16>
    %291 = vector.shape_cast %290 : vector<1x64x64xbf16> to vector<64x64xbf16>
    %292 = arith.index_cast %c1_i32 : i32 to index
    %c0_86 = arith.constant 0 : index
    %c0_87 = arith.constant 0 : index
    %293 = vector.load %arg6[%292, %c0_86, %c0_87] : memref<2x8x64xf32, #tpu.memory_space<vmem>>, vector<1x8x64xf32>
    %294 = vector.shape_cast %293 : vector<1x8x64xf32> to vector<8x64xf32>
    %295 = arith.index_cast %c1_i32 : i32 to index
    %c0_88 = arith.constant 0 : index
    %c0_89 = arith.constant 0 : index
    %296 = vector.load %arg7[%295, %c0_88, %c0_89] : memref<2x64x256xbf16, #tpu.memory_space<vmem>>, vector<1x64x256xbf16>
    %297 = vector.shape_cast %296 : vector<1x64x256xbf16> to vector<64x256xbf16>
    %298 = arith.index_cast %c1_i32 : i32 to index
    %c0_90 = arith.constant 0 : index
    %c0_91 = arith.constant 0 : index
    %299 = vector.load %arg8[%298, %c0_90, %c0_91] : memref<2x1x256xf32, #tpu.memory_space<vmem>>, vector<1x1x256xf32>
    %300 = vector.shape_cast %299 : vector<1x1x256xf32> to vector<1x256xf32>
    %301 = arith.index_cast %c1_i32 : i32 to index
    %c0_92 = arith.constant 0 : index
    %c0_93 = arith.constant 0 : index
    %302 = vector.load %arg9[%301, %c0_92, %c0_93] : memref<2x64x256xbf16, #tpu.memory_space<vmem>>, vector<1x64x256xbf16>
    %303 = vector.shape_cast %302 : vector<1x64x256xbf16> to vector<64x256xbf16>
    %304 = vector.extract_strided_slice %294 {offsets = [0, 0], sizes = [1, 64], strides = [1, 1]} : vector<8x64xf32> to vector<1x64xf32>
    %305 = vector.extract_strided_slice %294 {offsets = [1, 0], sizes = [1, 64], strides = [1, 1]} : vector<8x64xf32> to vector<1x64xf32>
    %306 = vector.extract_strided_slice %294 {offsets = [2, 0], sizes = [1, 64], strides = [1, 1]} : vector<8x64xf32> to vector<1x64xf32>
    %307 = vector.extract_strided_slice %294 {offsets = [3, 0], sizes = [1, 64], strides = [1, 1]} : vector<8x64xf32> to vector<1x64xf32>
    %308 = vector.extract_strided_slice %294 {offsets = [4, 0], sizes = [1, 64], strides = [1, 1]} : vector<8x64xf32> to vector<1x64xf32>
    %309 = vector.extract_strided_slice %294 {offsets = [5, 0], sizes = [1, 64], strides = [1, 1]} : vector<8x64xf32> to vector<1x64xf32>
    %cst_94 = arith.constant dense<0.000000e+00> : vector<32xf32>
    %310 = vector.multi_reduction <add>, %282, %cst_94 [1] : vector<32x64xf32> to vector<32xf32>
    %311 = vector.shape_cast %310 : vector<32xf32> to vector<32x1xf32>
    %cst_95 = arith.constant 6.400000e+01 : f32
    %312 = vector.broadcast %cst_95 : f32 to vector<32x1xf32>
    %313 = arith.divf %311, %312 : vector<32x1xf32>
    %314 = vector.broadcast %313 : vector<32x1xf32> to vector<32x64xf32>
    %315 = arith.subf %282, %314 : vector<32x64xf32>
    %316 = arith.mulf %315, %315 : vector<32x64xf32>
    %cst_96 = arith.constant dense<0.000000e+00> : vector<32xf32>
    %317 = vector.multi_reduction <add>, %316, %cst_96 [1] : vector<32x64xf32> to vector<32xf32>
    %318 = vector.shape_cast %317 : vector<32xf32> to vector<32x1xf32>
    %cst_97 = arith.constant 6.400000e+01 : f32
    %319 = vector.broadcast %cst_97 : f32 to vector<32x1xf32>
    %320 = arith.divf %318, %319 : vector<32x1xf32>
    %321 = vector.broadcast %313 : vector<32x1xf32> to vector<32x64xf32>
    %322 = arith.subf %282, %321 : vector<32x64xf32>
    %cst_98 = arith.constant 9.99999974E-6 : f32
    %323 = vector.broadcast %cst_98 : f32 to vector<32x1xf32>
    %324 = arith.addf %320, %323 : vector<32x1xf32>
    %325 = math.rsqrt %324 : vector<32x1xf32>
    %326 = vector.broadcast %325 : vector<32x1xf32> to vector<32x64xf32>
    %327 = arith.mulf %322, %326 : vector<32x64xf32>
    %328 = vector.broadcast %304 : vector<1x64xf32> to vector<32x64xf32>
    %329 = arith.mulf %327, %328 : vector<32x64xf32>
    %330 = vector.broadcast %305 : vector<1x64xf32> to vector<32x64xf32>
    %331 = arith.addf %329, %330 : vector<32x64xf32>
    %332 = arith.truncf %331 : vector<32x64xf32> to vector<32x64xbf16>
    %cst_99 = arith.constant dense<0.000000e+00> : vector<32x192xf32>
    %333 = tpu.matmul %332, %285, %cst_99 {dimension_numbers = #tpu.dot_dimension_numbers<[1], [0], [0], [1], [0, 0, 1, 1], [], []>} : vector<32x64xbf16>, vector<64x192xbf16>, vector<32x192xf32> -> vector<32x192xf32>
    %334 = vector.broadcast %288 : vector<1x192xf32> to vector<32x192xf32>
    %335 = arith.addf %333, %334 : vector<32x192xf32>
    %336 = arith.truncf %335 : vector<32x192xf32> to vector<32x192xbf16>
    %337 = vector.extract_strided_slice %336 {offsets = [0, 0], sizes = [32, 64], strides = [1, 1]} : vector<32x192xbf16> to vector<32x64xbf16>
    %338 = vector.extract_strided_slice %336 {offsets = [0, 64], sizes = [32, 64], strides = [1, 1]} : vector<32x192xbf16> to vector<32x64xbf16>
    %339 = vector.extract_strided_slice %336 {offsets = [0, 128], sizes = [32, 64], strides = [1, 1]} : vector<32x192xbf16> to vector<32x64xbf16>
    %340 = vector.extract_strided_slice %337 {offsets = [0, 0], sizes = [16, 64], strides = [1, 1]} : vector<32x64xbf16> to vector<16x64xbf16>
    %341 = vector.extract_strided_slice %338 {offsets = [0, 0], sizes = [16, 64], strides = [1, 1]} : vector<32x64xbf16> to vector<16x64xbf16>
    %342 = vector.extract_strided_slice %339 {offsets = [0, 0], sizes = [16, 64], strides = [1, 1]} : vector<32x64xbf16> to vector<16x64xbf16>
    %343 = vector.extract_strided_slice %340 {offsets = [0, 0], sizes = [16, 16], strides = [1, 1]} : vector<16x64xbf16> to vector<16x16xbf16>
    %344 = vector.extract_strided_slice %341 {offsets = [0, 0], sizes = [16, 16], strides = [1, 1]} : vector<16x64xbf16> to vector<16x16xbf16>
    %cst_100 = arith.constant dense<0.000000e+00> : vector<16x16xf32>
    %345 = tpu.matmul %343, %344, %cst_100 {dimension_numbers = #tpu.dot_dimension_numbers<[1], [1], [0], [0], [0, 0, 1, 0], [], []>} : vector<16x16xbf16>, vector<16x16xbf16>, vector<16x16xf32> -> vector<16x16xf32>
    %cst_101 = arith.constant 2.500000e-01 : f32
    %346 = vector.broadcast %cst_101 : f32 to vector<16x16xf32>
    %347 = arith.mulf %345, %346 : vector<16x16xf32>
    %348 = arith.addf %347, %11 : vector<16x16xf32>
    %cst_102 = arith.constant dense<0xFF800000> : vector<16xf32>
    %349 = vector.multi_reduction <maximumf>, %348, %cst_102 [1] : vector<16x16xf32> to vector<16xf32>
    %350 = vector.shape_cast %349 : vector<16xf32> to vector<16x1xf32>
    %351 = vector.broadcast %350 : vector<16x1xf32> to vector<16x16xf32>
    %352 = arith.subf %348, %351 : vector<16x16xf32>
    %353 = math.exp %352 : vector<16x16xf32>
    %cst_103 = arith.constant dense<0.000000e+00> : vector<16xf32>
    %354 = vector.multi_reduction <add>, %353, %cst_103 [1] : vector<16x16xf32> to vector<16xf32>
    %355 = vector.shape_cast %354 : vector<16xf32> to vector<16x1xf32>
    %356 = tpu.reciprocal %355 {approx = true} : vector<16x1xf32> -> vector<16x1xf32>
    %357 = vector.broadcast %356 : vector<16x1xf32> to vector<16x16xf32>
    %358 = arith.mulf %353, %357 : vector<16x16xf32>
    %359 = arith.truncf %358 : vector<16x16xf32> to vector<16x16xbf16>
    %360 = vector.extract_strided_slice %342 {offsets = [0, 0], sizes = [16, 16], strides = [1, 1]} : vector<16x64xbf16> to vector<16x16xbf16>
    %cst_104 = arith.constant dense<0.000000e+00> : vector<16x16xf32>
    %361 = tpu.matmul %359, %360, %cst_104 {dimension_numbers = #tpu.dot_dimension_numbers<[1], [0], [0], [1], [0, 0, 1, 1], [], []>} : vector<16x16xbf16>, vector<16x16xbf16>, vector<16x16xf32> -> vector<16x16xf32>
    %362 = vector.extract_strided_slice %340 {offsets = [0, 16], sizes = [16, 16], strides = [1, 1]} : vector<16x64xbf16> to vector<16x16xbf16>
    %363 = vector.extract_strided_slice %341 {offsets = [0, 16], sizes = [16, 16], strides = [1, 1]} : vector<16x64xbf16> to vector<16x16xbf16>
    %cst_105 = arith.constant dense<0.000000e+00> : vector<16x16xf32>
    %364 = tpu.matmul %362, %363, %cst_105 {dimension_numbers = #tpu.dot_dimension_numbers<[1], [1], [0], [0], [0, 0, 1, 0], [], []>} : vector<16x16xbf16>, vector<16x16xbf16>, vector<16x16xf32> -> vector<16x16xf32>
    %cst_106 = arith.constant 2.500000e-01 : f32
    %365 = vector.broadcast %cst_106 : f32 to vector<16x16xf32>
    %366 = arith.mulf %364, %365 : vector<16x16xf32>
    %367 = arith.addf %366, %11 : vector<16x16xf32>
    %cst_107 = arith.constant dense<0xFF800000> : vector<16xf32>
    %368 = vector.multi_reduction <maximumf>, %367, %cst_107 [1] : vector<16x16xf32> to vector<16xf32>
    %369 = vector.shape_cast %368 : vector<16xf32> to vector<16x1xf32>
    %370 = vector.broadcast %369 : vector<16x1xf32> to vector<16x16xf32>
    %371 = arith.subf %367, %370 : vector<16x16xf32>
    %372 = math.exp %371 : vector<16x16xf32>
    %cst_108 = arith.constant dense<0.000000e+00> : vector<16xf32>
    %373 = vector.multi_reduction <add>, %372, %cst_108 [1] : vector<16x16xf32> to vector<16xf32>
    %374 = vector.shape_cast %373 : vector<16xf32> to vector<16x1xf32>
    %375 = tpu.reciprocal %374 {approx = true} : vector<16x1xf32> -> vector<16x1xf32>
    %376 = vector.broadcast %375 : vector<16x1xf32> to vector<16x16xf32>
    %377 = arith.mulf %372, %376 : vector<16x16xf32>
    %378 = arith.truncf %377 : vector<16x16xf32> to vector<16x16xbf16>
    %379 = vector.extract_strided_slice %342 {offsets = [0, 16], sizes = [16, 16], strides = [1, 1]} : vector<16x64xbf16> to vector<16x16xbf16>
    %cst_109 = arith.constant dense<0.000000e+00> : vector<16x16xf32>
    %380 = tpu.matmul %378, %379, %cst_109 {dimension_numbers = #tpu.dot_dimension_numbers<[1], [0], [0], [1], [0, 0, 1, 1], [], []>} : vector<16x16xbf16>, vector<16x16xbf16>, vector<16x16xf32> -> vector<16x16xf32>
    %381 = vector.extract_strided_slice %340 {offsets = [0, 32], sizes = [16, 16], strides = [1, 1]} : vector<16x64xbf16> to vector<16x16xbf16>
    %382 = vector.extract_strided_slice %341 {offsets = [0, 32], sizes = [16, 16], strides = [1, 1]} : vector<16x64xbf16> to vector<16x16xbf16>
    %cst_110 = arith.constant dense<0.000000e+00> : vector<16x16xf32>
    %383 = tpu.matmul %381, %382, %cst_110 {dimension_numbers = #tpu.dot_dimension_numbers<[1], [1], [0], [0], [0, 0, 1, 0], [], []>} : vector<16x16xbf16>, vector<16x16xbf16>, vector<16x16xf32> -> vector<16x16xf32>
    %cst_111 = arith.constant 2.500000e-01 : f32
    %384 = vector.broadcast %cst_111 : f32 to vector<16x16xf32>
    %385 = arith.mulf %383, %384 : vector<16x16xf32>
    %386 = arith.addf %385, %11 : vector<16x16xf32>
    %cst_112 = arith.constant dense<0xFF800000> : vector<16xf32>
    %387 = vector.multi_reduction <maximumf>, %386, %cst_112 [1] : vector<16x16xf32> to vector<16xf32>
    %388 = vector.shape_cast %387 : vector<16xf32> to vector<16x1xf32>
    %389 = vector.broadcast %388 : vector<16x1xf32> to vector<16x16xf32>
    %390 = arith.subf %386, %389 : vector<16x16xf32>
    %391 = math.exp %390 : vector<16x16xf32>
    %cst_113 = arith.constant dense<0.000000e+00> : vector<16xf32>
    %392 = vector.multi_reduction <add>, %391, %cst_113 [1] : vector<16x16xf32> to vector<16xf32>
    %393 = vector.shape_cast %392 : vector<16xf32> to vector<16x1xf32>
    %394 = tpu.reciprocal %393 {approx = true} : vector<16x1xf32> -> vector<16x1xf32>
    %395 = vector.broadcast %394 : vector<16x1xf32> to vector<16x16xf32>
    %396 = arith.mulf %391, %395 : vector<16x16xf32>
    %397 = arith.truncf %396 : vector<16x16xf32> to vector<16x16xbf16>
    %398 = vector.extract_strided_slice %342 {offsets = [0, 32], sizes = [16, 16], strides = [1, 1]} : vector<16x64xbf16> to vector<16x16xbf16>
    %cst_114 = arith.constant dense<0.000000e+00> : vector<16x16xf32>
    %399 = tpu.matmul %397, %398, %cst_114 {dimension_numbers = #tpu.dot_dimension_numbers<[1], [0], [0], [1], [0, 0, 1, 1], [], []>} : vector<16x16xbf16>, vector<16x16xbf16>, vector<16x16xf32> -> vector<16x16xf32>
    %400 = vector.extract_strided_slice %340 {offsets = [0, 48], sizes = [16, 16], strides = [1, 1]} : vector<16x64xbf16> to vector<16x16xbf16>
    %401 = vector.extract_strided_slice %341 {offsets = [0, 48], sizes = [16, 16], strides = [1, 1]} : vector<16x64xbf16> to vector<16x16xbf16>
    %cst_115 = arith.constant dense<0.000000e+00> : vector<16x16xf32>
    %402 = tpu.matmul %400, %401, %cst_115 {dimension_numbers = #tpu.dot_dimension_numbers<[1], [1], [0], [0], [0, 0, 1, 0], [], []>} : vector<16x16xbf16>, vector<16x16xbf16>, vector<16x16xf32> -> vector<16x16xf32>
    %cst_116 = arith.constant 2.500000e-01 : f32
    %403 = vector.broadcast %cst_116 : f32 to vector<16x16xf32>
    %404 = arith.mulf %402, %403 : vector<16x16xf32>
    %405 = arith.addf %404, %11 : vector<16x16xf32>
    %cst_117 = arith.constant dense<0xFF800000> : vector<16xf32>
    %406 = vector.multi_reduction <maximumf>, %405, %cst_117 [1] : vector<16x16xf32> to vector<16xf32>
    %407 = vector.shape_cast %406 : vector<16xf32> to vector<16x1xf32>
    %408 = vector.broadcast %407 : vector<16x1xf32> to vector<16x16xf32>
    %409 = arith.subf %405, %408 : vector<16x16xf32>
    %410 = math.exp %409 : vector<16x16xf32>
    %cst_118 = arith.constant dense<0.000000e+00> : vector<16xf32>
    %411 = vector.multi_reduction <add>, %410, %cst_118 [1] : vector<16x16xf32> to vector<16xf32>
    %412 = vector.shape_cast %411 : vector<16xf32> to vector<16x1xf32>
    %413 = tpu.reciprocal %412 {approx = true} : vector<16x1xf32> -> vector<16x1xf32>
    %414 = vector.broadcast %413 : vector<16x1xf32> to vector<16x16xf32>
    %415 = arith.mulf %410, %414 : vector<16x16xf32>
    %416 = arith.truncf %415 : vector<16x16xf32> to vector<16x16xbf16>
    %417 = vector.extract_strided_slice %342 {offsets = [0, 48], sizes = [16, 16], strides = [1, 1]} : vector<16x64xbf16> to vector<16x16xbf16>
    %cst_119 = arith.constant dense<0.000000e+00> : vector<16x16xf32>
    %418 = tpu.matmul %416, %417, %cst_119 {dimension_numbers = #tpu.dot_dimension_numbers<[1], [0], [0], [1], [0, 0, 1, 1], [], []>} : vector<16x16xbf16>, vector<16x16xbf16>, vector<16x16xf32> -> vector<16x16xf32>
    %419 = tpu.concatenate %361, %380, %399, %418 in 1 : vector<16x16xf32>, vector<16x16xf32>, vector<16x16xf32>, vector<16x16xf32> -> vector<16x64xf32>
    %420 = vector.extract_strided_slice %337 {offsets = [16, 0], sizes = [16, 64], strides = [1, 1]} : vector<32x64xbf16> to vector<16x64xbf16>
    %421 = vector.extract_strided_slice %338 {offsets = [16, 0], sizes = [16, 64], strides = [1, 1]} : vector<32x64xbf16> to vector<16x64xbf16>
    %422 = vector.extract_strided_slice %339 {offsets = [16, 0], sizes = [16, 64], strides = [1, 1]} : vector<32x64xbf16> to vector<16x64xbf16>
    %423 = vector.extract_strided_slice %420 {offsets = [0, 0], sizes = [16, 16], strides = [1, 1]} : vector<16x64xbf16> to vector<16x16xbf16>
    %424 = vector.extract_strided_slice %421 {offsets = [0, 0], sizes = [16, 16], strides = [1, 1]} : vector<16x64xbf16> to vector<16x16xbf16>
    %cst_120 = arith.constant dense<0.000000e+00> : vector<16x16xf32>
    %425 = tpu.matmul %423, %424, %cst_120 {dimension_numbers = #tpu.dot_dimension_numbers<[1], [1], [0], [0], [0, 0, 1, 0], [], []>} : vector<16x16xbf16>, vector<16x16xbf16>, vector<16x16xf32> -> vector<16x16xf32>
    %cst_121 = arith.constant 2.500000e-01 : f32
    %426 = vector.broadcast %cst_121 : f32 to vector<16x16xf32>
    %427 = arith.mulf %425, %426 : vector<16x16xf32>
    %428 = arith.addf %427, %15 : vector<16x16xf32>
    %cst_122 = arith.constant dense<0xFF800000> : vector<16xf32>
    %429 = vector.multi_reduction <maximumf>, %428, %cst_122 [1] : vector<16x16xf32> to vector<16xf32>
    %430 = vector.shape_cast %429 : vector<16xf32> to vector<16x1xf32>
    %431 = vector.broadcast %430 : vector<16x1xf32> to vector<16x16xf32>
    %432 = arith.subf %428, %431 : vector<16x16xf32>
    %433 = math.exp %432 : vector<16x16xf32>
    %cst_123 = arith.constant dense<0.000000e+00> : vector<16xf32>
    %434 = vector.multi_reduction <add>, %433, %cst_123 [1] : vector<16x16xf32> to vector<16xf32>
    %435 = vector.shape_cast %434 : vector<16xf32> to vector<16x1xf32>
    %436 = tpu.reciprocal %435 {approx = true} : vector<16x1xf32> -> vector<16x1xf32>
    %437 = vector.broadcast %436 : vector<16x1xf32> to vector<16x16xf32>
    %438 = arith.mulf %433, %437 : vector<16x16xf32>
    %439 = arith.truncf %438 : vector<16x16xf32> to vector<16x16xbf16>
    %440 = vector.extract_strided_slice %422 {offsets = [0, 0], sizes = [16, 16], strides = [1, 1]} : vector<16x64xbf16> to vector<16x16xbf16>
    %cst_124 = arith.constant dense<0.000000e+00> : vector<16x16xf32>
    %441 = tpu.matmul %439, %440, %cst_124 {dimension_numbers = #tpu.dot_dimension_numbers<[1], [0], [0], [1], [0, 0, 1, 1], [], []>} : vector<16x16xbf16>, vector<16x16xbf16>, vector<16x16xf32> -> vector<16x16xf32>
    %442 = vector.extract_strided_slice %420 {offsets = [0, 16], sizes = [16, 16], strides = [1, 1]} : vector<16x64xbf16> to vector<16x16xbf16>
    %443 = vector.extract_strided_slice %421 {offsets = [0, 16], sizes = [16, 16], strides = [1, 1]} : vector<16x64xbf16> to vector<16x16xbf16>
    %cst_125 = arith.constant dense<0.000000e+00> : vector<16x16xf32>
    %444 = tpu.matmul %442, %443, %cst_125 {dimension_numbers = #tpu.dot_dimension_numbers<[1], [1], [0], [0], [0, 0, 1, 0], [], []>} : vector<16x16xbf16>, vector<16x16xbf16>, vector<16x16xf32> -> vector<16x16xf32>
    %cst_126 = arith.constant 2.500000e-01 : f32
    %445 = vector.broadcast %cst_126 : f32 to vector<16x16xf32>
    %446 = arith.mulf %444, %445 : vector<16x16xf32>
    %447 = arith.addf %446, %15 : vector<16x16xf32>
    %cst_127 = arith.constant dense<0xFF800000> : vector<16xf32>
    %448 = vector.multi_reduction <maximumf>, %447, %cst_127 [1] : vector<16x16xf32> to vector<16xf32>
    %449 = vector.shape_cast %448 : vector<16xf32> to vector<16x1xf32>
    %450 = vector.broadcast %449 : vector<16x1xf32> to vector<16x16xf32>
    %451 = arith.subf %447, %450 : vector<16x16xf32>
    %452 = math.exp %451 : vector<16x16xf32>
    %cst_128 = arith.constant dense<0.000000e+00> : vector<16xf32>
    %453 = vector.multi_reduction <add>, %452, %cst_128 [1] : vector<16x16xf32> to vector<16xf32>
    %454 = vector.shape_cast %453 : vector<16xf32> to vector<16x1xf32>
    %455 = tpu.reciprocal %454 {approx = true} : vector<16x1xf32> -> vector<16x1xf32>
    %456 = vector.broadcast %455 : vector<16x1xf32> to vector<16x16xf32>
    %457 = arith.mulf %452, %456 : vector<16x16xf32>
    %458 = arith.truncf %457 : vector<16x16xf32> to vector<16x16xbf16>
    %459 = vector.extract_strided_slice %422 {offsets = [0, 16], sizes = [16, 16], strides = [1, 1]} : vector<16x64xbf16> to vector<16x16xbf16>
    %cst_129 = arith.constant dense<0.000000e+00> : vector<16x16xf32>
    %460 = tpu.matmul %458, %459, %cst_129 {dimension_numbers = #tpu.dot_dimension_numbers<[1], [0], [0], [1], [0, 0, 1, 1], [], []>} : vector<16x16xbf16>, vector<16x16xbf16>, vector<16x16xf32> -> vector<16x16xf32>
    %461 = vector.extract_strided_slice %420 {offsets = [0, 32], sizes = [16, 16], strides = [1, 1]} : vector<16x64xbf16> to vector<16x16xbf16>
    %462 = vector.extract_strided_slice %421 {offsets = [0, 32], sizes = [16, 16], strides = [1, 1]} : vector<16x64xbf16> to vector<16x16xbf16>
    %cst_130 = arith.constant dense<0.000000e+00> : vector<16x16xf32>
    %463 = tpu.matmul %461, %462, %cst_130 {dimension_numbers = #tpu.dot_dimension_numbers<[1], [1], [0], [0], [0, 0, 1, 0], [], []>} : vector<16x16xbf16>, vector<16x16xbf16>, vector<16x16xf32> -> vector<16x16xf32>
    %cst_131 = arith.constant 2.500000e-01 : f32
    %464 = vector.broadcast %cst_131 : f32 to vector<16x16xf32>
    %465 = arith.mulf %463, %464 : vector<16x16xf32>
    %466 = arith.addf %465, %15 : vector<16x16xf32>
    %cst_132 = arith.constant dense<0xFF800000> : vector<16xf32>
    %467 = vector.multi_reduction <maximumf>, %466, %cst_132 [1] : vector<16x16xf32> to vector<16xf32>
    %468 = vector.shape_cast %467 : vector<16xf32> to vector<16x1xf32>
    %469 = vector.broadcast %468 : vector<16x1xf32> to vector<16x16xf32>
    %470 = arith.subf %466, %469 : vector<16x16xf32>
    %471 = math.exp %470 : vector<16x16xf32>
    %cst_133 = arith.constant dense<0.000000e+00> : vector<16xf32>
    %472 = vector.multi_reduction <add>, %471, %cst_133 [1] : vector<16x16xf32> to vector<16xf32>
    %473 = vector.shape_cast %472 : vector<16xf32> to vector<16x1xf32>
    %474 = tpu.reciprocal %473 {approx = true} : vector<16x1xf32> -> vector<16x1xf32>
    %475 = vector.broadcast %474 : vector<16x1xf32> to vector<16x16xf32>
    %476 = arith.mulf %471, %475 : vector<16x16xf32>
    %477 = arith.truncf %476 : vector<16x16xf32> to vector<16x16xbf16>
    %478 = vector.extract_strided_slice %422 {offsets = [0, 32], sizes = [16, 16], strides = [1, 1]} : vector<16x64xbf16> to vector<16x16xbf16>
    %cst_134 = arith.constant dense<0.000000e+00> : vector<16x16xf32>
    %479 = tpu.matmul %477, %478, %cst_134 {dimension_numbers = #tpu.dot_dimension_numbers<[1], [0], [0], [1], [0, 0, 1, 1], [], []>} : vector<16x16xbf16>, vector<16x16xbf16>, vector<16x16xf32> -> vector<16x16xf32>
    %480 = vector.extract_strided_slice %420 {offsets = [0, 48], sizes = [16, 16], strides = [1, 1]} : vector<16x64xbf16> to vector<16x16xbf16>
    %481 = vector.extract_strided_slice %421 {offsets = [0, 48], sizes = [16, 16], strides = [1, 1]} : vector<16x64xbf16> to vector<16x16xbf16>
    %cst_135 = arith.constant dense<0.000000e+00> : vector<16x16xf32>
    %482 = tpu.matmul %480, %481, %cst_135 {dimension_numbers = #tpu.dot_dimension_numbers<[1], [1], [0], [0], [0, 0, 1, 0], [], []>} : vector<16x16xbf16>, vector<16x16xbf16>, vector<16x16xf32> -> vector<16x16xf32>
    %cst_136 = arith.constant 2.500000e-01 : f32
    %483 = vector.broadcast %cst_136 : f32 to vector<16x16xf32>
    %484 = arith.mulf %482, %483 : vector<16x16xf32>
    %485 = arith.addf %484, %15 : vector<16x16xf32>
    %cst_137 = arith.constant dense<0xFF800000> : vector<16xf32>
    %486 = vector.multi_reduction <maximumf>, %485, %cst_137 [1] : vector<16x16xf32> to vector<16xf32>
    %487 = vector.shape_cast %486 : vector<16xf32> to vector<16x1xf32>
    %488 = vector.broadcast %487 : vector<16x1xf32> to vector<16x16xf32>
    %489 = arith.subf %485, %488 : vector<16x16xf32>
    %490 = math.exp %489 : vector<16x16xf32>
    %cst_138 = arith.constant dense<0.000000e+00> : vector<16xf32>
    %491 = vector.multi_reduction <add>, %490, %cst_138 [1] : vector<16x16xf32> to vector<16xf32>
    %492 = vector.shape_cast %491 : vector<16xf32> to vector<16x1xf32>
    %493 = tpu.reciprocal %492 {approx = true} : vector<16x1xf32> -> vector<16x1xf32>
    %494 = vector.broadcast %493 : vector<16x1xf32> to vector<16x16xf32>
    %495 = arith.mulf %490, %494 : vector<16x16xf32>
    %496 = arith.truncf %495 : vector<16x16xf32> to vector<16x16xbf16>
    %497 = vector.extract_strided_slice %422 {offsets = [0, 48], sizes = [16, 16], strides = [1, 1]} : vector<16x64xbf16> to vector<16x16xbf16>
    %cst_139 = arith.constant dense<0.000000e+00> : vector<16x16xf32>
    %498 = tpu.matmul %496, %497, %cst_139 {dimension_numbers = #tpu.dot_dimension_numbers<[1], [0], [0], [1], [0, 0, 1, 1], [], []>} : vector<16x16xbf16>, vector<16x16xbf16>, vector<16x16xf32> -> vector<16x16xf32>
    %499 = tpu.concatenate %441, %460, %479, %498 in 1 : vector<16x16xf32>, vector<16x16xf32>, vector<16x16xf32>, vector<16x16xf32> -> vector<16x64xf32>
    %500 = tpu.concatenate %419, %499 in 0 : vector<16x64xf32>, vector<16x64xf32> -> vector<32x64xf32>
    %501 = arith.truncf %500 : vector<32x64xf32> to vector<32x64xbf16>
    %cst_140 = arith.constant dense<0.000000e+00> : vector<32x64xf32>
    %502 = tpu.matmul %501, %291, %cst_140 {dimension_numbers = #tpu.dot_dimension_numbers<[1], [0], [0], [1], [0, 0, 1, 1], [], []>} : vector<32x64xbf16>, vector<64x64xbf16>, vector<32x64xf32> -> vector<32x64xf32>
    %503 = vector.broadcast %309 : vector<1x64xf32> to vector<32x64xf32>
    %504 = arith.addf %502, %503 : vector<32x64xf32>
    %505 = arith.addf %282, %504 : vector<32x64xf32>
    %cst_141 = arith.constant dense<0.000000e+00> : vector<32xf32>
    %506 = vector.multi_reduction <add>, %505, %cst_141 [1] : vector<32x64xf32> to vector<32xf32>
    %507 = vector.shape_cast %506 : vector<32xf32> to vector<32x1xf32>
    %cst_142 = arith.constant 6.400000e+01 : f32
    %508 = vector.broadcast %cst_142 : f32 to vector<32x1xf32>
    %509 = arith.divf %507, %508 : vector<32x1xf32>
    %510 = vector.broadcast %509 : vector<32x1xf32> to vector<32x64xf32>
    %511 = arith.subf %505, %510 : vector<32x64xf32>
    %512 = arith.mulf %511, %511 : vector<32x64xf32>
    %cst_143 = arith.constant dense<0.000000e+00> : vector<32xf32>
    %513 = vector.multi_reduction <add>, %512, %cst_143 [1] : vector<32x64xf32> to vector<32xf32>
    %514 = vector.shape_cast %513 : vector<32xf32> to vector<32x1xf32>
    %cst_144 = arith.constant 6.400000e+01 : f32
    %515 = vector.broadcast %cst_144 : f32 to vector<32x1xf32>
    %516 = arith.divf %514, %515 : vector<32x1xf32>
    %517 = vector.broadcast %509 : vector<32x1xf32> to vector<32x64xf32>
    %518 = arith.subf %505, %517 : vector<32x64xf32>
    %cst_145 = arith.constant 9.99999974E-6 : f32
    %519 = vector.broadcast %cst_145 : f32 to vector<32x1xf32>
    %520 = arith.addf %516, %519 : vector<32x1xf32>
    %521 = math.rsqrt %520 : vector<32x1xf32>
    %522 = vector.broadcast %521 : vector<32x1xf32> to vector<32x64xf32>
    %523 = arith.mulf %518, %522 : vector<32x64xf32>
    %524 = vector.broadcast %306 : vector<1x64xf32> to vector<32x64xf32>
    %525 = arith.mulf %523, %524 : vector<32x64xf32>
    %526 = vector.broadcast %307 : vector<1x64xf32> to vector<32x64xf32>
    %527 = arith.addf %525, %526 : vector<32x64xf32>
    %528 = arith.truncf %527 : vector<32x64xf32> to vector<32x64xbf16>
    %cst_146 = arith.constant dense<0.000000e+00> : vector<32x256xf32>
    %529 = tpu.matmul %528, %297, %cst_146 {dimension_numbers = #tpu.dot_dimension_numbers<[1], [0], [0], [1], [0, 0, 1, 1], [], []>} : vector<32x64xbf16>, vector<64x256xbf16>, vector<32x256xf32> -> vector<32x256xf32>
    %530 = vector.broadcast %300 : vector<1x256xf32> to vector<32x256xf32>
    %531 = arith.addf %529, %530 : vector<32x256xf32>
    %532 = arith.mulf %531, %531 : vector<32x256xf32>
    %533 = arith.mulf %531, %532 : vector<32x256xf32>
    %cst_147 = arith.constant 4.471500e-02 : f32
    %534 = vector.broadcast %cst_147 : f32 to vector<32x256xf32>
    %535 = arith.mulf %534, %533 : vector<32x256xf32>
    %536 = arith.addf %531, %535 : vector<32x256xf32>
    %cst_148 = arith.constant 0.797884583 : f32
    %537 = vector.broadcast %cst_148 : f32 to vector<32x256xf32>
    %538 = arith.mulf %537, %536 : vector<32x256xf32>
    %539 = math.tanh %538 : vector<32x256xf32>
    %cst_149 = arith.constant 1.000000e+00 : f32
    %540 = vector.broadcast %cst_149 : f32 to vector<32x256xf32>
    %541 = arith.addf %540, %539 : vector<32x256xf32>
    %cst_150 = arith.constant 5.000000e-01 : f32
    %542 = vector.broadcast %cst_150 : f32 to vector<32x256xf32>
    %543 = arith.mulf %542, %541 : vector<32x256xf32>
    %544 = arith.mulf %531, %543 : vector<32x256xf32>
    %545 = arith.truncf %544 : vector<32x256xf32> to vector<32x256xbf16>
    %cst_151 = arith.constant dense<0.000000e+00> : vector<32x64xf32>
    %546 = tpu.matmul %545, %303, %cst_151 {dimension_numbers = #tpu.dot_dimension_numbers<[1], [1], [0], [0], [0, 0, 1, 0], [], []>} : vector<32x256xbf16>, vector<64x256xbf16>, vector<32x64xf32> -> vector<32x64xf32>
    %547 = vector.broadcast %308 : vector<1x64xf32> to vector<32x64xf32>
    %548 = arith.addf %546, %547 : vector<32x64xf32>
    %549 = arith.addf %505, %548 : vector<32x64xf32>
    %c2_i32 = arith.constant 2 : i32
    %c0_152 = arith.constant 0 : index
    %c0_153 = arith.constant 0 : index
    %550 = vector.load %arg10[%c0_152, %c0_153] : memref<2x64xf32, #tpu.memory_space<vmem>>, vector<2x64xf32>
    %c0_154 = arith.constant 0 : index
    %c0_155 = arith.constant 0 : index
    %551 = vector.load %arg11[%c0_154, %c0_155] : memref<64x128xbf16, #tpu.memory_space<vmem>>, vector<64x128xbf16>
    %c0_156 = arith.constant 0 : index
    %c0_157 = arith.constant 0 : index
    %552 = vector.load %arg12[%c0_156, %c0_157] : memref<1x128xf32, #tpu.memory_space<vmem>>, vector<1x128xf32>
    %553 = vector.extract_strided_slice %549 {offsets = [12, 0], sizes = [4, 64], strides = [1, 1]} : vector<32x64xf32> to vector<4x64xf32>
    %554 = vector.extract_strided_slice %550 {offsets = [0, 0], sizes = [1, 64], strides = [1, 1]} : vector<2x64xf32> to vector<1x64xf32>
    %555 = vector.extract_strided_slice %550 {offsets = [1, 0], sizes = [1, 64], strides = [1, 1]} : vector<2x64xf32> to vector<1x64xf32>
    %cst_158 = arith.constant dense<0.000000e+00> : vector<4xf32>
    %556 = vector.multi_reduction <add>, %553, %cst_158 [1] : vector<4x64xf32> to vector<4xf32>
    %557 = vector.shape_cast %556 : vector<4xf32> to vector<4x1xf32>
    %cst_159 = arith.constant 6.400000e+01 : f32
    %558 = vector.broadcast %cst_159 : f32 to vector<4x1xf32>
    %559 = arith.divf %557, %558 : vector<4x1xf32>
    %560 = vector.broadcast %559 : vector<4x1xf32> to vector<4x64xf32>
    %561 = arith.subf %553, %560 : vector<4x64xf32>
    %562 = arith.mulf %561, %561 : vector<4x64xf32>
    %cst_160 = arith.constant dense<0.000000e+00> : vector<4xf32>
    %563 = vector.multi_reduction <add>, %562, %cst_160 [1] : vector<4x64xf32> to vector<4xf32>
    %564 = vector.shape_cast %563 : vector<4xf32> to vector<4x1xf32>
    %cst_161 = arith.constant 6.400000e+01 : f32
    %565 = vector.broadcast %cst_161 : f32 to vector<4x1xf32>
    %566 = arith.divf %564, %565 : vector<4x1xf32>
    %567 = vector.broadcast %559 : vector<4x1xf32> to vector<4x64xf32>
    %568 = arith.subf %553, %567 : vector<4x64xf32>
    %cst_162 = arith.constant 9.99999974E-6 : f32
    %569 = vector.broadcast %cst_162 : f32 to vector<4x1xf32>
    %570 = arith.addf %566, %569 : vector<4x1xf32>
    %571 = math.rsqrt %570 : vector<4x1xf32>
    %572 = vector.broadcast %571 : vector<4x1xf32> to vector<4x64xf32>
    %573 = arith.mulf %568, %572 : vector<4x64xf32>
    %574 = vector.broadcast %554 : vector<1x64xf32> to vector<4x64xf32>
    %575 = arith.mulf %573, %574 : vector<4x64xf32>
    %576 = vector.broadcast %555 : vector<1x64xf32> to vector<4x64xf32>
    %577 = arith.addf %575, %576 : vector<4x64xf32>
    %578 = arith.truncf %577 : vector<4x64xf32> to vector<4x64xbf16>
    %cst_163 = arith.constant dense<0.000000e+00> : vector<4x128xf32>
    %579 = tpu.matmul %578, %551, %cst_163 {dimension_numbers = #tpu.dot_dimension_numbers<[1], [0], [0], [1], [0, 0, 1, 1], [], []>} : vector<4x64xbf16>, vector<64x128xbf16>, vector<4x128xf32> -> vector<4x128xf32>
    %580 = vector.broadcast %552 : vector<1x128xf32> to vector<4x128xf32>
    %581 = arith.addf %579, %580 : vector<4x128xf32>
    %c0_164 = arith.constant 0 : index
    %c0_165 = arith.constant 0 : index
    %c0_166 = arith.constant 0 : index
    %582 = vector.load %arg13[%c0_164, %c0_165, %c0_166] : memref<2x4x128xf32, #tpu.memory_space<vmem>>, vector<1x4x128xf32>
    %583 = vector.shape_cast %582 : vector<1x4x128xf32> to vector<4x128xf32>
    %584 = vector.shape_cast %581 : vector<4x128xf32> to vector<1x4x128xf32>
    tpu.vector_store %arg13[%c0_164, %c0_165, %c0_166], %584 {strides = array<i32>} : memref<2x4x128xf32, #tpu.memory_space<vmem>>, vector<1x4x128xf32>,
    %585 = vector.extract_strided_slice %549 {offsets = [28, 0], sizes = [4, 64], strides = [1, 1]} : vector<32x64xf32> to vector<4x64xf32>
    %586 = vector.extract_strided_slice %550 {offsets = [0, 0], sizes = [1, 64], strides = [1, 1]} : vector<2x64xf32> to vector<1x64xf32>
    %587 = vector.extract_strided_slice %550 {offsets = [1, 0], sizes = [1, 64], strides = [1, 1]} : vector<2x64xf32> to vector<1x64xf32>
    %cst_167 = arith.constant dense<0.000000e+00> : vector<4xf32>
    %588 = vector.multi_reduction <add>, %585, %cst_167 [1] : vector<4x64xf32> to vector<4xf32>
    %589 = vector.shape_cast %588 : vector<4xf32> to vector<4x1xf32>
    %cst_168 = arith.constant 6.400000e+01 : f32
    %590 = vector.broadcast %cst_168 : f32 to vector<4x1xf32>
    %591 = arith.divf %589, %590 : vector<4x1xf32>
    %592 = vector.broadcast %591 : vector<4x1xf32> to vector<4x64xf32>
    %593 = arith.subf %585, %592 : vector<4x64xf32>
    %594 = arith.mulf %593, %593 : vector<4x64xf32>
    %cst_169 = arith.constant dense<0.000000e+00> : vector<4xf32>
    %595 = vector.multi_reduction <add>, %594, %cst_169 [1] : vector<4x64xf32> to vector<4xf32>
    %596 = vector.shape_cast %595 : vector<4xf32> to vector<4x1xf32>
    %cst_170 = arith.constant 6.400000e+01 : f32
    %597 = vector.broadcast %cst_170 : f32 to vector<4x1xf32>
    %598 = arith.divf %596, %597 : vector<4x1xf32>
    %599 = vector.broadcast %591 : vector<4x1xf32> to vector<4x64xf32>
    %600 = arith.subf %585, %599 : vector<4x64xf32>
    %cst_171 = arith.constant 9.99999974E-6 : f32
    %601 = vector.broadcast %cst_171 : f32 to vector<4x1xf32>
    %602 = arith.addf %598, %601 : vector<4x1xf32>
    %603 = math.rsqrt %602 : vector<4x1xf32>
    %604 = vector.broadcast %603 : vector<4x1xf32> to vector<4x64xf32>
    %605 = arith.mulf %600, %604 : vector<4x64xf32>
    %606 = vector.broadcast %586 : vector<1x64xf32> to vector<4x64xf32>
    %607 = arith.mulf %605, %606 : vector<4x64xf32>
    %608 = vector.broadcast %587 : vector<1x64xf32> to vector<4x64xf32>
    %609 = arith.addf %607, %608 : vector<4x64xf32>
    %610 = arith.truncf %609 : vector<4x64xf32> to vector<4x64xbf16>
    %cst_172 = arith.constant dense<0.000000e+00> : vector<4x128xf32>
    %611 = tpu.matmul %610, %551, %cst_172 {dimension_numbers = #tpu.dot_dimension_numbers<[1], [0], [0], [1], [0, 0, 1, 1], [], []>} : vector<4x64xbf16>, vector<64x128xbf16>, vector<4x128xf32> -> vector<4x128xf32>
    %612 = vector.broadcast %552 : vector<1x128xf32> to vector<4x128xf32>
    %613 = arith.addf %611, %612 : vector<4x128xf32>
    %c1_173 = arith.constant 1 : index
    %c0_174 = arith.constant 0 : index
    %c0_175 = arith.constant 0 : index
    %614 = vector.load %arg13[%c1_173, %c0_174, %c0_175] : memref<2x4x128xf32, #tpu.memory_space<vmem>>, vector<1x4x128xf32>
    %615 = vector.shape_cast %614 : vector<1x4x128xf32> to vector<4x128xf32>
    %616 = vector.shape_cast %613 : vector<4x128xf32> to vector<1x4x128xf32>
    tpu.vector_store %arg13[%c1_173, %c0_174, %c0_175], %616 {strides = array<i32>} : memref<2x4x128xf32, #tpu.memory_space<vmem>>, vector<1x4x128xf32>,
    return
  }
  func.func @transform_0(%arg0: i32) -> (i32, i32, i32) {
    %c0_i32 = arith.constant 0 : i32
    %c0_i32_0 = arith.constant 0 : i32
    %c0_i32_1 = arith.constant 0 : i32
    return %arg0, %c0_i32, %c0_i32_0 : i32, i32, i32
  }
  func.func @transform_1(%arg0: i32) -> (i32, i32, i32) {
    %c0_i32 = arith.constant 0 : i32
    %c0_i32_0 = arith.constant 0 : i32
    %c0_i32_1 = arith.constant 0 : i32
    return %arg0, %c0_i32, %c0_i32_0 : i32, i32, i32
  }
  func.func @transform_2(%arg0: i32) -> (i32, i32, i32) {
    %c0_i32 = arith.constant 0 : i32
    %c0_i32_0 = arith.constant 0 : i32
    %c0_i32_1 = arith.constant 0 : i32
    %c0_i32_2 = arith.constant 0 : i32
    return %c0_i32, %c0_i32_0, %c0_i32_1 : i32, i32, i32
  }
  func.func @transform_3(%arg0: i32) -> (i32, i32, i32) {
    %c0_i32 = arith.constant 0 : i32
    %c0_i32_0 = arith.constant 0 : i32
    %c0_i32_1 = arith.constant 0 : i32
    %c0_i32_2 = arith.constant 0 : i32
    return %c0_i32, %c0_i32_0, %c0_i32_1 : i32, i32, i32
  }
  func.func @transform_4(%arg0: i32) -> (i32, i32, i32) {
    %c0_i32 = arith.constant 0 : i32
    %c0_i32_0 = arith.constant 0 : i32
    %c0_i32_1 = arith.constant 0 : i32
    %c0_i32_2 = arith.constant 0 : i32
    return %c0_i32, %c0_i32_0, %c0_i32_1 : i32, i32, i32
  }
  func.func @transform_5(%arg0: i32) -> (i32, i32, i32) {
    %c0_i32 = arith.constant 0 : i32
    %c0_i32_0 = arith.constant 0 : i32
    %c0_i32_1 = arith.constant 0 : i32
    %c0_i32_2 = arith.constant 0 : i32
    return %c0_i32, %c0_i32_0, %c0_i32_1 : i32, i32, i32
  }
  func.func @transform_6(%arg0: i32) -> (i32, i32, i32) {
    %c0_i32 = arith.constant 0 : i32
    %c0_i32_0 = arith.constant 0 : i32
    %c0_i32_1 = arith.constant 0 : i32
    %c0_i32_2 = arith.constant 0 : i32
    return %c0_i32, %c0_i32_0, %c0_i32_1 : i32, i32, i32
  }
  func.func @transform_7(%arg0: i32) -> (i32, i32, i32) {
    %c0_i32 = arith.constant 0 : i32
    %c0_i32_0 = arith.constant 0 : i32
    %c0_i32_1 = arith.constant 0 : i32
    %c0_i32_2 = arith.constant 0 : i32
    return %c0_i32, %c0_i32_0, %c0_i32_1 : i32, i32, i32
  }
  func.func @transform_8(%arg0: i32) -> (i32, i32, i32) {
    %c0_i32 = arith.constant 0 : i32
    %c0_i32_0 = arith.constant 0 : i32
    %c0_i32_1 = arith.constant 0 : i32
    %c0_i32_2 = arith.constant 0 : i32
    return %c0_i32, %c0_i32_0, %c0_i32_1 : i32, i32, i32
  }
  func.func @transform_9(%arg0: i32) -> (i32, i32) {
    %c0_i32 = arith.constant 0 : i32
    %c0_i32_0 = arith.constant 0 : i32
    %c0_i32_1 = arith.constant 0 : i32
    return %c0_i32, %c0_i32_0 : i32, i32
  }
  func.func @transform_10(%arg0: i32) -> (i32, i32) {
    %c0_i32 = arith.constant 0 : i32
    %c0_i32_0 = arith.constant 0 : i32
    %c0_i32_1 = arith.constant 0 : i32
    return %c0_i32, %c0_i32_0 : i32, i32
  }
  func.func @transform_11(%arg0: i32) -> (i32, i32) {
    %c0_i32 = arith.constant 0 : i32
    %c0_i32_0 = arith.constant 0 : i32
    %c0_i32_1 = arith.constant 0 : i32
    return %c0_i32, %c0_i32_0 : i32, i32
  }
  func.func @transform_12(%arg0: i32) -> (i32, i32, i32) {
    %c0_i32 = arith.constant 0 : i32
    %c0_i32_0 = arith.constant 0 : i32
    %c0_i32_1 = arith.constant 0 : i32
    return %arg0, %c0_i32, %c0_i32_0 : i32, i32, i32
  }
}

</mosaic_0001>

<llo_original>
// kernel: tpu_custom_call.1
$region0: #{tpu_custom_call.1}
  #allocation0 [shape = 'u32[]', space=smem, size = 0x4, offset = 0x4, fixed_abs, tag = 'smem constant byte address 0x4 - core index']
  #allocation1 [shape = 'u32[72,128]{1,0:T(1,128)}', space=vmem, size = 0x9000, scoped, tag = 'internal scratch']
  %s0 = inlined_call_operand.hbm [shape: f32[2,16,64], index: 0, kind: input, shape index: {}]
  %s1 = inlined_call_operand.hbm [shape: f32[2,1,16], index: 1, kind: input, shape index: {}]
  %s2 = inlined_call_operand.hbm [shape: bf16[2,64,192], index: 2, kind: input, shape index: {}]
  %s3 = inlined_call_operand.hbm [shape: f32[2,1,192], index: 3, kind: input, shape index: {}]
  %s4 = inlined_call_operand.hbm [shape: bf16[2,64,64], index: 4, kind: input, shape index: {}]
  %s5 = inlined_call_operand.hbm [shape: f32[2,8,64], index: 5, kind: input, shape index: {}]
  %s6 = inlined_call_operand.hbm [shape: bf16[2,64,256], index: 6, kind: input, shape index: {}]
  %s7 = inlined_call_operand.vmem [shape: f32[2,1,256], index: 7, kind: input, shape index: {}]
  %s8 = inlined_call_operand.hbm [shape: bf16[2,64,256], index: 8, kind: input, shape index: {}]
  %s9 = inlined_call_operand.vmem [shape: f32[2,64], index: 9, kind: input, shape index: {}]
  %s10 = inlined_call_operand.hbm [shape: bf16[64,128], index: 10, kind: input, shape index: {}]
  %s11 = inlined_call_operand.vmem [shape: f32[1,128], index: 11, kind: input, shape index: {}]
  %s12 = inlined_call_operand.hbm [shape: f32[2,4,128], index: 12, kind: output, shape index: {}]
  %s13 = sld [smem:[#allocation0]]
  $region94: #{tpu_custom_call.1} parent=0
    _
  %s15 = ssub.s32 1, %s13
  %s16 = scalar_select 0, %s15, %s13
  $region1: #{tpu_custom_call.1} parent=0
    #allocation2 [shape = 'u8[16384]{0}', space=vmem, size = 0x4000, scoped, tag = 'input window, operand 0, single buffered']
    #allocation3 [shape = 's32[1]{0}', space=sflag, size = 0x4, scoped, tag = 'scoped memory for tpu_custom_call.1']
    #allocation4 [shape = 's32[1]{0}', space=sflag, size = 0x4, scoped, tag = 'scoped memory for tpu_custom_call.1']
    #allocation5 [shape = 'u8[1024]{0}', space=vmem, size = 0x400, scoped, tag = 'input window, operand 1, single buffered']
    #allocation6 [shape = 's32[1]{0}', space=sflag, size = 0x4, scoped, tag = 'scoped memory for tpu_custom_call.1']
    #allocation7 [shape = 'u8[65536]{0}', space=vmem, size = 0x10000, scoped, tag = 'input window, operand 2, single buffered']
    #allocation8 [shape = 'u8[2048]{0}', space=vmem, size = 0x800, scoped, tag = 'input window, operand 3, single buffered']
    #allocation9 [shape = 's32[1]{0}', space=sflag, size = 0x4, scoped, tag = 'scoped memory for tpu_custom_call.1']
    #allocation10 [shape = 'u8[32768]{0}', space=vmem, size = 0x8000, scoped, tag = 'input window, operand 4, single buffered']
    #allocation11 [shape = 'u8[8192]{0}', space=vmem, size = 0x2000, scoped, tag = 'input window, operand 5, single buffered']
    #allocation12 [shape = 's32[1]{0}', space=sflag, size = 0x4, scoped, tag = 'scoped memory for tpu_custom_call.1']
    #allocation13 [shape = 'u8[65536]{0}', space=vmem, size = 0x10000, scoped, tag = 'input window, operand 6, single buffered']
    #allocation14 [shape = 'u8[65536]{0}', space=vmem, size = 0x10000, scoped, tag = 'input window, operand 8, single buffered']
    #allocation15 [shape = 's32[1]{0}', space=sflag, size = 0x4, scoped, tag = 'scoped memory for tpu_custom_call.1']
    #allocation16 [shape = 'u8[16384]{0}', space=vmem, size = 0x4000, scoped, tag = 'input window, operand 10, single buffered']
    #allocation17 [shape = 'u8[4096]{0}', space=vmem, size = 0x1000, scoped, tag = 'output window, operand 0, single buffered']
    %17 = vsyncpa [#allocation3], 0
    %18 = vsyncpa [#allocation6], 0
    %19 = vsyncpa [#allocation9], 0
    %20 = vsyncpa [#allocation12], 0
    %21 = vsyncpa [#allocation15], 0
    %22 = vsyncpa [#allocation4], 0
    // Predicated region
    $region2: #{tpu_custom_call.1} parent=1 // pred_check
      _
    $region3: #{tpu_custom_call.1} parent=1 // pred_check_branch
      %24 = sbr.rel (0) target = $region5
    $region4: #{tpu_custom_call.1} parent=1 // pred_region
      %26 = vsyncadd [#allocation3], 0
      %s27 = sshll.u32 %s0, 4
      %s28 = int_to_ptr.hbm [resolvable:$true] %s27
      %s29 = sshll.u32 [#allocation2], 4
      %s30 = int_to_ptr.vmem [resolvable:$true] %s29
      %35 = dma.hbm_to_vmem [thread:$0]  %s28, 512, %s30, [#allocation3], 128, 128, 8
    $region5: #{tpu_custom_call.1} parent=1 // pred_fallthru
      _
    // Predicated region
    $region6: #{tpu_custom_call.1} parent=1 // pred_check
      _
    $region7: #{tpu_custom_call.1} parent=1 // pred_check_branch
      %37 = sbr.rel (0) target = $region9
    $region8: #{tpu_custom_call.1} parent=1 // pred_region
      %39 = vsyncadd [#allocation6], 0
      %s40 = sshll.u32 %s1, 4
      %s41 = int_to_ptr.hbm [resolvable:$true] %s40
      %s42 = sshll.u32 [#allocation5], 4
      %s43 = int_to_ptr.vmem [resolvable:$true] %s42
      %48 = dma.hbm_to_vmem [thread:$0]  %s41, 32, %s43, [#allocation6], 16, 16, 1
    $region9: #{tpu_custom_call.1} parent=1 // pred_fallthru
      _
    // Predicated region
    $region10: #{tpu_custom_call.1} parent=1 // pred_check
      _
    $region11: #{tpu_custom_call.1} parent=1 // pred_check_branch
      %50 = sbr.rel (0) target = $region13
    $region12: #{tpu_custom_call.1} parent=1 // pred_region
      %52 = vsyncadd [#allocation6], 0
      %s53 = sshll.u32 %s2, 4
      %s54 = int_to_ptr.hbm [resolvable:$true] %s53
      %s55 = sshll.u32 [#allocation7], 4
      %s56 = int_to_ptr.vmem [resolvable:$true] %s55
      %61 = dma.hbm_to_vmem [thread:$0]  %s54, 2048, %s56, [#allocation6], 128, 128, 8
    $region13: #{tpu_custom_call.1} parent=1 // pred_fallthru
      _
    // Predicated region
    $region14: #{tpu_custom_call.1} parent=1 // pred_check
      _
    $region15: #{tpu_custom_call.1} parent=1 // pred_check_branch
      %63 = sbr.rel (0) target = $region17
    $region16: #{tpu_custom_call.1} parent=1 // pred_region
      %65 = vsyncadd [#allocation9], 0
      %s66 = sshll.u32 %s3, 4
      %s67 = int_to_ptr.hbm [resolvable:$true] %s66
      %s68 = sshll.u32 [#allocation8], 4
      %s69 = int_to_ptr.vmem [resolvable:$true] %s68
      %74 = dma.hbm_to_vmem [thread:$0]  %s67, 64, %s69, [#allocation9], 32, 32, 2
    $region17: #{tpu_custom_call.1} parent=1 // pred_fallthru
      _
    // Predicated region
    $region18: #{tpu_custom_call.1} parent=1 // pred_check
      _
    $region19: #{tpu_custom_call.1} parent=1 // pred_check_branch
      %76 = sbr.rel (0) target = $region21
    $region20: #{tpu_custom_call.1} parent=1 // pred_region
      %78 = vsyncadd [#allocation9], 0
      %s79 = sshll.u32 %s4, 4
      %s80 = int_to_ptr.hbm [resolvable:$true] %s79
      %s81 = sshll.u32 [#allocation10], 4
      %s82 = int_to_ptr.vmem [resolvable:$true] %s81
      %87 = dma.hbm_to_vmem [thread:$0]  %s80, 1024, %s82, [#allocation9], 64, 64, 4
    $region21: #{tpu_custom_call.1} parent=1 // pred_fallthru
      _
    // Predicated region
    $region22: #{tpu_custom_call.1} parent=1 // pred_check
      _
    $region23: #{tpu_custom_call.1} parent=1 // pred_check_branch
      %89 = sbr.rel (0) target = $region25
    $region24: #{tpu_custom_call.1} parent=1 // pred_region
      %91 = vsyncadd [#allocation12], 0
      %s92 = sshll.u32 %s5, 4
      %s93 = int_to_ptr.hbm [resolvable:$true] %s92
      %s94 = sshll.u32 [#allocation11], 4
      %s95 = int_to_ptr.vmem [resolvable:$true] %s94
      %100 = dma.hbm_to_vmem [thread:$0]  %s93, 256, %s95, [#allocation12], 128, 128, 8
    $region25: #{tpu_custom_call.1} parent=1 // pred_fallthru
      _
    // Predicated region
    $region26: #{tpu_custom_call.1} parent=1 // pred_check
      _
    $region27: #{tpu_custom_call.1} parent=1 // pred_check_branch
      %102 = sbr.rel (0) target = $region29
    $region28: #{tpu_custom_call.1} parent=1 // pred_region
      %104 = vsyncadd [#allocation12], 0
      %s105 = sshll.u32 %s6, 4
      %s106 = int_to_ptr.hbm [resolvable:$true] %s105
      %s107 = sshll.u32 [#allocation13], 4
      %s108 = int_to_ptr.vmem [resolvable:$true] %s107
      %113 = dma.hbm_to_vmem [thread:$0]  %s106, 2048, %s108, [#allocation12], 128, 128, 8
    $region29: #{tpu_custom_call.1} parent=1 // pred_fallthru
      _
    // Predicated region
    $region30: #{tpu_custom_call.1} parent=1 // pred_check
      _
    $region31: #{tpu_custom_call.1} parent=1 // pred_check_branch
      %115 = sbr.rel (0) target = $region33
    $region32: #{tpu_custom_call.1} parent=1 // pred_region
      _
    $region33: #{tpu_custom_call.1} parent=1 // pred_fallthru
      _
    // Predicated region
    $region34: #{tpu_custom_call.1} parent=1 // pred_check
      _
    $region35: #{tpu_custom_call.1} parent=1 // pred_check_branch
      %117 = sbr.rel (0) target = $region37
    $region36: #{tpu_custom_call.1} parent=1 // pred_region
      %119 = vsyncadd [#allocation15], 0
      %s120 = sshll.u32 %s8, 4
      %s121 = int_to_ptr.hbm [resolvable:$true] %s120
      %s122 = sshll.u32 [#allocation14], 4
      %s123 = int_to_ptr.vmem [resolvable:$true] %s122
      %128 = dma.hbm_to_vmem [thread:$0]  %s121, 2048, %s123, [#allocation15], 128, 128, 8
    $region37: #{tpu_custom_call.1} parent=1 // pred_fallthru
      _
    // Predicated region
    $region38: #{tpu_custom_call.1} parent=1 // pred_check
      _
    $region39: #{tpu_custom_call.1} parent=1 // pred_check_branch
      %130 = sbr.rel (0) target = $region41
    $region40: #{tpu_custom_call.1} parent=1 // pred_region
      _
    $region41: #{tpu_custom_call.1} parent=1 // pred_fallthru
      _
    // Predicated region
    $region42: #{tpu_custom_call.1} parent=1 // pred_check
      _
    $region43: #{tpu_custom_call.1} parent=1 // pred_check_branch
      %132 = sbr.rel (0) target = $region45
    $region44: #{tpu_custom_call.1} parent=1 // pred_region
      %134 = vsyncadd [#allocation15], 0
      %s135 = sshll.u32 %s10, 4
      %s136 = int_to_ptr.hbm [resolvable:$true] %s135
      %s137 = sshll.u32 [#allocation16], 4
      %s138 = int_to_ptr.vmem [resolvable:$true] %s137
      %143 = dma.hbm_to_vmem [thread:$0]  %s136, 512, %s138, [#allocation15], 64, 64, 4
    $region45: #{tpu_custom_call.1} parent=1 // pred_fallthru
      _
    // Predicated region
    $region46: #{tpu_custom_call.1} parent=1 // pred_check
      _
    $region47: #{tpu_custom_call.1} parent=1 // pred_check_branch
      %145 = sbr.rel (0) target = $region49
    $region48: #{tpu_custom_call.1} parent=1 // pred_region
      _
    $region49: #{tpu_custom_call.1} parent=1 // pred_fallthru
      _
    // Predicated region
    $region50: #{tpu_custom_call.1} parent=1 // pred_check
      _
    $region51: #{tpu_custom_call.1} parent=1 // pred_check_branch
      %147 = sbr.rel (0) target = $region53
    $region52: #{tpu_custom_call.1} parent=1 // pred_region
      %149 = dma.done [#allocation3], 512
    $region53: #{tpu_custom_call.1} parent=1 // pred_fallthru
      _
    // Predicated region
    $region54: #{tpu_custom_call.1} parent=1 // pred_check
      _
    $region55: #{tpu_custom_call.1} parent=1 // pred_check_branch
      %151 = sbr.rel (0) target = $region57
    $region56: #{tpu_custom_call.1} parent=1 // pred_region
      %153 = dma.done [#allocation6], 32
    $region57: #{tpu_custom_call.1} parent=1 // pred_fallthru
      _
    // Predicated region
    $region58: #{tpu_custom_call.1} parent=1 // pred_check
      _
    $region59: #{tpu_custom_call.1} parent=1 // pred_check_branch
      %155 = sbr.rel (0) target = $region61
    $region60: #{tpu_custom_call.1} parent=1 // pred_region
      %157 = dma.done [#allocation6], 2048
    $region61: #{tpu_custom_call.1} parent=1 // pred_fallthru
      _
    // Predicated region
    $region62: #{tpu_custom_call.1} parent=1 // pred_check
      _
    $region63: #{tpu_custom_call.1} parent=1 // pred_check_branch
      %159 = sbr.rel (0) target = $region65
    $region64: #{tpu_custom_call.1} parent=1 // pred_region
      %161 = dma.done [#allocation9], 64
    $region65: #{tpu_custom_call.1} parent=1 // pred_fallthru
      _
    // Predicated region
    $region66: #{tpu_custom_call.1} parent=1 // pred_check
      _
    $region67: #{tpu_custom_call.1} parent=1 // pred_check_branch
      %163 = sbr.rel (0) target = $region69
    $region68: #{tpu_custom_call.1} parent=1 // pred_region
      %165 = dma.done [#allocation9], 1024
    $region69: #{tpu_custom_call.1} parent=1 // pred_fallthru
      _
    // Predicated region
    $region70: #{tpu_custom_call.1} parent=1 // pred_check
      _
    $region71: #{tpu_custom_call.1} parent=1 // pred_check_branch
      %167 = sbr.rel (0) target = $region73
    $region72: #{tpu_custom_call.1} parent=1 // pred_region
      %169 = dma.done [#allocation12], 256
    $region73: #{tpu_custom_call.1} parent=1 // pred_fallthru
      _
    // Predicated region
    $region74: #{tpu_custom_call.1} parent=1 // pred_check
      _
    $region75: #{tpu_custom_call.1} parent=1 // pred_check_branch
      %171 = sbr.rel (0) target = $region77
    $region76: #{tpu_custom_call.1} parent=1 // pred_region
      %173 = dma.done [#allocation12], 2048
    $region77: #{tpu_custom_call.1} parent=1 // pred_fallthru
      _
    // Predicated region
    $region78: #{tpu_custom_call.1} parent=1 // pred_check
      _
    $region79: #{tpu_custom_call.1} parent=1 // pred_check_branch
      %175 = sbr.rel (0) target = $region81
    $region80: #{tpu_custom_call.1} parent=1 // pred_region
      %177 = dma.done [#allocation15], 2048
    $region81: #{tpu_custom_call.1} parent=1 // pred_fallthru
      _
    // Predicated region
    $region82: #{tpu_custom_call.1} parent=1 // pred_check
      _
    $region83: #{tpu_custom_call.1} parent=1 // pred_check_branch
      %179 = sbr.rel (0) target = $region85
    $region84: #{tpu_custom_call.1} parent=1 // pred_region
      %181 = dma.done [#allocation15], 512
    $region85: #{tpu_custom_call.1} parent=1 // pred_fallthru
      _
    %v183 = vld [vmem:[#allocation2] sm:$0xff]
    %v184 = vld [vmem:[#allocation2 + $0x8] sm:$0xff]
    %v185 = vld [vmem:[#allocation2 + $0x10] sm:$0xff]
    %v186 = vld [vmem:[#allocation2 + $0x18] sm:$0xff]
    %v187 = vlaneseq
    %v188 = vshrl.u32 %v187, 7
    %v189 = vadd.s32 %v188, 8
    %v190 = vlaneseq
    %v191 = vand.u32 %v190, 127
    %vm192 = vcmp.ge.s32.totalorder %v188, %v191
    %vm193 = vcmp.ge.s32.totalorder %v189, %v191
    %v194 = vsel %vm192, 0.0, -1e+30
    %v195 = vsel %vm193, 0.0, -1e+30
    %v196 = vld [vmem:[#allocation5] sm:$0x1]
    %v198 = vperm.slane %v196, 0
    %v200 = vadd.f32 %v194, %v198
    %v201 = vadd.f32 %v195, %v198
    %s202 = scalar_lea.vmem [#allocation5], 1
    %v203 = vld [vmem:[%s202] sm:$0x1]
    %v205 = vperm.slane %v203, 0
    %v207 = vadd.f32 %v194, %v205
    %v208 = vadd.f32 %v195, %v205
    %v209 = vld [vmem:[#allocation7] sm:$0xff]
    %v210 = vld [vmem:[#allocation7 + $0x8] sm:$0xff]
    %v211 = vld [vmem:[#allocation7 + $0x10] sm:$0xff]
    %v212 = vld [vmem:[#allocation7 + $0x18] sm:$0xff]
    %v213 = vld [vmem:[#allocation7 + $0x20] sm:$0xff]
    %v214 = vld [vmem:[#allocation7 + $0x28] sm:$0xff]
    %v215 = vld [vmem:[#allocation7 + $0x30] sm:$0xff]
    %v216 = vld [vmem:[#allocation7 + $0x38] sm:$0xff]
    %v217 = vld [vmem:[#allocation8] sm:$0x3]
    %v218 = vld [vmem:[#allocation10] sm:$0xf]
    %v219 = vld [vmem:[#allocation10 + $0x4] sm:$0xf]
    %v220 = vld [vmem:[#allocation10 + $0x8] sm:$0xf]
    %v221 = vld [vmem:[#allocation10 + $0xc] sm:$0xf]
    %v222 = vld [vmem:[#allocation10 + $0x10] sm:$0xf]
    %v223 = vld [vmem:[#allocation10 + $0x14] sm:$0xf]
    %v224 = vld [vmem:[#allocation10 + $0x18] sm:$0xf]
    %v225 = vld [vmem:[#allocation10 + $0x1c] sm:$0xf]
    %v226 = vld [vmem:[#allocation11] sm:$0xff]
    %v227 = vld [vmem:[#allocation13] sm:$0xff]
    %v228 = vld [vmem:[#allocation13 + $0x8] sm:$0xff]
    %v229 = vld [vmem:[#allocation13 + $0x10] sm:$0xff]
    %v230 = vld [vmem:[#allocation13 + $0x18] sm:$0xff]
    %v231 = vld [vmem:[#allocation13 + $0x20] sm:$0xff]
    %v232 = vld [vmem:[#allocation13 + $0x28] sm:$0xff]
    %v233 = vld [vmem:[#allocation13 + $0x30] sm:$0xff]
    %v234 = vld [vmem:[#allocation13 + $0x38] sm:$0xff]
    %v235 = vld [vmem:[%s7] sm:$0x3]
    %v236 = vld [vmem:[#allocation14] sm:$0xff]
    %v237 = vld [vmem:[#allocation14 + $0x8] sm:$0xff]
    %v238 = vld [vmem:[#allocation14 + $0x10] sm:$0xff]
    %v239 = vld [vmem:[#allocation14 + $0x18] sm:$0xff]
    %v240 = vld [vmem:[#allocation14 + $0x20] sm:$0xff]
    %v241 = vld [vmem:[#allocation14 + $0x28] sm:$0xff]
    %v242 = vld [vmem:[#allocation14 + $0x30] sm:$0xff]
    %v243 = vld [vmem:[#allocation14 + $0x38] sm:$0xff]
    %vm244 = vcmask 523264
    %v245 = vsel %vm244, %v183, 0.0
    %246 = vadd.xlane.f32.xlu0 %v245
    %v247 = vpop.xlane.xlu0 %246
    %v248 = vsel %vm244, %v184, 0.0
    %249 = vadd.xlane.f32.xlu0 %v248
    %v250 = vpop.xlane.xlu0 %249
    %v251 = vsel %vm244, %v185, 0.0
    %252 = vadd.xlane.f32.xlu0 %v251
    %v253 = vpop.xlane.xlu0 %252
    %v254 = vsel %vm244, %v186, 0.0
    %255 = vadd.xlane.f32.xlu0 %v254
    %v256 = vpop.xlane.xlu0 %255
    %v257 = vrcp.pop 64.0
    %v258 = vmul.f32 64.0, %v257
    %v259 = vsub.f32 1.0, %v258
    %v260 = vmul.f32 %v257, %v259
    %v261 = vadd.f32 %v257, %v260
    %vm262 = vweird.f32 %v257
    %v263 = vsel %vm262, %v257, %v261
    %v264 = vmul.f32 %v247, %v263
    %v265 = vmul.f32 %v250, %v263
    %v266 = vmul.f32 %v253, %v263
    %v267 = vmul.f32 %v256, %v263
    %v268 = vsub.f32 %v183, %v264
    %v269 = vsub.f32 %v184, %v265
    %v270 = vsub.f32 %v185, %v266
    %v271 = vsub.f32 %v186, %v267
    %v272 = vmul.f32 %v268, %v268
    %v273 = vmul.f32 %v269, %v269
    %v274 = vmul.f32 %v270, %v270
    %v275 = vmul.f32 %v271, %v271
    %v276 = vsel %vm244, %v272, 0.0
    %277 = vadd.xlane.f32.xlu0 %v276
    %v278 = vpop.xlane.xlu0 %277
    %v279 = vsel %vm244, %v273, 0.0
    %280 = vadd.xlane.f32.xlu0 %v279
    %v281 = vpop.xlane.xlu0 %280
    %v282 = vsel %vm244, %v274, 0.0
    %283 = vadd.xlane.f32.xlu0 %v282
    %v284 = vpop.xlane.xlu0 %283
    %v285 = vsel %vm244, %v275, 0.0
    %286 = vadd.xlane.f32.xlu0 %v285
    %v287 = vpop.xlane.xlu0 %286
    %v288 = vmul.f32 %v278, %v263
    %v289 = vmul.f32 %v281, %v263
    %v290 = vmul.f32 %v284, %v263
    %v291 = vmul.f32 %v287, %v263
    %v292 = vadd.f32 %v288, 1e-05
    %v293 = vadd.f32 %v289, 1e-05
    %v294 = vadd.f32 %v290, 1e-05
    %v295 = vadd.f32 %v291, 1e-05
    %v296 = vrsqrt.pop %v292
    %v297 = vmul.f32 %v296, %v292
    %v298 = vmul.f32 %v297, %v296
    %v299 = vmul.f32 0.5, %v298
    %v300 = vsub.f32 1.5, %v299
    %v301 = vmul.f32 %v296, %v300
    %vm302 = vweird.f32 %v292
    %vm303 = vweird.f32 %v296
    %vm304 = vmor %vm302, %vm303
    %v305 = vsel %vm304, %v296, %v301
    %v306 = vrsqrt.pop %v293
    %v307 = vmul.f32 %v306, %v293
    %v308 = vmul.f32 %v307, %v306
    %v309 = vmul.f32 0.5, %v308
    %v310 = vsub.f32 1.5, %v309
    %v311 = vmul.f32 %v306, %v310
    %vm312 = vweird.f32 %v293
    %vm313 = vweird.f32 %v306
    %vm314 = vmor %vm312, %vm313
    %v315 = vsel %vm314, %v306, %v311
    %v316 = vrsqrt.pop %v294
    %v317 = vmul.f32 %v316, %v294
    %v318 = vmul.f32 %v317, %v316
    %v319 = vmul.f32 0.5, %v318
    %v320 = vsub.f32 1.5, %v319
    %v321 = vmul.f32 %v316, %v320
    %vm322 = vweird.f32 %v294
    %vm323 = vweird.f32 %v316
    %vm324 = vmor %vm322, %vm323
    %v325 = vsel %vm324, %v316, %v321
    %v326 = vrsqrt.pop %v295
    %v327 = vmul.f32 %v326, %v295
    %v328 = vmul.f32 %v327, %v326
    %v329 = vmul.f32 0.5, %v328
    %v330 = vsub.f32 1.5, %v329
    %v331 = vmul.f32 %v326, %v330
    %vm332 = vweird.f32 %v295
    %vm333 = vweird.f32 %v326
    %vm334 = vmor %vm332, %vm333
    %v335 = vsel %vm334, %v326, %v331
    %v336 = vmul.f32 %v268, %v305
    %v337 = vmul.f32 %v269, %v315
    %v338 = vmul.f32 %v270, %v325
    %v339 = vmul.f32 %v271, %v335
    %v340 = vperm.slane %v226, 0
    %v341 = vmul.f32 %v336, %v340
    %v342 = vmul.f32 %v337, %v340
    %v343 = vmul.f32 %v338, %v340
    %v344 = vmul.f32 %v339, %v340
    %v345 = vperm.slane %v226, 1
    %v346 = vadd.f32 %v341, %v345
    %v347 = vadd.f32 %v342, %v345
    %v348 = vadd.f32 %v343, %v345
    %v349 = vadd.f32 %v344, %v345
    %v350 = vpack.c.bf16 %v347, %v346
    %v351 = vpack.c.bf16 %v349, %v348
    %v353 = vperm.slane %v217, 0
    %v354 = vperm.slane %v217, 1
    %v365 = vunpack.c.l.b16 %v209
    %v366 = vunpack.c.h.b16 %v209
    %v367 = vunpack.c.l.b16 %v210
    %v368 = vunpack.c.h.b16 %v210
    %v369 = vunpack.c.l.b16 %v211
    %v370 = vunpack.c.h.b16 %v211
    %v371 = vunpack.c.l.b16 %v212
    %v372 = vunpack.c.h.b16 %v212
    %v373 = vunpack.c.l.b16 %v213
    %v374 = vunpack.c.h.b16 %v213
    %v375 = vunpack.c.l.b16 %v214
    %v376 = vunpack.c.h.b16 %v214
    %v377 = vunpack.c.l.b16 %v215
    %v378 = vunpack.c.h.b16 %v215
    %v379 = vunpack.c.l.b16 %v216
    %v380 = vunpack.c.h.b16 %v216
    %v381 = vpack.c.b16 %v367, %v365
    %v382 = vpack.c.b16 %v368, %v366
    %v383 = vpack.c.b16 %v371, %v369
    %v384 = vpack.c.b16 %v372, %v370
    %v385 = vpack.c.b16 %v375, %v373
    %v386 = vpack.c.b16 %v376, %v374
    %v387 = vpack.c.b16 %v379, %v377
    %v388 = vpack.c.b16 %v380, %v378
    %v398 = vsel %vm244, %v350, 0
    %v401 = vsel %vm244, %v351, 0
    %403 = vmatpush.bf16.msra.mxu0 0
    %404 = vmatpush.bf16.msra.mxu0 0
    %405 = vmatpush.bf16.msra.mxu0 0
    %406 = vmatpush.bf16.msra.mxu0 0
    %407 = vmatpush.bf16.msra.mxu0 %v387
    %408 = vmatpush.bf16.msra.mxu0 %v385
    %409 = vmatpush.bf16.msra.mxu0 %v383
    %410 = vmatpush.bf16.msra.mxu0 %v381
    %411 = vmatmul.bf16.gmra.mxu0 %v398
    %v412 = vpop.f32.mrf.mxu0
    %v413 = vadd.f32 %v353, %v412
    %v414 = vpop.f32.mrf.mxu0
    %v415 = vadd.f32 %v353, %v414
    %416 = vmatmul.bf16.gmra.mxu0 %v401
    %v417 = vpop.f32.mrf.mxu0
    %v418 = vadd.f32 %v353, %v417
    %v419 = vpop.f32.mrf.mxu0
    %v420 = vadd.f32 %v353, %v419
    %421 = vdwg.mxu0
    %422 = vmatpush.bf16.msra.mxu0 0
    %423 = vmatpush.bf16.msra.mxu0 0
    %424 = vmatpush.bf16.msra.mxu0 0
    %425 = vmatpush.bf16.msra.mxu0 0
    %426 = vmatpush.bf16.msra.mxu0 %v388
    %427 = vmatpush.bf16.msra.mxu0 %v386
    %428 = vmatpush.bf16.msra.mxu0 %v384
    %429 = vmatpush.bf16.msra.mxu0 %v382
    %430 = vmatmul.bf16.gmra.mxu0 %v398
    %v431 = vpop.f32.mrf.mxu0
    %v432 = vadd.f32 %v354, %v431
    %v433 = vpop.f32.mrf.mxu0
    %v434 = vadd.f32 %v354, %v433
    %435 = vmatmul.bf16.gmra.mxu0 %v401
    %v436 = vpop.f32.mrf.mxu0
    %v437 = vadd.f32 %v354, %v436
    %v438 = vpop.f32.mrf.mxu0
    %v439 = vadd.f32 %v354, %v438
    %440 = vdwg.mxu0
    %v441 = vpack.c.bf16 %v432, %v413
    %v442 = vpack.c.bf16 %v434, %v415
    %v443 = vpack.c.bf16 %v437, %v418
    %v444 = vpack.c.bf16 %v439, %v420
    %v447 = vunpack.c.l.b16 %v441
    %v448 = vunpack.c.l.b16 %v442
    %v449 = vpack.c.b16 %v448, %v447
    %450 = vrot.lane.b32.xlu0 %v449, 64
    %v451 = vpop.permute.xlu0 %450
    %vm452 = vcmask 130048
    %v454 = vsel %vm452, %v449, 0
    %v457 = vsel %vm452, %v451, 0
    %459 = vmatpush.bf16.xpose.msra.mxu0 0
    %460 = vmatpush.bf16.xpose.msra.mxu0 0
    %461 = vmatpush.bf16.xpose.msra.mxu0 0
    %462 = vmatpush.bf16.xpose.msra.mxu0 0
    %463 = vmatpush.bf16.xpose.msra.mxu0 0
    %464 = vmatpush.bf16.xpose.msra.mxu0 0
    %465 = vmatpush.bf16.xpose.msra.mxu0 0
    %466 = vmatpush.bf16.xpose.msra.mxu0 %v457
    %467 = vmatmul.bf16.gmra.mxu0 %v454
    %v468 = vpop.f32.mrf.mxu0
    %v469 = vadd.f32 0.0, %v468
    %v470 = vpop.f32.mrf.mxu0
    %v471 = vadd.f32 0.0, %v470
    %472 = vdwg.mxu0
    %v473 = vmul.f32 %v469, 0.25
    %v474 = vmul.f32 %v471, 0.25
    %v475 = vadd.f32 %v473, %v200
    %v476 = vadd.f32 %v474, %v201
    %v477 = vsel %vm452, %v475, -inf
    %478 = vmax.xlane.f32.xlu0 %v477
    %v479 = vpop.xlane.xlu0 %478
    %v480 = vsel %vm452, %v476, -inf
    %481 = vmax.xlane.f32.xlu0 %v480
    %v482 = vpop.xlane.xlu0 %481
    %v483 = vsub.f32 %v475, %v479
    %v484 = vsub.f32 %v476, %v482
    %v485 = vmul.f32 %v483, 1.442695
    %v486 = vpow.pop %v485
    %v487 = vmul.f32 %v484, 1.442695
    %v488 = vpow.pop %v487
    %v489 = vsel %vm452, %v486, 0.0
    %490 = vadd.xlane.f32.xlu0 %v489
    %v491 = vpop.xlane.xlu0 %490
    %v492 = vsel %vm452, %v488, 0.0
    %493 = vadd.xlane.f32.xlu0 %v492
    %v494 = vpop.xlane.xlu0 %493
    %v495 = vrcp.pop %v491
    %v496 = vrcp.pop %v494
    %v497 = vmul.f32 %v486, %v495
    %v498 = vmul.f32 %v488, %v496
    %v499 = vpack.c.bf16 %v498, %v497
    %v500 = vunpack.c.h.b16 %v441
    %v501 = vunpack.c.h.b16 %v442
    %v502 = vpack.c.b16 %v501, %v500
    %v505 = vsel %vm452, %v499, 0
    %507 = vmatpush.bf16.msra.mxu0 0
    %508 = vmatpush.bf16.msra.mxu0 0
    %509 = vmatpush.bf16.msra.mxu0 0
    %510 = vmatpush.bf16.msra.mxu0 0
    %511 = vmatpush.bf16.msra.mxu0 0
    %512 = vmatpush.bf16.msra.mxu0 0
    %513 = vmatpush.bf16.msra.mxu0 0
    %514 = vmatpush.bf16.msra.mxu0 %v502
    %515 = vmatmul.bf16.gmra.mxu0 %v505
    %v516 = vpop.f32.mrf.mxu0
    %v517 = vadd.f32 0.0, %v516
    %v518 = vpop.f32.mrf.mxu0
    %v519 = vadd.f32 0.0, %v518
    %520 = vdwg.mxu0
    %521 = vrot.lane.b32.xlu0 %v449, 112
    %v522 = vpop.permute.xlu0 %521
    %523 = vrot.lane.b32.xlu0 %v449, 48
    %v524 = vpop.permute.xlu0 %523
    %v526 = vsel %vm452, %v522, 0
    %v529 = vsel %vm452, %v524, 0
    %531 = vmatpush.bf16.xpose.msra.mxu0 0
    %532 = vmatpush.bf16.xpose.msra.mxu0 0
    %533 = vmatpush.bf16.xpose.msra.mxu0 0
    %534 = vmatpush.bf16.xpose.msra.mxu0 0
    %535 = vmatpush.bf16.xpose.msra.mxu0 0
    %536 = vmatpush.bf16.xpose.msra.mxu0 0
    %537 = vmatpush.bf16.xpose.msra.mxu0 0
    %538 = vmatpush.bf16.xpose.msra.mxu0 %v529
    %539 = vmatmul.bf16.gmra.mxu0 %v526
    %v540 = vpop.f32.mrf.mxu0
    %v541 = vadd.f32 0.0, %v540
    %v542 = vpop.f32.mrf.mxu0
    %v543 = vadd.f32 0.0, %v542
    %544 = vdwg.mxu0
    %v545 = vmul.f32 %v541, 0.25
    %v546 = vmul.f32 %v543, 0.25
    %v547 = vadd.f32 %v545, %v200
    %v548 = vadd.f32 %v546, %v201
    %v549 = vsel %vm452, %v547, -inf
    %550 = vmax.xlane.f32.xlu0 %v549
    %v551 = vpop.xlane.xlu0 %550
    %v552 = vsel %vm452, %v548, -inf
    %553 = vmax.xlane.f32.xlu0 %v552
    %v554 = vpop.xlane.xlu0 %553
    %v555 = vsub.f32 %v547, %v551
    %v556 = vsub.f32 %v548, %v554
    %v557 = vmul.f32 %v555, 1.442695
    %v558 = vpow.pop %v557
    %v559 = vmul.f32 %v556, 1.442695
    %v560 = vpow.pop %v559
    %v561 = vsel %vm452, %v558, 0.0
    %562 = vadd.xlane.f32.xlu0 %v561
    %v563 = vpop.xlane.xlu0 %562
    %v564 = vsel %vm452, %v560, 0.0
    %565 = vadd.xlane.f32.xlu0 %v564
    %v566 = vpop.xlane.xlu0 %565
    %v567 = vrcp.pop %v563
    %v568 = vrcp.pop %v566
    %v569 = vmul.f32 %v558, %v567
    %v570 = vmul.f32 %v560, %v568
    %v571 = vpack.c.bf16 %v570, %v569
    %572 = vrot.lane.b32.xlu0 %v502, 112
    %v573 = vpop.permute.xlu0 %572
    %v576 = vsel %vm452, %v571, 0
    %578 = vmatpush.bf16.msra.mxu0 0
    %579 = vmatpush.bf16.msra.mxu0 0
    %580 = vmatpush.bf16.msra.mxu0 0
    %581 = vmatpush.bf16.msra.mxu0 0
    %582 = vmatpush.bf16.msra.mxu0 0
    %583 = vmatpush.bf16.msra.mxu0 0
    %584 = vmatpush.bf16.msra.mxu0 0
    %585 = vmatpush.bf16.msra.mxu0 %v573
    %586 = vmatmul.bf16.gmra.mxu0 %v576
    %v587 = vpop.f32.mrf.mxu0
    %v588 = vadd.f32 0.0, %v587
    %v589 = vpop.f32.mrf.mxu0
    %v590 = vadd.f32 0.0, %v589
    %591 = vdwg.mxu0
    %592 = vrot.lane.b32.xlu0 %v449, 96
    %v593 = vpop.permute.xlu0 %592
    %594 = vrot.lane.b32.xlu0 %v449, 32
    %v595 = vpop.permute.xlu0 %594
    %v597 = vsel %vm452, %v593, 0
    %v600 = vsel %vm452, %v595, 0
    %602 = vmatpush.bf16.xpose.msra.mxu0 0
    %603 = vmatpush.bf16.xpose.msra.mxu0 0
    %604 = vmatpush.bf16.xpose.msra.mxu0 0
    %605 = vmatpush.bf16.xpose.msra.mxu0 0
    %606 = vmatpush.bf16.xpose.msra.mxu0 0
    %607 = vmatpush.bf16.xpose.msra.mxu0 0
    %608 = vmatpush.bf16.xpose.msra.mxu0 0
    %609 = vmatpush.bf16.xpose.msra.mxu0 %v600
    %610 = vmatmul.bf16.gmra.mxu0 %v597
    %v611 = vpop.f32.mrf.mxu0
    %v612 = vadd.f32 0.0, %v611
    %v613 = vpop.f32.mrf.mxu0
    %v614 = vadd.f32 0.0, %v613
    %615 = vdwg.mxu0
    %v616 = vmul.f32 %v612, 0.25
    %v617 = vmul.f32 %v614, 0.25
    %v618 = vadd.f32 %v616, %v200
    %v619 = vadd.f32 %v617, %v201
    %v620 = vsel %vm452, %v618, -inf
    %621 = vmax.xlane.f32.xlu0 %v620
    %v622 = vpop.xlane.xlu0 %621
    %v623 = vsel %vm452, %v619, -inf
    %624 = vmax.xlane.f32.xlu0 %v623
    %v625 = vpop.xlane.xlu0 %624
    %v626 = vsub.f32 %v618, %v622
    %v627 = vsub.f32 %v619, %v625
    %v628 = vmul.f32 %v626, 1.442695
    %v629 = vpow.pop %v628
    %v630 = vmul.f32 %v627, 1.442695
    %v631 = vpow.pop %v630
    %v632 = vsel %vm452, %v629, 0.0
    %633 = vadd.xlane.f32.xlu0 %v632
    %v634 = vpop.xlane.xlu0 %633
    %v635 = vsel %vm452, %v631, 0.0
    %636 = vadd.xlane.f32.xlu0 %v635
    %v637 = vpop.xlane.xlu0 %636
    %v638 = vrcp.pop %v634
    %v639 = vrcp.pop %v637
    %v640 = vmul.f32 %v629, %v638
    %v641 = vmul.f32 %v631, %v639
    %v642 = vpack.c.bf16 %v641, %v640
    %643 = vrot.lane.b32.xlu0 %v502, 96
    %v644 = vpop.permute.xlu0 %643
    %v647 = vsel %vm452, %v642, 0
    %649 = vmatpush.bf16.msra.mxu0 0
    %650 = vmatpush.bf16.msra.mxu0 0
    %651 = vmatpush.bf16.msra.mxu0 0
    %652 = vmatpush.bf16.msra.mxu0 0
    %653 = vmatpush.bf16.msra.mxu0 0
    %654 = vmatpush.bf16.msra.mxu0 0
    %655 = vmatpush.bf16.msra.mxu0 0
    %656 = vmatpush.bf16.msra.mxu0 %v644
    %657 = vmatmul.bf16.gmra.mxu0 %v647
    %v658 = vpop.f32.mrf.mxu0
    %v659 = vadd.f32 0.0, %v658
    %v660 = vpop.f32.mrf.mxu0
    %v661 = vadd.f32 0.0, %v660
    %662 = vdwg.mxu0
    %663 = vrot.lane.b32.xlu0 %v449, 80
    %v664 = vpop.permute.xlu0 %663
    %665 = vrot.lane.b32.xlu0 %v449, 16
    %v666 = vpop.permute.xlu0 %665
    %v668 = vsel %vm452, %v664, 0
    %v671 = vsel %vm452, %v666, 0
    %673 = vmatpush.bf16.xpose.msra.mxu0 0
    %674 = vmatpush.bf16.xpose.msra.mxu0 0
    %675 = vmatpush.bf16.xpose.msra.mxu0 0
    %676 = vmatpush.bf16.xpose.msra.mxu0 0
    %677 = vmatpush.bf16.xpose.msra.mxu0 0
    %678 = vmatpush.bf16.xpose.msra.mxu0 0
    %679 = vmatpush.bf16.xpose.msra.mxu0 0
    %680 = vmatpush.bf16.xpose.msra.mxu0 %v671
    %681 = vmatmul.bf16.gmra.mxu0 %v668
    %v682 = vpop.f32.mrf.mxu0
    %v683 = vadd.f32 0.0, %v682
    %v684 = vpop.f32.mrf.mxu0
    %v685 = vadd.f32 0.0, %v684
    %686 = vdwg.mxu0
    %v687 = vmul.f32 %v683, 0.25
    %v688 = vmul.f32 %v685, 0.25
    %v689 = vadd.f32 %v687, %v200
    %v690 = vadd.f32 %v688, %v201
    %v691 = vsel %vm452, %v689, -inf
    %692 = vmax.xlane.f32.xlu0 %v691
    %v693 = vpop.xlane.xlu0 %692
    %v694 = vsel %vm452, %v690, -inf
    %695 = vmax.xlane.f32.xlu0 %v694
    %v696 = vpop.xlane.xlu0 %695
    %v697 = vsub.f32 %v689, %v693
    %v698 = vsub.f32 %v690, %v696
    %v699 = vmul.f32 %v697, 1.442695
    %v700 = vpow.pop %v699
    %v701 = vmul.f32 %v698, 1.442695
    %v702 = vpow.pop %v701
    %v703 = vsel %vm452, %v700, 0.0
    %704 = vadd.xlane.f32.xlu0 %v703
    %v705 = vpop.xlane.xlu0 %704
    %v706 = vsel %vm452, %v702, 0.0
    %707 = vadd.xlane.f32.xlu0 %v706
    %v708 = vpop.xlane.xlu0 %707
    %v709 = vrcp.pop %v705
    %v710 = vrcp.pop %v708
    %v711 = vmul.f32 %v700, %v709
    %v712 = vmul.f32 %v702, %v710
    %v713 = vpack.c.bf16 %v712, %v711
    %714 = vrot.lane.b32.xlu0 %v502, 80
    %v715 = vpop.permute.xlu0 %714
    %v718 = vsel %vm452, %v713, 0
    %720 = vmatpush.bf16.msra.mxu0 0
    %721 = vmatpush.bf16.msra.mxu0 0
    %722 = vmatpush.bf16.msra.mxu0 0
    %723 = vmatpush.bf16.msra.mxu0 0
    %724 = vmatpush.bf16.msra.mxu0 0
    %725 = vmatpush.bf16.msra.mxu0 0
    %726 = vmatpush.bf16.msra.mxu0 0
    %727 = vmatpush.bf16.msra.mxu0 %v715
    %728 = vmatmul.bf16.gmra.mxu0 %v718
    %v729 = vpop.f32.mrf.mxu0
    %v730 = vadd.f32 0.0, %v729
    %v731 = vpop.f32.mrf.mxu0
    %v732 = vadd.f32 0.0, %v731
    %733 = vdwg.mxu0
    %736 = vrot.lane.b32.xlu0 %v588, 16
    %v737 = vpop.permute.xlu0 %736
    %738 = vrot.lane.b32.xlu0 %v590, 16
    %v739 = vpop.permute.xlu0 %738
    %744 = vrot.lane.b32.xlu0 %v659, 32
    %v745 = vpop.permute.xlu0 %744
    %746 = vrot.lane.b32.xlu0 %v661, 32
    %v747 = vpop.permute.xlu0 %746
    %752 = vrot.lane.b32.xlu0 %v730, 48
    %v753 = vpop.permute.xlu0 %752
    %754 = vrot.lane.b32.xlu0 %v732, 48
    %v755 = vpop.permute.xlu0 %754
    %v758 = vsel %vm452, %v517, %v737
    %v759 = vsel %vm452, %v519, %v739
    %vm760 = vcmask 261120
    %v761 = vsel %vm760, %v758, %v745
    %v762 = vsel %vm760, %v759, %v747
    %vm763 = vcmask 392192
    %v764 = vsel %vm763, %v761, %v753
    %v765 = vsel %vm763, %v762, %v755
    %v768 = vunpack.c.l.b16 %v443
    %v769 = vunpack.c.l.b16 %v444
    %v770 = vpack.c.b16 %v769, %v768
    %771 = vrot.lane.b32.xlu0 %v770, 64
    %v772 = vpop.permute.xlu0 %771
    %v774 = vsel %vm452, %v770, 0
    %v777 = vsel %vm452, %v772, 0
    %779 = vmatpush.bf16.xpose.msra.mxu0 0
    %780 = vmatpush.bf16.xpose.msra.mxu0 0
    %781 = vmatpush.bf16.xpose.msra.mxu0 0
    %782 = vmatpush.bf16.xpose.msra.mxu0 0
    %783 = vmatpush.bf16.xpose.msra.mxu0 0
    %784 = vmatpush.bf16.xpose.msra.mxu0 0
    %785 = vmatpush.bf16.xpose.msra.mxu0 0
    %786 = vmatpush.bf16.xpose.msra.mxu0 %v777
    %787 = vmatmul.bf16.gmra.mxu0 %v774
    %v788 = vpop.f32.mrf.mxu0
    %v789 = vadd.f32 0.0, %v788
    %v790 = vpop.f32.mrf.mxu0
    %v791 = vadd.f32 0.0, %v790
    %792 = vdwg.mxu0
    %v793 = vmul.f32 %v789, 0.25
    %v794 = vmul.f32 %v791, 0.25
    %v795 = vadd.f32 %v793, %v207
    %v796 = vadd.f32 %v794, %v208
    %v797 = vsel %vm452, %v795, -inf
    %798 = vmax.xlane.f32.xlu0 %v797
    %v799 = vpop.xlane.xlu0 %798
    %v800 = vsel %vm452, %v796, -inf
    %801 = vmax.xlane.f32.xlu0 %v800
    %v802 = vpop.xlane.xlu0 %801
    %v803 = vsub.f32 %v795, %v799
    %v804 = vsub.f32 %v796, %v802
    %v805 = vmul.f32 %v803, 1.442695
    %v806 = vpow.pop %v805
    %v807 = vmul.f32 %v804, 1.442695
    %v808 = vpow.pop %v807
    %v809 = vsel %vm452, %v806, 0.0
    %810 = vadd.xlane.f32.xlu0 %v809
    %v811 = vpop.xlane.xlu0 %810
    %v812 = vsel %vm452, %v808, 0.0
    %813 = vadd.xlane.f32.xlu0 %v812
    %v814 = vpop.xlane.xlu0 %813
    %v815 = vrcp.pop %v811
    %v816 = vrcp.pop %v814
    %v817 = vmul.f32 %v806, %v815
    %v818 = vmul.f32 %v808, %v816
    %v819 = vpack.c.bf16 %v818, %v817
    %v820 = vunpack.c.h.b16 %v443
    %v821 = vunpack.c.h.b16 %v444
    %v822 = vpack.c.b16 %v821, %v820
    %v825 = vsel %vm452, %v819, 0
    %827 = vmatpush.bf16.msra.mxu0 0
    %828 = vmatpush.bf16.msra.mxu0 0
    %829 = vmatpush.bf16.msra.mxu0 0
    %830 = vmatpush.bf16.msra.mxu0 0
    %831 = vmatpush.bf16.msra.mxu0 0
    %832 = vmatpush.bf16.msra.mxu0 0
    %833 = vmatpush.bf16.msra.mxu0 0
    %834 = vmatpush.bf16.msra.mxu0 %v822
    %835 = vmatmul.bf16.gmra.mxu0 %v825
    %v836 = vpop.f32.mrf.mxu0
    %v837 = vadd.f32 0.0, %v836
    %v838 = vpop.f32.mrf.mxu0
    %v839 = vadd.f32 0.0, %v838
    %840 = vdwg.mxu0
    %841 = vrot.lane.b32.xlu0 %v770, 112
    %v842 = vpop.permute.xlu0 %841
    %843 = vrot.lane.b32.xlu0 %v770, 48
    %v844 = vpop.permute.xlu0 %843
    %v846 = vsel %vm452, %v842, 0
    %v849 = vsel %vm452, %v844, 0
    %851 = vmatpush.bf16.xpose.msra.mxu0 0
    %852 = vmatpush.bf16.xpose.msra.mxu0 0
    %853 = vmatpush.bf16.xpose.msra.mxu0 0
    %854 = vmatpush.bf16.xpose.msra.mxu0 0
    %855 = vmatpush.bf16.xpose.msra.mxu0 0
    %856 = vmatpush.bf16.xpose.msra.mxu0 0
    %857 = vmatpush.bf16.xpose.msra.mxu0 0
    %858 = vmatpush.bf16.xpose.msra.mxu0 %v849
    %859 = vmatmul.bf16.gmra.mxu0 %v846
    %v860 = vpop.f32.mrf.mxu0
    %v861 = vadd.f32 0.0, %v860
    %v862 = vpop.f32.mrf.mxu0
    %v863 = vadd.f32 0.0, %v862
    %864 = vdwg.mxu0
    %v865 = vmul.f32 %v861, 0.25
    %v866 = vmul.f32 %v863, 0.25
    %v867 = vadd.f32 %v865, %v207
    %v868 = vadd.f32 %v866, %v208
    %v869 = vsel %vm452, %v867, -inf
    %870 = vmax.xlane.f32.xlu0 %v869
    %v871 = vpop.xlane.xlu0 %870
    %v872 = vsel %vm452, %v868, -inf
    %873 = vmax.xlane.f32.xlu0 %v872
    %v874 = vpop.xlane.xlu0 %873
    %v875 = vsub.f32 %v867, %v871
    %v876 = vsub.f32 %v868, %v874
    %v877 = vmul.f32 %v875, 1.442695
    %v878 = vpow.pop %v877
    %v879 = vmul.f32 %v876, 1.442695
    %v880 = vpow.pop %v879
    %v881 = vsel %vm452, %v878, 0.0
    %882 = vadd.xlane.f32.xlu0 %v881
    %v883 = vpop.xlane.xlu0 %882
    %v884 = vsel %vm452, %v880, 0.0
    %885 = vadd.xlane.f32.xlu0 %v884
    %v886 = vpop.xlane.xlu0 %885
    %v887 = vrcp.pop %v883
    %v888 = vrcp.pop %v886
    %v889 = vmul.f32 %v878, %v887
    %v890 = vmul.f32 %v880, %v888
    %v891 = vpack.c.bf16 %v890, %v889
    %892 = vrot.lane.b32.xlu0 %v822, 112
    %v893 = vpop.permute.xlu0 %892
    %v896 = vsel %vm452, %v891, 0
    %898 = vmatpush.bf16.msra.mxu0 0
    %899 = vmatpush.bf16.msra.mxu0 0
    %900 = vmatpush.bf16.msra.mxu0 0
    %901 = vmatpush.bf16.msra.mxu0 0
    %902 = vmatpush.bf16.msra.mxu0 0
    %903 = vmatpush.bf16.msra.mxu0 0
    %904 = vmatpush.bf16.msra.mxu0 0
    %905 = vmatpush.bf16.msra.mxu0 %v893
    %906 = vmatmul.bf16.gmra.mxu0 %v896
    %v907 = vpop.f32.mrf.mxu0
    %v908 = vadd.f32 0.0, %v907
    %v909 = vpop.f32.mrf.mxu0
    %v910 = vadd.f32 0.0, %v909
    %911 = vdwg.mxu0
    %912 = vrot.lane.b32.xlu0 %v770, 96
    %v913 = vpop.permute.xlu0 %912
    %914 = vrot.lane.b32.xlu0 %v770, 32
    %v915 = vpop.permute.xlu0 %914
    %v917 = vsel %vm452, %v913, 0
    %v920 = vsel %vm452, %v915, 0
    %922 = vmatpush.bf16.xpose.msra.mxu0 0
    %923 = vmatpush.bf16.xpose.msra.mxu0 0
    %924 = vmatpush.bf16.xpose.msra.mxu0 0
    %925 = vmatpush.bf16.xpose.msra.mxu0 0
    %926 = vmatpush.bf16.xpose.msra.mxu0 0
    %927 = vmatpush.bf16.xpose.msra.mxu0 0
    %928 = vmatpush.bf16.xpose.msra.mxu0 0
    %929 = vmatpush.bf16.xpose.msra.mxu0 %v920
    %930 = vmatmul.bf16.gmra.mxu0 %v917
    %v931 = vpop.f32.mrf.mxu0
    %v932 = vadd.f32 0.0, %v931
    %v933 = vpop.f32.mrf.mxu0
    %v934 = vadd.f32 0.0, %v933
    %935 = vdwg.mxu0
    %v936 = vmul.f32 %v932, 0.25
    %v937 = vmul.f32 %v934, 0.25
    %v938 = vadd.f32 %v936, %v207
    %v939 = vadd.f32 %v937, %v208
    %v940 = vsel %vm452, %v938, -inf
    %941 = vmax.xlane.f32.xlu0 %v940
    %v942 = vpop.xlane.xlu0 %941
    %v943 = vsel %vm452, %v939, -inf
    %944 = vmax.xlane.f32.xlu0 %v943
    %v945 = vpop.xlane.xlu0 %944
    %v946 = vsub.f32 %v938, %v942
    %v947 = vsub.f32 %v939, %v945
    %v948 = vmul.f32 %v946, 1.442695
    %v949 = vpow.pop %v948
    %v950 = vmul.f32 %v947, 1.442695
    %v951 = vpow.pop %v950
    %v952 = vsel %vm452, %v949, 0.0
    %953 = vadd.xlane.f32.xlu0 %v952
    %v954 = vpop.xlane.xlu0 %953
    %v955 = vsel %vm452, %v951, 0.0
    %956 = vadd.xlane.f32.xlu0 %v955
    %v957 = vpop.xlane.xlu0 %956
    %v958 = vrcp.pop %v954
    %v959 = vrcp.pop %v957
    %v960 = vmul.f32 %v949, %v958
    %v961 = vmul.f32 %v951, %v959
    %v962 = vpack.c.bf16 %v961, %v960
    %963 = vrot.lane.b32.xlu0 %v822, 96
    %v964 = vpop.permute.xlu0 %963
    %v967 = vsel %vm452, %v962, 0
    %969 = vmatpush.bf16.msra.mxu0 0
    %970 = vmatpush.bf16.msra.mxu0 0
    %971 = vmatpush.bf16.msra.mxu0 0
    %972 = vmatpush.bf16.msra.mxu0 0
    %973 = vmatpush.bf16.msra.mxu0 0
    %974 = vmatpush.bf16.msra.mxu0 0
    %975 = vmatpush.bf16.msra.mxu0 0
    %976 = vmatpush.bf16.msra.mxu0 %v964
    %977 = vmatmul.bf16.gmra.mxu0 %v967
    %v978 = vpop.f32.mrf.mxu0
    %v979 = vadd.f32 0.0, %v978
    %v980 = vpop.f32.mrf.mxu0
    %v981 = vadd.f32 0.0, %v980
    %982 = vdwg.mxu0
    %983 = vrot.lane.b32.xlu0 %v770, 80
    %v984 = vpop.permute.xlu0 %983
    %985 = vrot.lane.b32.xlu0 %v770, 16
    %v986 = vpop.permute.xlu0 %985
    %v988 = vsel %vm452, %v984, 0
    %v991 = vsel %vm452, %v986, 0
    %993 = vmatpush.bf16.xpose.msra.mxu0 0
    %994 = vmatpush.bf16.xpose.msra.mxu0 0
    %995 = vmatpush.bf16.xpose.msra.mxu0 0
    %996 = vmatpush.bf16.xpose.msra.mxu0 0
    %997 = vmatpush.bf16.xpose.msra.mxu0 0
    %998 = vmatpush.bf16.xpose.msra.mxu0 0
    %999 = vmatpush.bf16.xpose.msra.mxu0 0
    %1000 = vmatpush.bf16.xpose.msra.mxu0 %v991
    %1001 = vmatmul.bf16.gmra.mxu0 %v988
    %v1002 = vpop.f32.mrf.mxu0
    %v1003 = vadd.f32 0.0, %v1002
    %v1004 = vpop.f32.mrf.mxu0
    %v1005 = vadd.f32 0.0, %v1004
    %1006 = vdwg.mxu0
    %v1007 = vmul.f32 %v1003, 0.25
    %v1008 = vmul.f32 %v1005, 0.25
    %v1009 = vadd.f32 %v1007, %v207
    %v1010 = vadd.f32 %v1008, %v208
    %v1011 = vsel %vm452, %v1009, -inf
    %1012 = vmax.xlane.f32.xlu0 %v1011
    %v1013 = vpop.xlane.xlu0 %1012
    %v1014 = vsel %vm452, %v1010, -inf
    %1015 = vmax.xlane.f32.xlu0 %v1014
    %v1016 = vpop.xlane.xlu0 %1015
    %v1017 = vsub.f32 %v1009, %v1013
    %v1018 = vsub.f32 %v1010, %v1016
    %v1019 = vmul.f32 %v1017, 1.442695
    %v1020 = vpow.pop %v1019
    %v1021 = vmul.f32 %v1018, 1.442695
    %v1022 = vpow.pop %v1021
    %v1023 = vsel %vm452, %v1020, 0.0
    %1024 = vadd.xlane.f32.xlu0 %v1023
    %v1025 = vpop.xlane.xlu0 %1024
    %v1026 = vsel %vm452, %v1022, 0.0
    %1027 = vadd.xlane.f32.xlu0 %v1026
    %v1028 = vpop.xlane.xlu0 %1027
    %v1029 = vrcp.pop %v1025
    %v1030 = vrcp.pop %v1028
    %v1031 = vmul.f32 %v1020, %v1029
    %v1032 = vmul.f32 %v1022, %v1030
    %v1033 = vpack.c.bf16 %v1032, %v1031
    %1034 = vrot.lane.b32.xlu0 %v822, 80
    %v1035 = vpop.permute.xlu0 %1034
    %v1038 = vsel %vm452, %v1033, 0
    %1040 = vmatpush.bf16.msra.mxu0 0
    %1041 = vmatpush.bf16.msra.mxu0 0
    %1042 = vmatpush.bf16.msra.mxu0 0
    %1043 = vmatpush.bf16.msra.mxu0 0
    %1044 = vmatpush.bf16.msra.mxu0 0
    %1045 = vmatpush.bf16.msra.mxu0 0
    %1046 = vmatpush.bf16.msra.mxu0 0
    %1047 = vmatpush.bf16.msra.mxu0 %v1035
    %1048 = vmatmul.bf16.gmra.mxu0 %v1038
    %v1049 = vpop.f32.mrf.mxu0
    %v1050 = vadd.f32 0.0, %v1049
    %v1051 = vpop.f32.mrf.mxu0
    %v1052 = vadd.f32 0.0, %v1051
    %1053 = vdwg.mxu0
    %1056 = vrot.lane.b32.xlu0 %v908, 16
    %v1057 = vpop.permute.xlu0 %1056
    %1058 = vrot.lane.b32.xlu0 %v910, 16
    %v1059 = vpop.permute.xlu0 %1058
    %1064 = vrot.lane.b32.xlu0 %v979, 32
    %v1065 = vpop.permute.xlu0 %1064
    %1066 = vrot.lane.b32.xlu0 %v981, 32
    %v1067 = vpop.permute.xlu0 %1066
    %1072 = vrot.lane.b32.xlu0 %v1050, 48
    %v1073 = vpop.permute.xlu0 %1072
    %1074 = vrot.lane.b32.xlu0 %v1052, 48
    %v1075 = vpop.permute.xlu0 %1074
    %v1078 = vsel %vm452, %v837, %v1057
    %v1079 = vsel %vm452, %v839, %v1059
    %v1080 = vsel %vm760, %v1078, %v1065
    %v1081 = vsel %vm760, %v1079, %v1067
    %v1082 = vsel %vm763, %v1080, %v1073
    %v1083 = vsel %vm763, %v1081, %v1075
    %v1084 = vpack.c.bf16 %v765, %v764
    %v1085 = vpack.c.bf16 %v1083, %v1082
    %v1086 = vperm.slane %v226, 5
    %v1095 = vunpack.c.l.b16 %v218
    %v1096 = vunpack.c.l.b16 %v219
    %v1097 = vunpack.c.l.b16 %v220
    %v1098 = vunpack.c.l.b16 %v221
    %v1099 = vunpack.c.l.b16 %v222
    %v1100 = vunpack.c.l.b16 %v223
    %v1101 = vunpack.c.l.b16 %v224
    %v1102 = vunpack.c.l.b16 %v225
    %v1103 = vpack.c.b16 %v1096, %v1095
    %v1104 = vpack.c.b16 %v1098, %v1097
    %v1105 = vpack.c.b16 %v1100, %v1099
    %v1106 = vpack.c.b16 %v1102, %v1101
    %v1112 = vsel %vm244, %v1084, 0
    %v1115 = vsel %vm244, %v1085, 0
    %1117 = vmatpush.bf16.msra.mxu0 0
    %1118 = vmatpush.bf16.msra.mxu0 0
    %1119 = vmatpush.bf16.msra.mxu0 0
    %1120 = vmatpush.bf16.msra.mxu0 0
    %1121 = vmatpush.bf16.msra.mxu0 %v1106
    %1122 = vmatpush.bf16.msra.mxu0 %v1105
    %1123 = vmatpush.bf16.msra.mxu0 %v1104
    %1124 = vmatpush.bf16.msra.mxu0 %v1103
    %1125 = vmatmul.bf16.gmra.mxu0 %v1112
    %v1126 = vpop.f32.mrf.mxu0
    %v1127 = vadd.f32 %v1086, %v1126
    %v1128 = vpop.f32.mrf.mxu0
    %v1129 = vadd.f32 %v1086, %v1128
    %1130 = vmatmul.bf16.gmra.mxu0 %v1115
    %v1131 = vpop.f32.mrf.mxu0
    %v1132 = vadd.f32 %v1086, %v1131
    %v1133 = vpop.f32.mrf.mxu0
    %v1134 = vadd.f32 %v1086, %v1133
    %1135 = vdwg.mxu0
    %v1136 = vadd.f32 %v183, %v1127
    %v1137 = vadd.f32 %v184, %v1129
    %v1138 = vadd.f32 %v185, %v1132
    %v1139 = vadd.f32 %v186, %v1134
    %v1140 = vsel %vm244, %v1136, 0.0
    %1141 = vadd.xlane.f32.xlu0 %v1140
    %v1142 = vpop.xlane.xlu0 %1141
    %v1143 = vsel %vm244, %v1137, 0.0
    %1144 = vadd.xlane.f32.xlu0 %v1143
    %v1145 = vpop.xlane.xlu0 %1144
    %v1146 = vsel %vm244, %v1138, 0.0
    %1147 = vadd.xlane.f32.xlu0 %v1146
    %v1148 = vpop.xlane.xlu0 %1147
    %v1149 = vsel %vm244, %v1139, 0.0
    %1150 = vadd.xlane.f32.xlu0 %v1149
    %v1151 = vpop.xlane.xlu0 %1150
    %v1152 = vmul.f32 %v1142, %v263
    %v1153 = vmul.f32 %v1145, %v263
    %v1154 = vmul.f32 %v1148, %v263
    %v1155 = vmul.f32 %v1151, %v263
    %v1156 = vsub.f32 %v1136, %v1152
    %v1157 = vsub.f32 %v1137, %v1153
    %v1158 = vsub.f32 %v1138, %v1154
    %v1159 = vsub.f32 %v1139, %v1155
    %v1160 = vmul.f32 %v1156, %v1156
    %v1161 = vmul.f32 %v1157, %v1157
    %v1162 = vmul.f32 %v1158, %v1158
    %v1163 = vmul.f32 %v1159, %v1159
    %v1164 = vsel %vm244, %v1160, 0.0
    %1165 = vadd.xlane.f32.xlu0 %v1164
    %v1166 = vpop.xlane.xlu0 %1165
    %v1167 = vsel %vm244, %v1161, 0.0
    %1168 = vadd.xlane.f32.xlu0 %v1167
    %v1169 = vpop.xlane.xlu0 %1168
    %v1170 = vsel %vm244, %v1162, 0.0
    %1171 = vadd.xlane.f32.xlu0 %v1170
    %v1172 = vpop.xlane.xlu0 %1171
    %v1173 = vsel %vm244, %v1163, 0.0
    %1174 = vadd.xlane.f32.xlu0 %v1173
    %v1175 = vpop.xlane.xlu0 %1174
    %v1176 = vmul.f32 %v1166, %v263
    %v1177 = vmul.f32 %v1169, %v263
    %v1178 = vmul.f32 %v1172, %v263
    %v1179 = vmul.f32 %v1175, %v263
    %v1180 = vadd.f32 %v1176, 1e-05
    %v1181 = vadd.f32 %v1177, 1e-05
    %v1182 = vadd.f32 %v1178, 1e-05
    %v1183 = vadd.f32 %v1179, 1e-05
    %v1184 = vrsqrt.pop %v1180
    %v1185 = vmul.f32 %v1184, %v1180
    %v1186 = vmul.f32 %v1185, %v1184
    %v1187 = vmul.f32 0.5, %v1186
    %v1188 = vsub.f32 1.5, %v1187
    %v1189 = vmul.f32 %v1184, %v1188
    %vm1190 = vweird.f32 %v1180
    %vm1191 = vweird.f32 %v1184
    %vm1192 = vmor %vm1190, %vm1191
    %v1193 = vsel %vm1192, %v1184, %v1189
    %v1194 = vrsqrt.pop %v1181
    %v1195 = vmul.f32 %v1194, %v1181
    %v1196 = vmul.f32 %v1195, %v1194
    %v1197 = vmul.f32 0.5, %v1196
    %v1198 = vsub.f32 1.5, %v1197
    %v1199 = vmul.f32 %v1194, %v1198
    %vm1200 = vweird.f32 %v1181
    %vm1201 = vweird.f32 %v1194
    %vm1202 = vmor %vm1200, %vm1201
    %v1203 = vsel %vm1202, %v1194, %v1199
    %v1204 = vrsqrt.pop %v1182
    %v1205 = vmul.f32 %v1204, %v1182
    %v1206 = vmul.f32 %v1205, %v1204
    %v1207 = vmul.f32 0.5, %v1206
    %v1208 = vsub.f32 1.5, %v1207
    %v1209 = vmul.f32 %v1204, %v1208
    %vm1210 = vweird.f32 %v1182
    %vm1211 = vweird.f32 %v1204
    %vm1212 = vmor %vm1210, %vm1211
    %v1213 = vsel %vm1212, %v1204, %v1209
    %v1214 = vrsqrt.pop %v1183
    %v1215 = vmul.f32 %v1214, %v1183
    %v1216 = vmul.f32 %v1215, %v1214
    %v1217 = vmul.f32 0.5, %v1216
    %v1218 = vsub.f32 1.5, %v1217
    %v1219 = vmul.f32 %v1214, %v1218
    %vm1220 = vweird.f32 %v1183
    %vm1221 = vweird.f32 %v1214
    %vm1222 = vmor %vm1220, %vm1221
    %v1223 = vsel %vm1222, %v1214, %v1219
    %v1224 = vmul.f32 %v1156, %v1193
    %v1225 = vmul.f32 %v1157, %v1203
    %v1226 = vmul.f32 %v1158, %v1213
    %v1227 = vmul.f32 %v1159, %v1223
    %v1228 = vperm.slane %v226, 2
    %v1229 = vmul.f32 %v1224, %v1228
    %v1230 = vmul.f32 %v1225, %v1228
    %v1231 = vmul.f32 %v1226, %v1228
    %v1232 = vmul.f32 %v1227, %v1228
    %v1233 = vperm.slane %v226, 3
    %v1234 = vadd.f32 %v1229, %v1233
    %v1235 = vadd.f32 %v1230, %v1233
    %v1236 = vadd.f32 %v1231, %v1233
    %v1237 = vadd.f32 %v1232, %v1233
    %v1238 = vpack.c.bf16 %v1235, %v1234
    %v1239 = vpack.c.bf16 %v1237, %v1236
    %v1241 = vperm.slane %v235, 0
    %v1242 = vperm.slane %v235, 1
    %v1253 = vunpack.c.l.b16 %v227
    %v1254 = vunpack.c.h.b16 %v227
    %v1255 = vunpack.c.l.b16 %v228
    %v1256 = vunpack.c.h.b16 %v228
    %v1257 = vunpack.c.l.b16 %v229
    %v1258 = vunpack.c.h.b16 %v229
    %v1259 = vunpack.c.l.b16 %v230
    %v1260 = vunpack.c.h.b16 %v230
    %v1261 = vunpack.c.l.b16 %v231
    %v1262 = vunpack.c.h.b16 %v231
    %v1263 = vunpack.c.l.b16 %v232
    %v1264 = vunpack.c.h.b16 %v232
    %v1265 = vunpack.c.l.b16 %v233
    %v1266 = vunpack.c.h.b16 %v233
    %v1267 = vunpack.c.l.b16 %v234
    %v1268 = vunpack.c.h.b16 %v234
    %v1269 = vpack.c.b16 %v1255, %v1253
    %v1270 = vpack.c.b16 %v1256, %v1254
    %v1271 = vpack.c.b16 %v1259, %v1257
    %v1272 = vpack.c.b16 %v1260, %v1258
    %v1273 = vpack.c.b16 %v1263, %v1261
    %v1274 = vpack.c.b16 %v1264, %v1262
    %v1275 = vpack.c.b16 %v1267, %v1265
    %v1276 = vpack.c.b16 %v1268, %v1266
    %v1286 = vsel %vm244, %v1238, 0
    %v1289 = vsel %vm244, %v1239, 0
    %1291 = vmatpush.bf16.msra.mxu0 0
    %1292 = vmatpush.bf16.msra.mxu0 0
    %1293 = vmatpush.bf16.msra.mxu0 0
    %1294 = vmatpush.bf16.msra.mxu0 0
    %1295 = vmatpush.bf16.msra.mxu0 %v1275
    %1296 = vmatpush.bf16.msra.mxu0 %v1273
    %1297 = vmatpush.bf16.msra.mxu0 %v1271
    %1298 = vmatpush.bf16.msra.mxu0 %v1269
    %1299 = vmatmul.bf16.gmra.mxu0 %v1286
    %v1300 = vpop.f32.mrf.mxu0
    %v1301 = vadd.f32 %v1241, %v1300
    %v1302 = vpop.f32.mrf.mxu0
    %v1303 = vadd.f32 %v1241, %v1302
    %1304 = vmatmul.bf16.gmra.mxu0 %v1289
    %v1305 = vpop.f32.mrf.mxu0
    %v1306 = vadd.f32 %v1241, %v1305
    %v1307 = vpop.f32.mrf.mxu0
    %v1308 = vadd.f32 %v1241, %v1307
    %1309 = vdwg.mxu0
    %1310 = vmatpush.bf16.msra.mxu0 0
    %1311 = vmatpush.bf16.msra.mxu0 0
    %1312 = vmatpush.bf16.msra.mxu0 0
    %1313 = vmatpush.bf16.msra.mxu0 0
    %1314 = vmatpush.bf16.msra.mxu0 %v1276
    %1315 = vmatpush.bf16.msra.mxu0 %v1274
    %1316 = vmatpush.bf16.msra.mxu0 %v1272
    %1317 = vmatpush.bf16.msra.mxu0 %v1270
    %1318 = vmatmul.bf16.gmra.mxu0 %v1286
    %v1319 = vpop.f32.mrf.mxu0
    %v1320 = vadd.f32 %v1242, %v1319
    %v1321 = vpop.f32.mrf.mxu0
    %v1322 = vadd.f32 %v1242, %v1321
    %1323 = vmatmul.bf16.gmra.mxu0 %v1289
    %v1324 = vpop.f32.mrf.mxu0
    %v1325 = vadd.f32 %v1242, %v1324
    %v1326 = vpop.f32.mrf.mxu0
    %v1327 = vadd.f32 %v1242, %v1326
    %1328 = vdwg.mxu0
    %v1329 = vmul.f32 %v1301, %v1301
    %v1330 = vmul.f32 %v1320, %v1320
    %v1331 = vmul.f32 %v1303, %v1303
    %v1332 = vmul.f32 %v1322, %v1322
    %v1333 = vmul.f32 %v1306, %v1306
    %v1334 = vmul.f32 %v1325, %v1325
    %v1335 = vmul.f32 %v1308, %v1308
    %v1336 = vmul.f32 %v1327, %v1327
    %v1337 = vmul.f32 %v1301, %v1329
    %v1338 = vmul.f32 %v1320, %v1330
    %v1339 = vmul.f32 %v1303, %v1331
    %v1340 = vmul.f32 %v1322, %v1332
    %v1341 = vmul.f32 %v1306, %v1333
    %v1342 = vmul.f32 %v1325, %v1334
    %v1343 = vmul.f32 %v1308, %v1335
    %v1344 = vmul.f32 %v1327, %v1336
    %v1345 = vmul.f32 %v1337, 0.044715
    %v1346 = vmul.f32 %v1338, 0.044715
    %v1347 = vmul.f32 %v1339, 0.044715
    %v1348 = vmul.f32 %v1340, 0.044715
    %v1349 = vmul.f32 %v1341, 0.044715
    %v1350 = vmul.f32 %v1342, 0.044715
    %v1351 = vmul.f32 %v1343, 0.044715
    %v1352 = vmul.f32 %v1344, 0.044715
    %v1353 = vadd.f32 %v1301, %v1345
    %v1354 = vadd.f32 %v1320, %v1346
    %v1355 = vadd.f32 %v1303, %v1347
    %v1356 = vadd.f32 %v1322, %v1348
    %v1357 = vadd.f32 %v1306, %v1349
    %v1358 = vadd.f32 %v1325, %v1350
    %v1359 = vadd.f32 %v1308, %v1351
    %v1360 = vadd.f32 %v1327, %v1352
    %v1361 = vmul.f32 %v1353, 0.7978846
    %v1362 = vmul.f32 %v1354, 0.7978846
    %v1363 = vmul.f32 %v1355, 0.7978846
    %v1364 = vmul.f32 %v1356, 0.7978846
    %v1365 = vmul.f32 %v1357, 0.7978846
    %v1366 = vmul.f32 %v1358, 0.7978846
    %v1367 = vmul.f32 %v1359, 0.7978846
    %v1368 = vmul.f32 %v1360, 0.7978846
    %v1369 = vtanh.pop %v1361
    %v1370 = vtanh.pop %v1362
    %v1371 = vtanh.pop %v1363
    %v1372 = vtanh.pop %v1364
    %v1373 = vtanh.pop %v1365
    %v1374 = vtanh.pop %v1366
    %v1375 = vtanh.pop %v1367
    %v1376 = vtanh.pop %v1368
    %v1377 = vadd.f32 %v1369, 1.0
    %v1378 = vadd.f32 %v1370, 1.0
    %v1379 = vadd.f32 %v1371, 1.0
    %v1380 = vadd.f32 %v1372, 1.0
    %v1381 = vadd.f32 %v1373, 1.0
    %v1382 = vadd.f32 %v1374, 1.0
    %v1383 = vadd.f32 %v1375, 1.0
    %v1384 = vadd.f32 %v1376, 1.0
    %v1385 = vmul.f32 %v1377, 0.5
    %v1386 = vmul.f32 %v1378, 0.5
    %v1387 = vmul.f32 %v1379, 0.5
    %v1388 = vmul.f32 %v1380, 0.5
    %v1389 = vmul.f32 %v1381, 0.5
    %v1390 = vmul.f32 %v1382, 0.5
    %v1391 = vmul.f32 %v1383, 0.5
    %v1392 = vmul.f32 %v1384, 0.5
    %v1393 = vmul.f32 %v1301, %v1385
    %v1394 = vmul.f32 %v1320, %v1386
    %v1395 = vmul.f32 %v1303, %v1387
    %v1396 = vmul.f32 %v1322, %v1388
    %v1397 = vmul.f32 %v1306, %v1389
    %v1398 = vmul.f32 %v1325, %v1390
    %v1399 = vmul.f32 %v1308, %v1391
    %v1400 = vmul.f32 %v1327, %v1392
    %v1401 = vpack.c.bf16 %v1395, %v1393
    %v1402 = vpack.c.bf16 %v1396, %v1394
    %v1403 = vpack.c.bf16 %v1399, %v1397
    %v1404 = vpack.c.bf16 %v1400, %v1398
    %v1405 = vperm.slane %v226, 4
    %v1414 = vunpack.c.l.b16 %v236
    %v1415 = vunpack.c.h.b16 %v236
    %v1416 = vunpack.c.l.b16 %v237
    %v1417 = vunpack.c.h.b16 %v237
    %v1418 = vunpack.c.l.b16 %v238
    %v1419 = vunpack.c.h.b16 %v238
    %v1420 = vunpack.c.l.b16 %v239
    %v1421 = vunpack.c.h.b16 %v239
    %v1422 = vunpack.c.l.b16 %v240
    %v1423 = vunpack.c.h.b16 %v240
    %v1424 = vunpack.c.l.b16 %v241
    %v1425 = vunpack.c.h.b16 %v241
    %v1426 = vunpack.c.l.b16 %v242
    %v1427 = vunpack.c.h.b16 %v242
    %v1428 = vunpack.c.l.b16 %v243
    %v1429 = vunpack.c.h.b16 %v243
    %v1430 = vpack.c.b16 %v1416, %v1414
    %v1431 = vpack.c.b16 %v1417, %v1415
    %v1432 = vpack.c.b16 %v1420, %v1418
    %v1433 = vpack.c.b16 %v1421, %v1419
    %v1434 = vpack.c.b16 %v1424, %v1422
    %v1435 = vpack.c.b16 %v1425, %v1423
    %v1436 = vpack.c.b16 %v1428, %v1426
    %v1437 = vpack.c.b16 %v1429, %v1427
    %1446 = vmatpush.bf16.xpose.msra.mxu0 0
    %1447 = vmatpush.bf16.xpose.msra.mxu0 0
    %1448 = vmatpush.bf16.xpose.msra.mxu0 0
    %1449 = vmatpush.bf16.xpose.msra.mxu0 0
    %1450 = vmatpush.bf16.xpose.msra.mxu0 %v1436
    %1451 = vmatpush.bf16.xpose.msra.mxu0 %v1434
    %1452 = vmatpush.bf16.xpose.msra.mxu0 %v1432
    %1453 = vmatpush.bf16.xpose.msra.mxu0 %v1430
    %1454 = vmatmul.bf16.gmra.mxu0 %v1401
    %v1455 = vpop.f32.mrf.mxu0
    %v1456 = vadd.f32 %v1405, %v1455
    %v1457 = vpop.f32.mrf.mxu0
    %v1458 = vadd.f32 %v1405, %v1457
    %1459 = vmatmul.bf16.gmra.mxu0 %v1403
    %v1460 = vpop.f32.mrf.mxu0
    %v1461 = vadd.f32 %v1405, %v1460
    %v1462 = vpop.f32.mrf.mxu0
    %v1463 = vadd.f32 %v1405, %v1462
    %1464 = vdwg.mxu0
    %1465 = vmatpush.bf16.xpose.msra.mxu0 0
    %1466 = vmatpush.bf16.xpose.msra.mxu0 0
    %1467 = vmatpush.bf16.xpose.msra.mxu0 0
    %1468 = vmatpush.bf16.xpose.msra.mxu0 0
    %1469 = vmatpush.bf16.xpose.msra.mxu0 %v1437
    %1470 = vmatpush.bf16.xpose.msra.mxu0 %v1435
    %1471 = vmatpush.bf16.xpose.msra.mxu0 %v1433
    %1472 = vmatpush.bf16.xpose.msra.mxu0 %v1431
    %1473 = vmatmul.bf16.gmra.mxu0 %v1402
    %v1474 = vpop.f32.mrf.mxu0
    %v1475 = vadd.f32 %v1456, %v1474
    %v1476 = vpop.f32.mrf.mxu0
    %v1477 = vadd.f32 %v1458, %v1476
    %1478 = vmatmul.bf16.gmra.mxu0 %v1404
    %v1479 = vpop.f32.mrf.mxu0
    %v1480 = vadd.f32 %v1461, %v1479
    %v1481 = vpop.f32.mrf.mxu0
    %v1482 = vadd.f32 %v1463, %v1481
    %1483 = vdwg.mxu0
    %v1484 = vadd.f32 %v1136, %v1475
    %v1485 = vadd.f32 %v1137, %v1477
    %v1486 = vadd.f32 %v1138, %v1480
    %v1487 = vadd.f32 %v1139, %v1482
    %s1488 = scalar_lea.vmem [#allocation7], 64
    %v1489 = vld [vmem:[%s1488] sm:$0xff]
    %v1490 = vld [vmem:[%s1488 + $0x8] sm:$0xff]
    %v1491 = vld [vmem:[%s1488 + $0x10] sm:$0xff]
    %v1492 = vld [vmem:[%s1488 + $0x18] sm:$0xff]
    %v1493 = vld [vmem:[%s1488 + $0x20] sm:$0xff]
    %v1494 = vld [vmem:[%s1488 + $0x28] sm:$0xff]
    %v1495 = vld [vmem:[%s1488 + $0x30] sm:$0xff]
    %v1496 = vld [vmem:[%s1488 + $0x38] sm:$0xff]
    %s1497 = scalar_lea.vmem [#allocation8], 2
    %v1498 = vld [vmem:[%s1497] sm:$0x3]
    %s1499 = scalar_lea.vmem [#allocation10], 32
    %v1500 = vld [vmem:[%s1499] sm:$0xf]
    %v1501 = vld [vmem:[%s1499 + $0x4] sm:$0xf]
    %v1502 = vld [vmem:[%s1499 + $0x8] sm:$0xf]
    %v1503 = vld [vmem:[%s1499 + $0xc] sm:$0xf]
    %v1504 = vld [vmem:[%s1499 + $0x10] sm:$0xf]
    %v1505 = vld [vmem:[%s1499 + $0x14] sm:$0xf]
    %v1506 = vld [vmem:[%s1499 + $0x18] sm:$0xf]
    %v1507 = vld [vmem:[%s1499 + $0x1c] sm:$0xf]
    %s1508 = scalar_lea.vmem [#allocation11], 8
    %v1509 = vld [vmem:[%s1508] sm:$0xff]
    %s1510 = scalar_lea.vmem [#allocation13], 64
    %v1511 = vld [vmem:[%s1510] sm:$0xff]
    %v1512 = vld [vmem:[%s1510 + $0x8] sm:$0xff]
    %v1513 = vld [vmem:[%s1510 + $0x10] sm:$0xff]
    %v1514 = vld [vmem:[%s1510 + $0x18] sm:$0xff]
    %v1515 = vld [vmem:[%s1510 + $0x20] sm:$0xff]
    %v1516 = vld [vmem:[%s1510 + $0x28] sm:$0xff]
    %v1517 = vld [vmem:[%s1510 + $0x30] sm:$0xff]
    %v1518 = vld [vmem:[%s1510 + $0x38] sm:$0xff]
    %s1519 = scalar_lea.vmem %s7, 2
    %v1520 = vld [vmem:[%s1519] sm:$0x3]
    %s1521 = scalar_lea.vmem [#allocation14], 64
    %v1522 = vld [vmem:[%s1521] sm:$0xff]
    %v1523 = vld [vmem:[%s1521 + $0x8] sm:$0xff]
    %v1524 = vld [vmem:[%s1521 + $0x10] sm:$0xff]
    %v1525 = vld [vmem:[%s1521 + $0x18] sm:$0xff]
    %v1526 = vld [vmem:[%s1521 + $0x20] sm:$0xff]
    %v1527 = vld [vmem:[%s1521 + $0x28] sm:$0xff]
    %v1528 = vld [vmem:[%s1521 + $0x30] sm:$0xff]
    %v1529 = vld [vmem:[%s1521 + $0x38] sm:$0xff]
    %v1530 = vsel %vm244, %v1484, 0.0
    %1531 = vadd.xlane.f32.xlu0 %v1530
    %v1532 = vpop.xlane.xlu0 %1531
    %v1533 = vsel %vm244, %v1485, 0.0
    %1534 = vadd.xlane.f32.xlu0 %v1533
    %v1535 = vpop.xlane.xlu0 %1534
    %v1536 = vsel %vm244, %v1486, 0.0
    %1537 = vadd.xlane.f32.xlu0 %v1536
    %v1538 = vpop.xlane.xlu0 %1537
    %v1539 = vsel %vm244, %v1487, 0.0
    %1540 = vadd.xlane.f32.xlu0 %v1539
    %v1541 = vpop.xlane.xlu0 %1540
    %v1542 = vmul.f32 %v1532, %v263
    %v1543 = vmul.f32 %v1535, %v263
    %v1544 = vmul.f32 %v1538, %v263
    %v1545 = vmul.f32 %v1541, %v263
    %v1546 = vsub.f32 %v1484, %v1542
    %v1547 = vsub.f32 %v1485, %v1543
    %v1548 = vsub.f32 %v1486, %v1544
    %v1549 = vsub.f32 %v1487, %v1545
    %v1550 = vmul.f32 %v1546, %v1546
    %v1551 = vmul.f32 %v1547, %v1547
    %v1552 = vmul.f32 %v1548, %v1548
    %v1553 = vmul.f32 %v1549, %v1549
    %v1554 = vsel %vm244, %v1550, 0.0
    %1555 = vadd.xlane.f32.xlu0 %v1554
    %v1556 = vpop.xlane.xlu0 %1555
    %v1557 = vsel %vm244, %v1551, 0.0
    %1558 = vadd.xlane.f32.xlu0 %v1557
    %v1559 = vpop.xlane.xlu0 %1558
    %v1560 = vsel %vm244, %v1552, 0.0
    %1561 = vadd.xlane.f32.xlu0 %v1560
    %v1562 = vpop.xlane.xlu0 %1561
    %v1563 = vsel %vm244, %v1553, 0.0
    %1564 = vadd.xlane.f32.xlu0 %v1563
    %v1565 = vpop.xlane.xlu0 %1564
    %v1566 = vmul.f32 %v1556, %v263
    %v1567 = vmul.f32 %v1559, %v263
    %v1568 = vmul.f32 %v1562, %v263
    %v1569 = vmul.f32 %v1565, %v263
    %v1570 = vadd.f32 %v1566, 1e-05
    %v1571 = vadd.f32 %v1567, 1e-05
    %v1572 = vadd.f32 %v1568, 1e-05
    %v1573 = vadd.f32 %v1569, 1e-05
    %v1574 = vrsqrt.pop %v1570
    %v1575 = vmul.f32 %v1574, %v1570
    %v1576 = vmul.f32 %v1575, %v1574
    %v1577 = vmul.f32 0.5, %v1576
    %v1578 = vsub.f32 1.5, %v1577
    %v1579 = vmul.f32 %v1574, %v1578
    %vm1580 = vweird.f32 %v1570
    %vm1581 = vweird.f32 %v1574
    %vm1582 = vmor %vm1580, %vm1581
    %v1583 = vsel %vm1582, %v1574, %v1579
    %v1584 = vrsqrt.pop %v1571
    %v1585 = vmul.f32 %v1584, %v1571
    %v1586 = vmul.f32 %v1585, %v1584
    %v1587 = vmul.f32 0.5, %v1586
    %v1588 = vsub.f32 1.5, %v1587
    %v1589 = vmul.f32 %v1584, %v1588
    %vm1590 = vweird.f32 %v1571
    %vm1591 = vweird.f32 %v1584
    %vm1592 = vmor %vm1590, %vm1591
    %v1593 = vsel %vm1592, %v1584, %v1589
    %v1594 = vrsqrt.pop %v1572
    %v1595 = vmul.f32 %v1594, %v1572
    %v1596 = vmul.f32 %v1595, %v1594
    %v1597 = vmul.f32 0.5, %v1596
    %v1598 = vsub.f32 1.5, %v1597
    %v1599 = vmul.f32 %v1594, %v1598
    %vm1600 = vweird.f32 %v1572
    %vm1601 = vweird.f32 %v1594
    %vm1602 = vmor %vm1600, %vm1601
    %v1603 = vsel %vm1602, %v1594, %v1599
    %v1604 = vrsqrt.pop %v1573
    %v1605 = vmul.f32 %v1604, %v1573
    %v1606 = vmul.f32 %v1605, %v1604
    %v1607 = vmul.f32 0.5, %v1606
    %v1608 = vsub.f32 1.5, %v1607
    %v1609 = vmul.f32 %v1604, %v1608
    %vm1610 = vweird.f32 %v1573
    %vm1611 = vweird.f32 %v1604
    %vm1612 = vmor %vm1610, %vm1611
    %v1613 = vsel %vm1612, %v1604, %v1609
    %v1614 = vmul.f32 %v1546, %v1583
    %v1615 = vmul.f32 %v1547, %v1593
    %v1616 = vmul.f32 %v1548, %v1603
    %v1617 = vmul.f32 %v1549, %v1613
    %v1618 = vperm.slane %v1509, 0
    %v1619 = vmul.f32 %v1614, %v1618
    %v1620 = vmul.f32 %v1615, %v1618
    %v1621 = vmul.f32 %v1616, %v1618
    %v1622 = vmul.f32 %v1617, %v1618
    %v1623 = vperm.slane %v1509, 1
    %v1624 = vadd.f32 %v1619, %v1623
    %v1625 = vadd.f32 %v1620, %v1623
    %v1626 = vadd.f32 %v1621, %v1623
    %v1627 = vadd.f32 %v1622, %v1623
    %v1628 = vpack.c.bf16 %v1625, %v1624
    %v1629 = vpack.c.bf16 %v1627, %v1626
    %v1631 = vperm.slane %v1498, 0
    %v1632 = vperm.slane %v1498, 1
    %v1643 = vunpack.c.l.b16 %v1489
    %v1644 = vunpack.c.h.b16 %v1489
    %v1645 = vunpack.c.l.b16 %v1490
    %v1646 = vunpack.c.h.b16 %v1490
    %v1647 = vunpack.c.l.b16 %v1491
    %v1648 = vunpack.c.h.b16 %v1491
    %v1649 = vunpack.c.l.b16 %v1492
    %v1650 = vunpack.c.h.b16 %v1492
    %v1651 = vunpack.c.l.b16 %v1493
    %v1652 = vunpack.c.h.b16 %v1493
    %v1653 = vunpack.c.l.b16 %v1494
    %v1654 = vunpack.c.h.b16 %v1494
    %v1655 = vunpack.c.l.b16 %v1495
    %v1656 = vunpack.c.h.b16 %v1495
    %v1657 = vunpack.c.l.b16 %v1496
    %v1658 = vunpack.c.h.b16 %v1496
    %v1659 = vpack.c.b16 %v1645, %v1643
    %v1660 = vpack.c.b16 %v1646, %v1644
    %v1661 = vpack.c.b16 %v1649, %v1647
    %v1662 = vpack.c.b16 %v1650, %v1648
    %v1663 = vpack.c.b16 %v1653, %v1651
    %v1664 = vpack.c.b16 %v1654, %v1652
    %v1665 = vpack.c.b16 %v1657, %v1655
    %v1666 = vpack.c.b16 %v1658, %v1656
    %v1676 = vsel %vm244, %v1628, 0
    %v1679 = vsel %vm244, %v1629, 0
    %1681 = vmatpush.bf16.msra.mxu0 0
    %1682 = vmatpush.bf16.msra.mxu0 0
    %1683 = vmatpush.bf16.msra.mxu0 0
    %1684 = vmatpush.bf16.msra.mxu0 0
    %1685 = vmatpush.bf16.msra.mxu0 %v1665
    %1686 = vmatpush.bf16.msra.mxu0 %v1663
    %1687 = vmatpush.bf16.msra.mxu0 %v1661
    %1688 = vmatpush.bf16.msra.mxu0 %v1659
    %1689 = vmatmul.bf16.gmra.mxu0 %v1676
    %v1690 = vpop.f32.mrf.mxu0
    %v1691 = vadd.f32 %v1631, %v1690
    %v1692 = vpop.f32.mrf.mxu0
    %v1693 = vadd.f32 %v1631, %v1692
    %1694 = vmatmul.bf16.gmra.mxu0 %v1679
    %v1695 = vpop.f32.mrf.mxu0
    %v1696 = vadd.f32 %v1631, %v1695
    %v1697 = vpop.f32.mrf.mxu0
    %v1698 = vadd.f32 %v1631, %v1697
    %1699 = vdwg.mxu0
    %1700 = vmatpush.bf16.msra.mxu0 0
    %1701 = vmatpush.bf16.msra.mxu0 0
    %1702 = vmatpush.bf16.msra.mxu0 0
    %1703 = vmatpush.bf16.msra.mxu0 0
    %1704 = vmatpush.bf16.msra.mxu0 %v1666
    %1705 = vmatpush.bf16.msra.mxu0 %v1664
    %1706 = vmatpush.bf16.msra.mxu0 %v1662
    %1707 = vmatpush.bf16.msra.mxu0 %v1660
    %1708 = vmatmul.bf16.gmra.mxu0 %v1676
    %v1709 = vpop.f32.mrf.mxu0
    %v1710 = vadd.f32 %v1632, %v1709
    %v1711 = vpop.f32.mrf.mxu0
    %v1712 = vadd.f32 %v1632, %v1711
    %1713 = vmatmul.bf16.gmra.mxu0 %v1679
    %v1714 = vpop.f32.mrf.mxu0
    %v1715 = vadd.f32 %v1632, %v1714
    %v1716 = vpop.f32.mrf.mxu0
    %v1717 = vadd.f32 %v1632, %v1716
    %1718 = vdwg.mxu0
    %v1719 = vpack.c.bf16 %v1710, %v1691
    %v1720 = vpack.c.bf16 %v1712, %v1693
    %v1721 = vpack.c.bf16 %v1715, %v1696
    %v1722 = vpack.c.bf16 %v1717, %v1698
    %v1725 = vunpack.c.l.b16 %v1719
    %v1726 = vunpack.c.l.b16 %v1720
    %v1727 = vpack.c.b16 %v1726, %v1725
    %1728 = vrot.lane.b32.xlu0 %v1727, 64
    %v1729 = vpop.permute.xlu0 %1728
    %v1731 = vsel %vm452, %v1727, 0
    %v1734 = vsel %vm452, %v1729, 0
    %1736 = vmatpush.bf16.xpose.msra.mxu0 0
    %1737 = vmatpush.bf16.xpose.msra.mxu0 0
    %1738 = vmatpush.bf16.xpose.msra.mxu0 0
    %1739 = vmatpush.bf16.xpose.msra.mxu0 0
    %1740 = vmatpush.bf16.xpose.msra.mxu0 0
    %1741 = vmatpush.bf16.xpose.msra.mxu0 0
    %1742 = vmatpush.bf16.xpose.msra.mxu0 0
    %1743 = vmatpush.bf16.xpose.msra.mxu0 %v1734
    %1744 = vmatmul.bf16.gmra.mxu0 %v1731
    %v1745 = vpop.f32.mrf.mxu0
    %v1746 = vadd.f32 0.0, %v1745
    %v1747 = vpop.f32.mrf.mxu0
    %v1748 = vadd.f32 0.0, %v1747
    %1749 = vdwg.mxu0
    %v1750 = vmul.f32 %v1746, 0.25
    %v1751 = vmul.f32 %v1748, 0.25
    %v1752 = vadd.f32 %v1750, %v200
    %v1753 = vadd.f32 %v1751, %v201
    %v1754 = vsel %vm452, %v1752, -inf
    %1755 = vmax.xlane.f32.xlu0 %v1754
    %v1756 = vpop.xlane.xlu0 %1755
    %v1757 = vsel %vm452, %v1753, -inf
    %1758 = vmax.xlane.f32.xlu0 %v1757
    %v1759 = vpop.xlane.xlu0 %1758
    %v1760 = vsub.f32 %v1752, %v1756
    %v1761 = vsub.f32 %v1753, %v1759
    %v1762 = vmul.f32 %v1760, 1.442695
    %v1763 = vpow.pop %v1762
    %v1764 = vmul.f32 %v1761, 1.442695
    %v1765 = vpow.pop %v1764
    %v1766 = vsel %vm452, %v1763, 0.0
    %1767 = vadd.xlane.f32.xlu0 %v1766
    %v1768 = vpop.xlane.xlu0 %1767
    %v1769 = vsel %vm452, %v1765, 0.0
    %1770 = vadd.xlane.f32.xlu0 %v1769
    %v1771 = vpop.xlane.xlu0 %1770
    %v1772 = vrcp.pop %v1768
    %v1773 = vrcp.pop %v1771
    %v1774 = vmul.f32 %v1763, %v1772
    %v1775 = vmul.f32 %v1765, %v1773
    %v1776 = vpack.c.bf16 %v1775, %v1774
    %v1777 = vunpack.c.h.b16 %v1719
    %v1778 = vunpack.c.h.b16 %v1720
    %v1779 = vpack.c.b16 %v1778, %v1777
    %v1782 = vsel %vm452, %v1776, 0
    %1784 = vmatpush.bf16.msra.mxu0 0
    %1785 = vmatpush.bf16.msra.mxu0 0
    %1786 = vmatpush.bf16.msra.mxu0 0
    %1787 = vmatpush.bf16.msra.mxu0 0
    %1788 = vmatpush.bf16.msra.mxu0 0
    %1789 = vmatpush.bf16.msra.mxu0 0
    %1790 = vmatpush.bf16.msra.mxu0 0
    %1791 = vmatpush.bf16.msra.mxu0 %v1779
    %1792 = vmatmul.bf16.gmra.mxu0 %v1782
    %v1793 = vpop.f32.mrf.mxu0
    %v1794 = vadd.f32 0.0, %v1793
    %v1795 = vpop.f32.mrf.mxu0
    %v1796 = vadd.f32 0.0, %v1795
    %1797 = vdwg.mxu0
    %1798 = vrot.lane.b32.xlu0 %v1727, 112
    %v1799 = vpop.permute.xlu0 %1798
    %1800 = vrot.lane.b32.xlu0 %v1727, 48
    %v1801 = vpop.permute.xlu0 %1800
    %v1803 = vsel %vm452, %v1799, 0
    %v1806 = vsel %vm452, %v1801, 0
    %1808 = vmatpush.bf16.xpose.msra.mxu0 0
    %1809 = vmatpush.bf16.xpose.msra.mxu0 0
    %1810 = vmatpush.bf16.xpose.msra.mxu0 0
    %1811 = vmatpush.bf16.xpose.msra.mxu0 0
    %1812 = vmatpush.bf16.xpose.msra.mxu0 0
    %1813 = vmatpush.bf16.xpose.msra.mxu0 0
    %1814 = vmatpush.bf16.xpose.msra.mxu0 0
    %1815 = vmatpush.bf16.xpose.msra.mxu0 %v1806
    %1816 = vmatmul.bf16.gmra.mxu0 %v1803
    %v1817 = vpop.f32.mrf.mxu0
    %v1818 = vadd.f32 0.0, %v1817
    %v1819 = vpop.f32.mrf.mxu0
    %v1820 = vadd.f32 0.0, %v1819
    %1821 = vdwg.mxu0
    %v1822 = vmul.f32 %v1818, 0.25
    %v1823 = vmul.f32 %v1820, 0.25
    %v1824 = vadd.f32 %v1822, %v200
    %v1825 = vadd.f32 %v1823, %v201
    %v1826 = vsel %vm452, %v1824, -inf
    %1827 = vmax.xlane.f32.xlu0 %v1826
    %v1828 = vpop.xlane.xlu0 %1827
    %v1829 = vsel %vm452, %v1825, -inf
    %1830 = vmax.xlane.f32.xlu0 %v1829
    %v1831 = vpop.xlane.xlu0 %1830
    %v1832 = vsub.f32 %v1824, %v1828
    %v1833 = vsub.f32 %v1825, %v1831
    %v1834 = vmul.f32 %v1832, 1.442695
    %v1835 = vpow.pop %v1834
    %v1836 = vmul.f32 %v1833, 1.442695
    %v1837 = vpow.pop %v1836
    %v1838 = vsel %vm452, %v1835, 0.0
    %1839 = vadd.xlane.f32.xlu0 %v1838
    %v1840 = vpop.xlane.xlu0 %1839
    %v1841 = vsel %vm452, %v1837, 0.0
    %1842 = vadd.xlane.f32.xlu0 %v1841
    %v1843 = vpop.xlane.xlu0 %1842
    %v1844 = vrcp.pop %v1840
    %v1845 = vrcp.pop %v1843
    %v1846 = vmul.f32 %v1835, %v1844
    %v1847 = vmul.f32 %v1837, %v1845
    %v1848 = vpack.c.bf16 %v1847, %v1846
    %1849 = vrot.lane.b32.xlu0 %v1779, 112
    %v1850 = vpop.permute.xlu0 %1849
    %v1853 = vsel %vm452, %v1848, 0
    %1855 = vmatpush.bf16.msra.mxu0 0
    %1856 = vmatpush.bf16.msra.mxu0 0
    %1857 = vmatpush.bf16.msra.mxu0 0
    %1858 = vmatpush.bf16.msra.mxu0 0
    %1859 = vmatpush.bf16.msra.mxu0 0
    %1860 = vmatpush.bf16.msra.mxu0 0
    %1861 = vmatpush.bf16.msra.mxu0 0
    %1862 = vmatpush.bf16.msra.mxu0 %v1850
    %1863 = vmatmul.bf16.gmra.mxu0 %v1853
    %v1864 = vpop.f32.mrf.mxu0
    %v1865 = vadd.f32 0.0, %v1864
    %v1866 = vpop.f32.mrf.mxu0
    %v1867 = vadd.f32 0.0, %v1866
    %1868 = vdwg.mxu0
    %1869 = vrot.lane.b32.xlu0 %v1727, 96
    %v1870 = vpop.permute.xlu0 %1869
    %1871 = vrot.lane.b32.xlu0 %v1727, 32
    %v1872 = vpop.permute.xlu0 %1871
    %v1874 = vsel %vm452, %v1870, 0
    %v1877 = vsel %vm452, %v1872, 0
    %1879 = vmatpush.bf16.xpose.msra.mxu0 0
    %1880 = vmatpush.bf16.xpose.msra.mxu0 0
    %1881 = vmatpush.bf16.xpose.msra.mxu0 0
    %1882 = vmatpush.bf16.xpose.msra.mxu0 0
    %1883 = vmatpush.bf16.xpose.msra.mxu0 0
    %1884 = vmatpush.bf16.xpose.msra.mxu0 0
    %1885 = vmatpush.bf16.xpose.msra.mxu0 0
    %1886 = vmatpush.bf16.xpose.msra.mxu0 %v1877
    %1887 = vmatmul.bf16.gmra.mxu0 %v1874
    %v1888 = vpop.f32.mrf.mxu0
    %v1889 = vadd.f32 0.0, %v1888
    %v1890 = vpop.f32.mrf.mxu0
    %v1891 = vadd.f32 0.0, %v1890
    %1892 = vdwg.mxu0
    %v1893 = vmul.f32 %v1889, 0.25
    %v1894 = vmul.f32 %v1891, 0.25
    %v1895 = vadd.f32 %v1893, %v200
    %v1896 = vadd.f32 %v1894, %v201
    %v1897 = vsel %vm452, %v1895, -inf
    %1898 = vmax.xlane.f32.xlu0 %v1897
    %v1899 = vpop.xlane.xlu0 %1898
    %v1900 = vsel %vm452, %v1896, -inf
    %1901 = vmax.xlane.f32.xlu0 %v1900
    %v1902 = vpop.xlane.xlu0 %1901
    %v1903 = vsub.f32 %v1895, %v1899
    %v1904 = vsub.f32 %v1896, %v1902
    %v1905 = vmul.f32 %v1903, 1.442695
    %v1906 = vpow.pop %v1905
    %v1907 = vmul.f32 %v1904, 1.442695
    %v1908 = vpow.pop %v1907
    %v1909 = vsel %vm452, %v1906, 0.0
    %1910 = vadd.xlane.f32.xlu0 %v1909
    %v1911 = vpop.xlane.xlu0 %1910
    %v1912 = vsel %vm452, %v1908, 0.0
    %1913 = vadd.xlane.f32.xlu0 %v1912
    %v1914 = vpop.xlane.xlu0 %1913
    %v1915 = vrcp.pop %v1911
    %v1916 = vrcp.pop %v1914
    %v1917 = vmul.f32 %v1906, %v1915
    %v1918 = vmul.f32 %v1908, %v1916
    %v1919 = vpack.c.bf16 %v1918, %v1917
    %1920 = vrot.lane.b32.xlu0 %v1779, 96
    %v1921 = vpop.permute.xlu0 %1920
    %v1924 = vsel %vm452, %v1919, 0
    %1926 = vmatpush.bf16.msra.mxu0 0
    %1927 = vmatpush.bf16.msra.mxu0 0
    %1928 = vmatpush.bf16.msra.mxu0 0
    %1929 = vmatpush.bf16.msra.mxu0 0
    %1930 = vmatpush.bf16.msra.mxu0 0
    %1931 = vmatpush.bf16.msra.mxu0 0
    %1932 = vmatpush.bf16.msra.mxu0 0
    %1933 = vmatpush.bf16.msra.mxu0 %v1921
    %1934 = vmatmul.bf16.gmra.mxu0 %v1924
    %v1935 = vpop.f32.mrf.mxu0
    %v1936 = vadd.f32 0.0, %v1935
    %v1937 = vpop.f32.mrf.mxu0
    %v1938 = vadd.f32 0.0, %v1937
    %1939 = vdwg.mxu0
    %1940 = vrot.lane.b32.xlu0 %v1727, 80
    %v1941 = vpop.permute.xlu0 %1940
    %1942 = vrot.lane.b32.xlu0 %v1727, 16
    %v1943 = vpop.permute.xlu0 %1942
    %v1945 = vsel %vm452, %v1941, 0
    %v1948 = vsel %vm452, %v1943, 0
    %1950 = vmatpush.bf16.xpose.msra.mxu0 0
    %1951 = vmatpush.bf16.xpose.msra.mxu0 0
    %1952 = vmatpush.bf16.xpose.msra.mxu0 0
    %1953 = vmatpush.bf16.xpose.msra.mxu0 0
    %1954 = vmatpush.bf16.xpose.msra.mxu0 0
    %1955 = vmatpush.bf16.xpose.msra.mxu0 0
    %1956 = vmatpush.bf16.xpose.msra.mxu0 0
    %1957 = vmatpush.bf16.xpose.msra.mxu0 %v1948
    %1958 = vmatmul.bf16.gmra.mxu0 %v1945
    %v1959 = vpop.f32.mrf.mxu0
    %v1960 = vadd.f32 0.0, %v1959
    %v1961 = vpop.f32.mrf.mxu0
    %v1962 = vadd.f32 0.0, %v1961
    %1963 = vdwg.mxu0
    %v1964 = vmul.f32 %v1960, 0.25
    %v1965 = vmul.f32 %v1962, 0.25
    %v1966 = vadd.f32 %v1964, %v200
    %v1967 = vadd.f32 %v1965, %v201
    %v1968 = vsel %vm452, %v1966, -inf
    %1969 = vmax.xlane.f32.xlu0 %v1968
    %v1970 = vpop.xlane.xlu0 %1969
    %v1971 = vsel %vm452, %v1967, -inf
    %1972 = vmax.xlane.f32.xlu0 %v1971
    %v1973 = vpop.xlane.xlu0 %1972
    %v1974 = vsub.f32 %v1966, %v1970
    %v1975 = vsub.f32 %v1967, %v1973
    %v1976 = vmul.f32 %v1974, 1.442695
    %v1977 = vpow.pop %v1976
    %v1978 = vmul.f32 %v1975, 1.442695
    %v1979 = vpow.pop %v1978
    %v1980 = vsel %vm452, %v1977, 0.0
    %1981 = vadd.xlane.f32.xlu0 %v1980
    %v1982 = vpop.xlane.xlu0 %1981
    %v1983 = vsel %vm452, %v1979, 0.0
    %1984 = vadd.xlane.f32.xlu0 %v1983
    %v1985 = vpop.xlane.xlu0 %1984
    %v1986 = vrcp.pop %v1982
    %v1987 = vrcp.pop %v1985
    %v1988 = vmul.f32 %v1977, %v1986
    %v1989 = vmul.f32 %v1979, %v1987
    %v1990 = vpack.c.bf16 %v1989, %v1988
    %1991 = vrot.lane.b32.xlu0 %v1779, 80
    %v1992 = vpop.permute.xlu0 %1991
    %v1995 = vsel %vm452, %v1990, 0
    %1997 = vmatpush.bf16.msra.mxu0 0
    %1998 = vmatpush.bf16.msra.mxu0 0
    %1999 = vmatpush.bf16.msra.mxu0 0
    %2000 = vmatpush.bf16.msra.mxu0 0
    %2001 = vmatpush.bf16.msra.mxu0 0
    %2002 = vmatpush.bf16.msra.mxu0 0
    %2003 = vmatpush.bf16.msra.mxu0 0
    %2004 = vmatpush.bf16.msra.mxu0 %v1992
    %2005 = vmatmul.bf16.gmra.mxu0 %v1995
    %v2006 = vpop.f32.mrf.mxu0
    %v2007 = vadd.f32 0.0, %v2006
    %v2008 = vpop.f32.mrf.mxu0
    %v2009 = vadd.f32 0.0, %v2008
    %2010 = vdwg.mxu0
    %2013 = vrot.lane.b32.xlu0 %v1865, 16
    %v2014 = vpop.permute.xlu0 %2013
    %2015 = vrot.lane.b32.xlu0 %v1867, 16
    %v2016 = vpop.permute.xlu0 %2015
    %2021 = vrot.lane.b32.xlu0 %v1936, 32
    %v2022 = vpop.permute.xlu0 %2021
    %2023 = vrot.lane.b32.xlu0 %v1938, 32
    %v2024 = vpop.permute.xlu0 %2023
    %2029 = vrot.lane.b32.xlu0 %v2007, 48
    %v2030 = vpop.permute.xlu0 %2029
    %2031 = vrot.lane.b32.xlu0 %v2009, 48
    %v2032 = vpop.permute.xlu0 %2031
    %v2035 = vsel %vm452, %v1794, %v2014
    %v2036 = vsel %vm452, %v1796, %v2016
    %v2037 = vsel %vm760, %v2035, %v2022
    %v2038 = vsel %vm760, %v2036, %v2024
    %v2039 = vsel %vm763, %v2037, %v2030
    %v2040 = vsel %vm763, %v2038, %v2032
    %v2043 = vunpack.c.l.b16 %v1721
    %v2044 = vunpack.c.l.b16 %v1722
    %v2045 = vpack.c.b16 %v2044, %v2043
    %2046 = vrot.lane.b32.xlu0 %v2045, 64
    %v2047 = vpop.permute.xlu0 %2046
    %v2049 = vsel %vm452, %v2045, 0
    %v2052 = vsel %vm452, %v2047, 0
    %2054 = vmatpush.bf16.xpose.msra.mxu0 0
    %2055 = vmatpush.bf16.xpose.msra.mxu0 0
    %2056 = vmatpush.bf16.xpose.msra.mxu0 0
    %2057 = vmatpush.bf16.xpose.msra.mxu0 0
    %2058 = vmatpush.bf16.xpose.msra.mxu0 0
    %2059 = vmatpush.bf16.xpose.msra.mxu0 0
    %2060 = vmatpush.bf16.xpose.msra.mxu0 0
    %2061 = vmatpush.bf16.xpose.msra.mxu0 %v2052
    %2062 = vmatmul.bf16.gmra.mxu0 %v2049
    %v2063 = vpop.f32.mrf.mxu0
    %v2064 = vadd.f32 0.0, %v2063
    %v2065 = vpop.f32.mrf.mxu0
    %v2066 = vadd.f32 0.0, %v2065
    %2067 = vdwg.mxu0
    %v2068 = vmul.f32 %v2064, 0.25
    %v2069 = vmul.f32 %v2066, 0.25
    %v2070 = vadd.f32 %v2068, %v207
    %v2071 = vadd.f32 %v2069, %v208
    %v2072 = vsel %vm452, %v2070, -inf
    %2073 = vmax.xlane.f32.xlu0 %v2072
    %v2074 = vpop.xlane.xlu0 %2073
    %v2075 = vsel %vm452, %v2071, -inf
    %2076 = vmax.xlane.f32.xlu0 %v2075
    %v2077 = vpop.xlane.xlu0 %2076
    %v2078 = vsub.f32 %v2070, %v2074
    %v2079 = vsub.f32 %v2071, %v2077
    %v2080 = vmul.f32 %v2078, 1.442695
    %v2081 = vpow.pop %v2080
    %v2082 = vmul.f32 %v2079, 1.442695
    %v2083 = vpow.pop %v2082
    %v2084 = vsel %vm452, %v2081, 0.0
    %2085 = vadd.xlane.f32.xlu0 %v2084
    %v2086 = vpop.xlane.xlu0 %2085
    %v2087 = vsel %vm452, %v2083, 0.0
    %2088 = vadd.xlane.f32.xlu0 %v2087
    %v2089 = vpop.xlane.xlu0 %2088
    %v2090 = vrcp.pop %v2086
    %v2091 = vrcp.pop %v2089
    %v2092 = vmul.f32 %v2081, %v2090
    %v2093 = vmul.f32 %v2083, %v2091
    %v2094 = vpack.c.bf16 %v2093, %v2092
    %v2095 = vunpack.c.h.b16 %v1721
    %v2096 = vunpack.c.h.b16 %v1722
    %v2097 = vpack.c.b16 %v2096, %v2095
    %v2100 = vsel %vm452, %v2094, 0
    %2102 = vmatpush.bf16.msra.mxu0 0
    %2103 = vmatpush.bf16.msra.mxu0 0
    %2104 = vmatpush.bf16.msra.mxu0 0
    %2105 = vmatpush.bf16.msra.mxu0 0
    %2106 = vmatpush.bf16.msra.mxu0 0
    %2107 = vmatpush.bf16.msra.mxu0 0
    %2108 = vmatpush.bf16.msra.mxu0 0
    %2109 = vmatpush.bf16.msra.mxu0 %v2097
    %2110 = vmatmul.bf16.gmra.mxu0 %v2100
    %v2111 = vpop.f32.mrf.mxu0
    %v2112 = vadd.f32 0.0, %v2111
    %v2113 = vpop.f32.mrf.mxu0
    %v2114 = vadd.f32 0.0, %v2113
    %2115 = vdwg.mxu0
    %2116 = vrot.lane.b32.xlu0 %v2045, 112
    %v2117 = vpop.permute.xlu0 %2116
    %2118 = vrot.lane.b32.xlu0 %v2045, 48
    %v2119 = vpop.permute.xlu0 %2118
    %v2121 = vsel %vm452, %v2117, 0
    %v2124 = vsel %vm452, %v2119, 0
    %2126 = vmatpush.bf16.xpose.msra.mxu0 0
    %2127 = vmatpush.bf16.xpose.msra.mxu0 0
    %2128 = vmatpush.bf16.xpose.msra.mxu0 0
    %2129 = vmatpush.bf16.xpose.msra.mxu0 0
    %2130 = vmatpush.bf16.xpose.msra.mxu0 0
    %2131 = vmatpush.bf16.xpose.msra.mxu0 0
    %2132 = vmatpush.bf16.xpose.msra.mxu0 0
    %2133 = vmatpush.bf16.xpose.msra.mxu0 %v2124
    %2134 = vmatmul.bf16.gmra.mxu0 %v2121
    %v2135 = vpop.f32.mrf.mxu0
    %v2136 = vadd.f32 0.0, %v2135
    %v2137 = vpop.f32.mrf.mxu0
    %v2138 = vadd.f32 0.0, %v2137
    %2139 = vdwg.mxu0
    %v2140 = vmul.f32 %v2136, 0.25
    %v2141 = vmul.f32 %v2138, 0.25
    %v2142 = vadd.f32 %v2140, %v207
    %v2143 = vadd.f32 %v2141, %v208
    %v2144 = vsel %vm452, %v2142, -inf
    %2145 = vmax.xlane.f32.xlu0 %v2144
    %v2146 = vpop.xlane.xlu0 %2145
    %v2147 = vsel %vm452, %v2143, -inf
    %2148 = vmax.xlane.f32.xlu0 %v2147
    %v2149 = vpop.xlane.xlu0 %2148
    %v2150 = vsub.f32 %v2142, %v2146
    %v2151 = vsub.f32 %v2143, %v2149
    %v2152 = vmul.f32 %v2150, 1.442695
    %v2153 = vpow.pop %v2152
    %v2154 = vmul.f32 %v2151, 1.442695
    %v2155 = vpow.pop %v2154
    %v2156 = vsel %vm452, %v2153, 0.0
    %2157 = vadd.xlane.f32.xlu0 %v2156
    %v2158 = vpop.xlane.xlu0 %2157
    %v2159 = vsel %vm452, %v2155, 0.0
    %2160 = vadd.xlane.f32.xlu0 %v2159
    %v2161 = vpop.xlane.xlu0 %2160
    %v2162 = vrcp.pop %v2158
    %v2163 = vrcp.pop %v2161
    %v2164 = vmul.f32 %v2153, %v2162
    %v2165 = vmul.f32 %v2155, %v2163
    %v2166 = vpack.c.bf16 %v2165, %v2164
    %2167 = vrot.lane.b32.xlu0 %v2097, 112
    %v2168 = vpop.permute.xlu0 %2167
    %v2171 = vsel %vm452, %v2166, 0
    %2173 = vmatpush.bf16.msra.mxu0 0
    %2174 = vmatpush.bf16.msra.mxu0 0
    %2175 = vmatpush.bf16.msra.mxu0 0
    %2176 = vmatpush.bf16.msra.mxu0 0
    %2177 = vmatpush.bf16.msra.mxu0 0
    %2178 = vmatpush.bf16.msra.mxu0 0
    %2179 = vmatpush.bf16.msra.mxu0 0
    %2180 = vmatpush.bf16.msra.mxu0 %v2168
    %2181 = vmatmul.bf16.gmra.mxu0 %v2171
    %v2182 = vpop.f32.mrf.mxu0
    %v2183 = vadd.f32 0.0, %v2182
    %v2184 = vpop.f32.mrf.mxu0
    %v2185 = vadd.f32 0.0, %v2184
    %2186 = vdwg.mxu0
    %2187 = vrot.lane.b32.xlu0 %v2045, 96
    %v2188 = vpop.permute.xlu0 %2187
    %2189 = vrot.lane.b32.xlu0 %v2045, 32
    %v2190 = vpop.permute.xlu0 %2189
    %v2192 = vsel %vm452, %v2188, 0
    %v2195 = vsel %vm452, %v2190, 0
    %2197 = vmatpush.bf16.xpose.msra.mxu0 0
    %2198 = vmatpush.bf16.xpose.msra.mxu0 0
    %2199 = vmatpush.bf16.xpose.msra.mxu0 0
    %2200 = vmatpush.bf16.xpose.msra.mxu0 0
    %2201 = vmatpush.bf16.xpose.msra.mxu0 0
    %2202 = vmatpush.bf16.xpose.msra.mxu0 0
    %2203 = vmatpush.bf16.xpose.msra.mxu0 0
    %2204 = vmatpush.bf16.xpose.msra.mxu0 %v2195
    %2205 = vmatmul.bf16.gmra.mxu0 %v2192
    %v2206 = vpop.f32.mrf.mxu0
    %v2207 = vadd.f32 0.0, %v2206
    %v2208 = vpop.f32.mrf.mxu0
    %v2209 = vadd.f32 0.0, %v2208
    %2210 = vdwg.mxu0
    %v2211 = vmul.f32 %v2207, 0.25
    %v2212 = vmul.f32 %v2209, 0.25
    %v2213 = vadd.f32 %v2211, %v207
    %v2214 = vadd.f32 %v2212, %v208
    %v2215 = vsel %vm452, %v2213, -inf
    %2216 = vmax.xlane.f32.xlu0 %v2215
    %v2217 = vpop.xlane.xlu0 %2216
    %v2218 = vsel %vm452, %v2214, -inf
    %2219 = vmax.xlane.f32.xlu0 %v2218
    %v2220 = vpop.xlane.xlu0 %2219
    %v2221 = vsub.f32 %v2213, %v2217
    %v2222 = vsub.f32 %v2214, %v2220
    %v2223 = vmul.f32 %v2221, 1.442695
    %v2224 = vpow.pop %v2223
    %v2225 = vmul.f32 %v2222, 1.442695
    %v2226 = vpow.pop %v2225
    %v2227 = vsel %vm452, %v2224, 0.0
    %2228 = vadd.xlane.f32.xlu0 %v2227
    %v2229 = vpop.xlane.xlu0 %2228
    %v2230 = vsel %vm452, %v2226, 0.0
    %2231 = vadd.xlane.f32.xlu0 %v2230
    %v2232 = vpop.xlane.xlu0 %2231
    %v2233 = vrcp.pop %v2229
    %v2234 = vrcp.pop %v2232
    %v2235 = vmul.f32 %v2224, %v2233
    %v2236 = vmul.f32 %v2226, %v2234
    %v2237 = vpack.c.bf16 %v2236, %v2235
    %2238 = vrot.lane.b32.xlu0 %v2097, 96
    %v2239 = vpop.permute.xlu0 %2238
    %v2242 = vsel %vm452, %v2237, 0
    %2244 = vmatpush.bf16.msra.mxu0 0
    %2245 = vmatpush.bf16.msra.mxu0 0
    %2246 = vmatpush.bf16.msra.mxu0 0
    %2247 = vmatpush.bf16.msra.mxu0 0
    %2248 = vmatpush.bf16.msra.mxu0 0
    %2249 = vmatpush.bf16.msra.mxu0 0
    %2250 = vmatpush.bf16.msra.mxu0 0
    %2251 = vmatpush.bf16.msra.mxu0 %v2239
    %2252 = vmatmul.bf16.gmra.mxu0 %v2242
    %v2253 = vpop.f32.mrf.mxu0
    %v2254 = vadd.f32 0.0, %v2253
    %v2255 = vpop.f32.mrf.mxu0
    %v2256 = vadd.f32 0.0, %v2255
    %2257 = vdwg.mxu0
    %2258 = vrot.lane.b32.xlu0 %v2045, 80
    %v2259 = vpop.permute.xlu0 %2258
    %2260 = vrot.lane.b32.xlu0 %v2045, 16
    %v2261 = vpop.permute.xlu0 %2260
    %v2263 = vsel %vm452, %v2259, 0
    %v2266 = vsel %vm452, %v2261, 0
    %2268 = vmatpush.bf16.xpose.msra.mxu0 0
    %2269 = vmatpush.bf16.xpose.msra.mxu0 0
    %2270 = vmatpush.bf16.xpose.msra.mxu0 0
    %2271 = vmatpush.bf16.xpose.msra.mxu0 0
    %2272 = vmatpush.bf16.xpose.msra.mxu0 0
    %2273 = vmatpush.bf16.xpose.msra.mxu0 0
    %2274 = vmatpush.bf16.xpose.msra.mxu0 0
    %2275 = vmatpush.bf16.xpose.msra.mxu0 %v2266
    %2276 = vmatmul.bf16.gmra.mxu0 %v2263
    %v2277 = vpop.f32.mrf.mxu0
    %v2278 = vadd.f32 0.0, %v2277
    %v2279 = vpop.f32.mrf.mxu0
    %v2280 = vadd.f32 0.0, %v2279
    %2281 = vdwg.mxu0
    %v2282 = vmul.f32 %v2278, 0.25
    %v2283 = vmul.f32 %v2280, 0.25
    %v2284 = vadd.f32 %v2282, %v207
    %v2285 = vadd.f32 %v2283, %v208
    %v2286 = vsel %vm452, %v2284, -inf
    %2287 = vmax.xlane.f32.xlu0 %v2286
    %v2288 = vpop.xlane.xlu0 %2287
    %v2289 = vsel %vm452, %v2285, -inf
    %2290 = vmax.xlane.f32.xlu0 %v2289
    %v2291 = vpop.xlane.xlu0 %2290
    %v2292 = vsub.f32 %v2284, %v2288
    %v2293 = vsub.f32 %v2285, %v2291
    %v2294 = vmul.f32 %v2292, 1.442695
    %v2295 = vpow.pop %v2294
    %v2296 = vmul.f32 %v2293, 1.442695
    %v2297 = vpow.pop %v2296
    %v2298 = vsel %vm452, %v2295, 0.0
    %2299 = vadd.xlane.f32.xlu0 %v2298
    %v2300 = vpop.xlane.xlu0 %2299
    %v2301 = vsel %vm452, %v2297, 0.0
    %2302 = vadd.xlane.f32.xlu0 %v2301
    %v2303 = vpop.xlane.xlu0 %2302
    %v2304 = vrcp.pop %v2300
    %v2305 = vrcp.pop %v2303
    %v2306 = vmul.f32 %v2295, %v2304
    %v2307 = vmul.f32 %v2297, %v2305
    %v2308 = vpack.c.bf16 %v2307, %v2306
    %2309 = vrot.lane.b32.xlu0 %v2097, 80
    %v2310 = vpop.permute.xlu0 %2309
    %v2313 = vsel %vm452, %v2308, 0
    %2315 = vmatpush.bf16.msra.mxu0 0
    %2316 = vmatpush.bf16.msra.mxu0 0
    %2317 = vmatpush.bf16.msra.mxu0 0
    %2318 = vmatpush.bf16.msra.mxu0 0
    %2319 = vmatpush.bf16.msra.mxu0 0
    %2320 = vmatpush.bf16.msra.mxu0 0
    %2321 = vmatpush.bf16.msra.mxu0 0
    %2322 = vmatpush.bf16.msra.mxu0 %v2310
    %2323 = vmatmul.bf16.gmra.mxu0 %v2313
    %v2324 = vpop.f32.mrf.mxu0
    %v2325 = vadd.f32 0.0, %v2324
    %v2326 = vpop.f32.mrf.mxu0
    %v2327 = vadd.f32 0.0, %v2326
    %2328 = vdwg.mxu0
    %2331 = vrot.lane.b32.xlu0 %v2183, 16
    %v2332 = vpop.permute.xlu0 %2331
    %2333 = vrot.lane.b32.xlu0 %v2185, 16
    %v2334 = vpop.permute.xlu0 %2333
    %2339 = vrot.lane.b32.xlu0 %v2254, 32
    %v2340 = vpop.permute.xlu0 %2339
    %2341 = vrot.lane.b32.xlu0 %v2256, 32
    %v2342 = vpop.permute.xlu0 %2341
    %2347 = vrot.lane.b32.xlu0 %v2325, 48
    %v2348 = vpop.permute.xlu0 %2347
    %2349 = vrot.lane.b32.xlu0 %v2327, 48
    %v2350 = vpop.permute.xlu0 %2349
    %v2353 = vsel %vm452, %v2112, %v2332
    %v2354 = vsel %vm452, %v2114, %v2334
    %v2355 = vsel %vm760, %v2353, %v2340
    %v2356 = vsel %vm760, %v2354, %v2342
    %v2357 = vsel %vm763, %v2355, %v2348
    %v2358 = vsel %vm763, %v2356, %v2350
    %v2359 = vpack.c.bf16 %v2040, %v2039
    %v2360 = vpack.c.bf16 %v2358, %v2357
    %v2361 = vperm.slane %v1509, 5
    %v2370 = vunpack.c.l.b16 %v1500
    %v2371 = vunpack.c.l.b16 %v1501
    %v2372 = vunpack.c.l.b16 %v1502
    %v2373 = vunpack.c.l.b16 %v1503
    %v2374 = vunpack.c.l.b16 %v1504
    %v2375 = vunpack.c.l.b16 %v1505
    %v2376 = vunpack.c.l.b16 %v1506
    %v2377 = vunpack.c.l.b16 %v1507
    %v2378 = vpack.c.b16 %v2371, %v2370
    %v2379 = vpack.c.b16 %v2373, %v2372
    %v2380 = vpack.c.b16 %v2375, %v2374
    %v2381 = vpack.c.b16 %v2377, %v2376
    %v2387 = vsel %vm244, %v2359, 0
    %v2390 = vsel %vm244, %v2360, 0
    %2392 = vmatpush.bf16.msra.mxu0 0
    %2393 = vmatpush.bf16.msra.mxu0 0
    %2394 = vmatpush.bf16.msra.mxu0 0
    %2395 = vmatpush.bf16.msra.mxu0 0
    %2396 = vmatpush.bf16.msra.mxu0 %v2381
    %2397 = vmatpush.bf16.msra.mxu0 %v2380
    %2398 = vmatpush.bf16.msra.mxu0 %v2379
    %2399 = vmatpush.bf16.msra.mxu0 %v2378
    %2400 = vmatmul.bf16.gmra.mxu0 %v2387
    %v2401 = vpop.f32.mrf.mxu0
    %v2402 = vadd.f32 %v2361, %v2401
    %v2403 = vpop.f32.mrf.mxu0
    %v2404 = vadd.f32 %v2361, %v2403
    %2405 = vmatmul.bf16.gmra.mxu0 %v2390
    %v2406 = vpop.f32.mrf.mxu0
    %v2407 = vadd.f32 %v2361, %v2406
    %v2408 = vpop.f32.mrf.mxu0
    %v2409 = vadd.f32 %v2361, %v2408
    %2410 = vdwg.mxu0
    %v2411 = vadd.f32 %v1484, %v2402
    %v2412 = vadd.f32 %v1485, %v2404
    %v2413 = vadd.f32 %v1486, %v2407
    %v2414 = vadd.f32 %v1487, %v2409
    %v2415 = vsel %vm244, %v2411, 0.0
    %2416 = vadd.xlane.f32.xlu0 %v2415
    %v2417 = vpop.xlane.xlu0 %2416
    %v2418 = vsel %vm244, %v2412, 0.0
    %2419 = vadd.xlane.f32.xlu0 %v2418
    %v2420 = vpop.xlane.xlu0 %2419
    %v2421 = vsel %vm244, %v2413, 0.0
    %2422 = vadd.xlane.f32.xlu0 %v2421
    %v2423 = vpop.xlane.xlu0 %2422
    %v2424 = vsel %vm244, %v2414, 0.0
    %2425 = vadd.xlane.f32.xlu0 %v2424
    %v2426 = vpop.xlane.xlu0 %2425
    %v2427 = vmul.f32 %v2417, %v263
    %v2428 = vmul.f32 %v2420, %v263
    %v2429 = vmul.f32 %v2423, %v263
    %v2430 = vmul.f32 %v2426, %v263
    %v2431 = vsub.f32 %v2411, %v2427
    %v2432 = vsub.f32 %v2412, %v2428
    %v2433 = vsub.f32 %v2413, %v2429
    %v2434 = vsub.f32 %v2414, %v2430
    %v2435 = vmul.f32 %v2431, %v2431
    %v2436 = vmul.f32 %v2432, %v2432
    %v2437 = vmul.f32 %v2433, %v2433
    %v2438 = vmul.f32 %v2434, %v2434
    %v2439 = vsel %vm244, %v2435, 0.0
    %2440 = vadd.xlane.f32.xlu0 %v2439
    %v2441 = vpop.xlane.xlu0 %2440
    %v2442 = vsel %vm244, %v2436, 0.0
    %2443 = vadd.xlane.f32.xlu0 %v2442
    %v2444 = vpop.xlane.xlu0 %2443
    %v2445 = vsel %vm244, %v2437, 0.0
    %2446 = vadd.xlane.f32.xlu0 %v2445
    %v2447 = vpop.xlane.xlu0 %2446
    %v2448 = vsel %vm244, %v2438, 0.0
    %2449 = vadd.xlane.f32.xlu0 %v2448
    %v2450 = vpop.xlane.xlu0 %2449
    %v2451 = vmul.f32 %v2441, %v263
    %v2452 = vmul.f32 %v2444, %v263
    %v2453 = vmul.f32 %v2447, %v263
    %v2454 = vmul.f32 %v2450, %v263
    %v2455 = vadd.f32 %v2451, 1e-05
    %v2456 = vadd.f32 %v2452, 1e-05
    %v2457 = vadd.f32 %v2453, 1e-05
    %v2458 = vadd.f32 %v2454, 1e-05
    %v2459 = vrsqrt.pop %v2455
    %v2460 = vmul.f32 %v2459, %v2455
    %v2461 = vmul.f32 %v2460, %v2459
    %v2462 = vmul.f32 0.5, %v2461
    %v2463 = vsub.f32 1.5, %v2462
    %v2464 = vmul.f32 %v2459, %v2463
    %vm2465 = vweird.f32 %v2455
    %vm2466 = vweird.f32 %v2459
    %vm2467 = vmor %vm2465, %vm2466
    %v2468 = vsel %vm2467, %v2459, %v2464
    %v2469 = vrsqrt.pop %v2456
    %v2470 = vmul.f32 %v2469, %v2456
    %v2471 = vmul.f32 %v2470, %v2469
    %v2472 = vmul.f32 0.5, %v2471
    %v2473 = vsub.f32 1.5, %v2472
    %v2474 = vmul.f32 %v2469, %v2473
    %vm2475 = vweird.f32 %v2456
    %vm2476 = vweird.f32 %v2469
    %vm2477 = vmor %vm2475, %vm2476
    %v2478 = vsel %vm2477, %v2469, %v2474
    %v2479 = vrsqrt.pop %v2457
    %v2480 = vmul.f32 %v2479, %v2457
    %v2481 = vmul.f32 %v2480, %v2479
    %v2482 = vmul.f32 0.5, %v2481
    %v2483 = vsub.f32 1.5, %v2482
    %v2484 = vmul.f32 %v2479, %v2483
    %vm2485 = vweird.f32 %v2457
    %vm2486 = vweird.f32 %v2479
    %vm2487 = vmor %vm2485, %vm2486
    %v2488 = vsel %vm2487, %v2479, %v2484
    %v2489 = vrsqrt.pop %v2458
    %v2490 = vmul.f32 %v2489, %v2458
    %v2491 = vmul.f32 %v2490, %v2489
    %v2492 = vmul.f32 0.5, %v2491
    %v2493 = vsub.f32 1.5, %v2492
    %v2494 = vmul.f32 %v2489, %v2493
    %vm2495 = vweird.f32 %v2458
    %vm2496 = vweird.f32 %v2489
    %vm2497 = vmor %vm2495, %vm2496
    %v2498 = vsel %vm2497, %v2489, %v2494
    %v2499 = vmul.f32 %v2431, %v2468
    %v2500 = vmul.f32 %v2432, %v2478
    %v2501 = vmul.f32 %v2433, %v2488
    %v2502 = vmul.f32 %v2434, %v2498
    %v2503 = vperm.slane %v1509, 2
    %v2504 = vmul.f32 %v2499, %v2503
    %v2505 = vmul.f32 %v2500, %v2503
    %v2506 = vmul.f32 %v2501, %v2503
    %v2507 = vmul.f32 %v2502, %v2503
    %v2508 = vperm.slane %v1509, 3
    %v2509 = vadd.f32 %v2504, %v2508
    %v2510 = vadd.f32 %v2505, %v2508
    %v2511 = vadd.f32 %v2506, %v2508
    %v2512 = vadd.f32 %v2507, %v2508
    %v2513 = vpack.c.bf16 %v2510, %v2509
    %v2514 = vpack.c.bf16 %v2512, %v2511
    %v2516 = vperm.slane %v1520, 0
    %v2517 = vperm.slane %v1520, 1
    %v2528 = vunpack.c.l.b16 %v1511
    %v2529 = vunpack.c.h.b16 %v1511
    %v2530 = vunpack.c.l.b16 %v1512
    %v2531 = vunpack.c.h.b16 %v1512
    %v2532 = vunpack.c.l.b16 %v1513
    %v2533 = vunpack.c.h.b16 %v1513
    %v2534 = vunpack.c.l.b16 %v1514
    %v2535 = vunpack.c.h.b16 %v1514
    %v2536 = vunpack.c.l.b16 %v1515
    %v2537 = vunpack.c.h.b16 %v1515
    %v2538 = vunpack.c.l.b16 %v1516
    %v2539 = vunpack.c.h.b16 %v1516
    %v2540 = vunpack.c.l.b16 %v1517
    %v2541 = vunpack.c.h.b16 %v1517
    %v2542 = vunpack.c.l.b16 %v1518
    %v2543 = vunpack.c.h.b16 %v1518
    %v2544 = vpack.c.b16 %v2530, %v2528
    %v2545 = vpack.c.b16 %v2531, %v2529
    %v2546 = vpack.c.b16 %v2534, %v2532
    %v2547 = vpack.c.b16 %v2535, %v2533
    %v2548 = vpack.c.b16 %v2538, %v2536
    %v2549 = vpack.c.b16 %v2539, %v2537
    %v2550 = vpack.c.b16 %v2542, %v2540
    %v2551 = vpack.c.b16 %v2543, %v2541
    %v2561 = vsel %vm244, %v2513, 0
    %v2564 = vsel %vm244, %v2514, 0
    %2566 = vmatpush.bf16.msra.mxu0 0
    %2567 = vmatpush.bf16.msra.mxu0 0
    %2568 = vmatpush.bf16.msra.mxu0 0
    %2569 = vmatpush.bf16.msra.mxu0 0
    %2570 = vmatpush.bf16.msra.mxu0 %v2550
    %2571 = vmatpush.bf16.msra.mxu0 %v2548
    %2572 = vmatpush.bf16.msra.mxu0 %v2546
    %2573 = vmatpush.bf16.msra.mxu0 %v2544
    %2574 = vmatmul.bf16.gmra.mxu0 %v2561
    %v2575 = vpop.f32.mrf.mxu0
    %v2576 = vadd.f32 %v2516, %v2575
    %v2577 = vpop.f32.mrf.mxu0
    %v2578 = vadd.f32 %v2516, %v2577
    %2579 = vmatmul.bf16.gmra.mxu0 %v2564
    %v2580 = vpop.f32.mrf.mxu0
    %v2581 = vadd.f32 %v2516, %v2580
    %v2582 = vpop.f32.mrf.mxu0
    %v2583 = vadd.f32 %v2516, %v2582
    %2584 = vdwg.mxu0
    %2585 = vmatpush.bf16.msra.mxu0 0
    %2586 = vmatpush.bf16.msra.mxu0 0
    %2587 = vmatpush.bf16.msra.mxu0 0
    %2588 = vmatpush.bf16.msra.mxu0 0
    %2589 = vmatpush.bf16.msra.mxu0 %v2551
    %2590 = vmatpush.bf16.msra.mxu0 %v2549
    %2591 = vmatpush.bf16.msra.mxu0 %v2547
    %2592 = vmatpush.bf16.msra.mxu0 %v2545
    %2593 = vmatmul.bf16.gmra.mxu0 %v2561
    %v2594 = vpop.f32.mrf.mxu0
    %v2595 = vadd.f32 %v2517, %v2594
    %v2596 = vpop.f32.mrf.mxu0
    %v2597 = vadd.f32 %v2517, %v2596
    %2598 = vmatmul.bf16.gmra.mxu0 %v2564
    %v2599 = vpop.f32.mrf.mxu0
    %v2600 = vadd.f32 %v2517, %v2599
    %v2601 = vpop.f32.mrf.mxu0
    %v2602 = vadd.f32 %v2517, %v2601
    %2603 = vdwg.mxu0
    %v2604 = vmul.f32 %v2576, %v2576
    %v2605 = vmul.f32 %v2595, %v2595
    %v2606 = vmul.f32 %v2578, %v2578
    %v2607 = vmul.f32 %v2597, %v2597
    %v2608 = vmul.f32 %v2581, %v2581
    %v2609 = vmul.f32 %v2600, %v2600
    %v2610 = vmul.f32 %v2583, %v2583
    %v2611 = vmul.f32 %v2602, %v2602
    %v2612 = vmul.f32 %v2576, %v2604
    %v2613 = vmul.f32 %v2595, %v2605
    %v2614 = vmul.f32 %v2578, %v2606
    %v2615 = vmul.f32 %v2597, %v2607
    %v2616 = vmul.f32 %v2581, %v2608
    %v2617 = vmul.f32 %v2600, %v2609
    %v2618 = vmul.f32 %v2583, %v2610
    %v2619 = vmul.f32 %v2602, %v2611
    %v2620 = vmul.f32 %v2612, 0.044715
    %v2621 = vmul.f32 %v2613, 0.044715
    %v2622 = vmul.f32 %v2614, 0.044715
    %v2623 = vmul.f32 %v2615, 0.044715
    %v2624 = vmul.f32 %v2616, 0.044715
    %v2625 = vmul.f32 %v2617, 0.044715
    %v2626 = vmul.f32 %v2618, 0.044715
    %v2627 = vmul.f32 %v2619, 0.044715
    %v2628 = vadd.f32 %v2576, %v2620
    %v2629 = vadd.f32 %v2595, %v2621
    %v2630 = vadd.f32 %v2578, %v2622
    %v2631 = vadd.f32 %v2597, %v2623
    %v2632 = vadd.f32 %v2581, %v2624
    %v2633 = vadd.f32 %v2600, %v2625
    %v2634 = vadd.f32 %v2583, %v2626
    %v2635 = vadd.f32 %v2602, %v2627
    %v2636 = vmul.f32 %v2628, 0.7978846
    %v2637 = vmul.f32 %v2629, 0.7978846
    %v2638 = vmul.f32 %v2630, 0.7978846
    %v2639 = vmul.f32 %v2631, 0.7978846
    %v2640 = vmul.f32 %v2632, 0.7978846
    %v2641 = vmul.f32 %v2633, 0.7978846
    %v2642 = vmul.f32 %v2634, 0.7978846
    %v2643 = vmul.f32 %v2635, 0.7978846
    %v2644 = vtanh.pop %v2636
    %v2645 = vtanh.pop %v2637
    %v2646 = vtanh.pop %v2638
    %v2647 = vtanh.pop %v2639
    %v2648 = vtanh.pop %v2640
    %v2649 = vtanh.pop %v2641
    %v2650 = vtanh.pop %v2642
    %v2651 = vtanh.pop %v2643
    %v2652 = vadd.f32 %v2644, 1.0
    %v2653 = vadd.f32 %v2645, 1.0
    %v2654 = vadd.f32 %v2646, 1.0
    %v2655 = vadd.f32 %v2647, 1.0
    %v2656 = vadd.f32 %v2648, 1.0
    %v2657 = vadd.f32 %v2649, 1.0
    %v2658 = vadd.f32 %v2650, 1.0
    %v2659 = vadd.f32 %v2651, 1.0
    %v2660 = vmul.f32 %v2652, 0.5
    %v2661 = vmul.f32 %v2653, 0.5
    %v2662 = vmul.f32 %v2654, 0.5
    %v2663 = vmul.f32 %v2655, 0.5
    %v2664 = vmul.f32 %v2656, 0.5
    %v2665 = vmul.f32 %v2657, 0.5
    %v2666 = vmul.f32 %v2658, 0.5
    %v2667 = vmul.f32 %v2659, 0.5
    %v2668 = vmul.f32 %v2576, %v2660
    %v2669 = vmul.f32 %v2595, %v2661
    %v2670 = vmul.f32 %v2578, %v2662
    %v2671 = vmul.f32 %v2597, %v2663
    %v2672 = vmul.f32 %v2581, %v2664
    %v2673 = vmul.f32 %v2600, %v2665
    %v2674 = vmul.f32 %v2583, %v2666
    %v2675 = vmul.f32 %v2602, %v2667
    %v2676 = vpack.c.bf16 %v2670, %v2668
    %v2677 = vpack.c.bf16 %v2671, %v2669
    %v2678 = vpack.c.bf16 %v2674, %v2672
    %v2679 = vpack.c.bf16 %v2675, %v2673
    %v2680 = vperm.slane %v1509, 4
    %v2689 = vunpack.c.l.b16 %v1522
    %v2690 = vunpack.c.h.b16 %v1522
    %v2691 = vunpack.c.l.b16 %v1523
    %v2692 = vunpack.c.h.b16 %v1523
    %v2693 = vunpack.c.l.b16 %v1524
    %v2694 = vunpack.c.h.b16 %v1524
    %v2695 = vunpack.c.l.b16 %v1525
    %v2696 = vunpack.c.h.b16 %v1525
    %v2697 = vunpack.c.l.b16 %v1526
    %v2698 = vunpack.c.h.b16 %v1526
    %v2699 = vunpack.c.l.b16 %v1527
    %v2700 = vunpack.c.h.b16 %v1527
    %v2701 = vunpack.c.l.b16 %v1528
    %v2702 = vunpack.c.h.b16 %v1528
    %v2703 = vunpack.c.l.b16 %v1529
    %v2704 = vunpack.c.h.b16 %v1529
    %v2705 = vpack.c.b16 %v2691, %v2689
    %v2706 = vpack.c.b16 %v2692, %v2690
    %v2707 = vpack.c.b16 %v2695, %v2693
    %v2708 = vpack.c.b16 %v2696, %v2694
    %v2709 = vpack.c.b16 %v2699, %v2697
    %v2710 = vpack.c.b16 %v2700, %v2698
    %v2711 = vpack.c.b16 %v2703, %v2701
    %v2712 = vpack.c.b16 %v2704, %v2702
    %2721 = vmatpush.bf16.xpose.msra.mxu0 0
    %2722 = vmatpush.bf16.xpose.msra.mxu0 0
    %2723 = vmatpush.bf16.xpose.msra.mxu0 0
    %2724 = vmatpush.bf16.xpose.msra.mxu0 0
    %2725 = vmatpush.bf16.xpose.msra.mxu0 %v2711
    %2726 = vmatpush.bf16.xpose.msra.mxu0 %v2709
    %2727 = vmatpush.bf16.xpose.msra.mxu0 %v2707
    %2728 = vmatpush.bf16.xpose.msra.mxu0 %v2705
    %2729 = vmatmul.bf16.gmra.mxu0 %v2676
    %v2730 = vpop.f32.mrf.mxu0
    %v2731 = vpop.f32.mrf.mxu0
    %v2732 = vadd.f32 %v2680, %v2731
    %2733 = vmatmul.bf16.gmra.mxu0 %v2678
    %v2734 = vpop.f32.mrf.mxu0
    %v2735 = vpop.f32.mrf.mxu0
    %v2736 = vadd.f32 %v2680, %v2735
    %2737 = vdwg.mxu0
    %2738 = vmatpush.bf16.xpose.msra.mxu0 0
    %2739 = vmatpush.bf16.xpose.msra.mxu0 0
    %2740 = vmatpush.bf16.xpose.msra.mxu0 0
    %2741 = vmatpush.bf16.xpose.msra.mxu0 0
    %2742 = vmatpush.bf16.xpose.msra.mxu0 %v2712
    %2743 = vmatpush.bf16.xpose.msra.mxu0 %v2710
    %2744 = vmatpush.bf16.xpose.msra.mxu0 %v2708
    %2745 = vmatpush.bf16.xpose.msra.mxu0 %v2706
    %2746 = vmatmul.bf16.gmra.mxu0 %v2677
    %v2747 = vpop.f32.mrf.mxu0
    %v2748 = vpop.f32.mrf.mxu0
    %v2749 = vadd.f32 %v2732, %v2748
    %2750 = vmatmul.bf16.gmra.mxu0 %v2679
    %v2751 = vpop.f32.mrf.mxu0
    %v2752 = vpop.f32.mrf.mxu0
    %v2753 = vadd.f32 %v2736, %v2752
    %2754 = vdwg.mxu0
    %v2755 = vadd.f32 %v2412, %v2749
    %v2756 = vadd.f32 %v2414, %v2753
    %v2757 = vld [vmem:[%s9] sm:$0x3]
    %v2758 = vld [vmem:[#allocation16] sm:$0xf]
    %v2759 = vld [vmem:[#allocation16 + $0x4] sm:$0xf]
    %v2760 = vld [vmem:[#allocation16 + $0x8] sm:$0xf]
    %v2761 = vld [vmem:[#allocation16 + $0xc] sm:$0xf]
    %v2762 = vld [vmem:[#allocation16 + $0x10] sm:$0xf]
    %v2763 = vld [vmem:[#allocation16 + $0x14] sm:$0xf]
    %v2764 = vld [vmem:[#allocation16 + $0x18] sm:$0xf]
    %v2765 = vld [vmem:[#allocation16 + $0x1c] sm:$0xf]
    %v2766 = vld [vmem:[%s11] sm:$0x1]
    %vm2767 = vcmask 523268
    %v2768 = vsel %vm2767, %v2755, 0.0
    %2769 = vadd.xlane.f32.xlu0 %v2768
    %v2770 = vpop.xlane.xlu0 %2769
    %v2771 = vmul.f32 %v2770, %v263
    %v2772 = vsub.f32 %v2755, %v2771
    %v2773 = vmul.f32 %v2772, %v2772
    %v2774 = vsel %vm2767, %v2773, 0.0
    %2775 = vadd.xlane.f32.xlu0 %v2774
    %v2776 = vpop.xlane.xlu0 %2775
    %v2777 = vmul.f32 %v2776, %v263
    %v2778 = vadd.f32 %v2777, 1e-05
    %v2779 = vrsqrt.pop %v2778
    %v2780 = vmul.f32 %v2779, %v2778
    %v2781 = vmul.f32 %v2780, %v2779
    %v2782 = vmul.f32 0.5, %v2781
    %v2783 = vsub.f32 1.5, %v2782
    %v2784 = vmul.f32 %v2779, %v2783
    %vm2785 = vweird.f32 %v2778
    %vm2786 = vweird.f32 %v2779
    %vm2787 = vmor %vm2785, %vm2786
    %v2788 = vsel %vm2787, %v2779, %v2784
    %v2789 = vmul.f32 %v2772, %v2788
    %v2790 = vperm.slane %v2757, 0
    %v2791 = vmul.f32 %v2789, %v2790
    %v2792 = vperm.slane %v2757, 1
    %v2793 = vadd.f32 %v2791, %v2792
    %v2794 = vpack.c.bf16 %v2793, %v2793
    %v2796 = vperm.slane %v2766, 0
    %v2799 = vrot.slane %v2794, 2
    %v2808 = vunpack.c.l.b16 %v2758
    %v2809 = vunpack.c.l.b16 %v2759
    %v2810 = vunpack.c.l.b16 %v2760
    %v2811 = vunpack.c.l.b16 %v2761
    %v2812 = vunpack.c.l.b16 %v2762
    %v2813 = vunpack.c.l.b16 %v2763
    %v2814 = vunpack.c.l.b16 %v2764
    %v2815 = vunpack.c.l.b16 %v2765
    %v2816 = vpack.c.b16 %v2809, %v2808
    %v2817 = vpack.c.b16 %v2811, %v2810
    %v2818 = vpack.c.b16 %v2813, %v2812
    %v2819 = vpack.c.b16 %v2815, %v2814
    %v2825 = vsel %vm244, %v2799, 0
    %2827 = vmatpush.bf16.msra.mxu0 0
    %2828 = vmatpush.bf16.msra.mxu0 0
    %2829 = vmatpush.bf16.msra.mxu0 0
    %2830 = vmatpush.bf16.msra.mxu0 0
    %2831 = vmatpush.bf16.msra.mxu0 %v2819
    %2832 = vmatpush.bf16.msra.mxu0 %v2818
    %2833 = vmatpush.bf16.msra.mxu0 %v2817
    %2834 = vmatpush.bf16.msra.mxu0 %v2816
    %2835 = vmatmul.bf16.gmra.mxu0 %v2825
    %v2836 = vpop.f32.mrf.mxu0
    %v2837 = vadd.f32 %v2796, %v2836
    %v2838 = vpop.f32.mrf.mxu0
    %2839 = vdwg.mxu0
    %2840 = vst [vmem:[#allocation17] sm:$0xf] %v2837
    %v2841 = vsel %vm2767, %v2756, 0.0
    %2842 = vadd.xlane.f32.xlu0 %v2841
    %v2843 = vpop.xlane.xlu0 %2842
    %v2844 = vmul.f32 %v2843, %v263
    %v2845 = vsub.f32 %v2756, %v2844
    %v2846 = vmul.f32 %v2845, %v2845
    %v2847 = vsel %vm2767, %v2846, 0.0
    %2848 = vadd.xlane.f32.xlu0 %v2847
    %v2849 = vpop.xlane.xlu0 %2848
    %v2850 = vmul.f32 %v2849, %v263
    %v2851 = vadd.f32 %v2850, 1e-05
    %v2852 = vrsqrt.pop %v2851
    %v2853 = vmul.f32 %v2852, %v2851
    %v2854 = vmul.f32 %v2853, %v2852
    %v2855 = vmul.f32 0.5, %v2854
    %v2856 = vsub.f32 1.5, %v2855
    %v2857 = vmul.f32 %v2852, %v2856
    %vm2858 = vweird.f32 %v2851
    %vm2859 = vweird.f32 %v2852
    %vm2860 = vmor %vm2858, %vm2859
    %v2861 = vsel %vm2860, %v2852, %v2857
    %v2862 = vmul.f32 %v2845, %v2861
    %v2863 = vmul.f32 %v2862, %v2790
    %v2864 = vadd.f32 %v2863, %v2792
    %v2865 = vpack.c.bf16 %v2864, %v2864
    %v2867 = vrot.slane %v2865, 2
    %v2869 = vsel %vm244, %v2867, 0
    %2871 = vmatpush.bf16.msra.mxu0 0
    %2872 = vmatpush.bf16.msra.mxu0 0
    %2873 = vmatpush.bf16.msra.mxu0 0
    %2874 = vmatpush.bf16.msra.mxu0 0
    %2875 = vmatpush.bf16.msra.mxu0 %v2819
    %2876 = vmatpush.bf16.msra.mxu0 %v2818
    %2877 = vmatpush.bf16.msra.mxu0 %v2817
    %2878 = vmatpush.bf16.msra.mxu0 %v2816
    %2879 = vmatmul.bf16.gmra.mxu0 %v2869
    %v2880 = vpop.f32.mrf.mxu0
    %v2881 = vadd.f32 %v2796, %v2880
    %v2882 = vpop.f32.mrf.mxu0
    %2883 = vdwg.mxu0
    %s2884 = scalar_lea.vmem [#allocation17], 4
    %2885 = vst [vmem:[%s2884] sm:$0xf] %v2881
    // Predicated region
    $region86: #{tpu_custom_call.1} parent=1 // pred_check
      _
    $region87: #{tpu_custom_call.1} parent=1 // pred_check_branch
      %2887 = sbr.rel (0) target = $region89
    $region88: #{tpu_custom_call.1} parent=1 // pred_region
      %2889 = vsyncadd [#allocation4], 0
      %s2890 = sshll.u32 [#allocation17], 4
      %s2891 = int_to_ptr.vmem [resolvable:$true] %s2890
      %s2892 = sshll.u32 %s12, 4
      %s2893 = int_to_ptr.hbm [resolvable:$true] %s2892
      %2898 = dma.vmem_to_hbm [thread:$0]  %s2891, 128, %s2893, [#allocation4], 64, 64, 4
    $region89: #{tpu_custom_call.1} parent=1 // pred_fallthru
      _
    // Predicated region
    $region90: #{tpu_custom_call.1} parent=1 // pred_check
      _
    $region91: #{tpu_custom_call.1} parent=1 // pred_check_branch
      %2900 = sbr.rel (0) target = $region93
    $region92: #{tpu_custom_call.1} parent=1 // pred_region
      %2902 = dma.done [#allocation4], 128
    $region93: #{tpu_custom_call.1} parent=1 // pred_fallthru
      _
    %2903 = vsyncpa [#allocation3], 1
    %2904 = vsyncpa [#allocation6], 1
    %2905 = vsyncpa [#allocation9], 1
    %2906 = vsyncpa [#allocation12], 1
    %2907 = vsyncpa [#allocation15], 1
    %2908 = vsyncpa [#allocation4], 1

</llo_original>
